<compile_context>
chip_gen: v7x
topology: tpu7x:2x2x1
jax: 0.10.0
libtpu: 0.0.40
codegen_flags: <defaults>
</compile_context>

<pallas_src>
import functools

import numpy as np
import jax
import jax.numpy as jnp
from jax.experimental import pallas as pl
from jax.experimental.pallas import tpu as pltpu

WINDOW = 11                 # SSIM window_size
SIGMA = 1.5
MSE_WEIGHT = 1.0
SSIM_WEIGHT = 0.3
EDGE_WEIGHT = 0.2
_C1 = 0.01 ** 2
_C2 = 0.03 ** 2


def _gaussian_1d():
    # Mirrors the PyTorch gaussian_kernel() helper (1-D, normalized).
    coords = np.arange(WINDOW, dtype=np.float32) - (WINDOW // 2)
    g = np.exp(-coords ** 2 / (2.0 * SIGMA ** 2))
    return (g / g.sum()).astype(np.float32)


def _banded(n, taps, *, delta_is_col_minus_row):
    """n x n banded matrix M with M[r, c] = taps[delta + half].

    delta = (c - r) for left (row-axis) operators applied as OP @ X, and
    delta = (r - c) for right (column-axis) operators applied as X @ OP.
    Band clipping at the matrix edges reproduces F.conv2d's zero padding.
    """
    taps = np.asarray(taps, dtype=np.float32)
    half = len(taps) // 2
    idx = np.arange(n)
    if delta_is_col_minus_row:
        d = idx[None, :] - idx[:, None]
    else:
        d = idx[:, None] - idx[None, :]
    m = np.zeros((n, n), dtype=np.float32)
    sel = np.abs(d) <= half
    m[sel] = taps[d[sel] + half]
    return m


@functools.lru_cache(maxsize=None)
def _conv_operators(H, W, TB):
    """Left operators as block-diagonal (TB*H, TB*H); right operators (W, W)."""
    g = _gaussian_1d()
    eye = np.eye(TB, dtype=np.float32)
    # Left operators (OP @ X): act on the row / H axis, per image (block-diag).
    gauss_v = np.kron(eye, _banded(H, np.ones(WINDOW, np.float32),
                                   delta_is_col_minus_row=True))
    sob_smooth_v = np.kron(eye, _banded(H, [1.0, 2.0, 1.0],
                                        delta_is_col_minus_row=True))
    sob_diff_v = np.kron(eye, _banded(H, [-1.0, 0.0, 1.0],
                                      delta_is_col_minus_row=True))
    # Right operators (X @ OP): act on the column / W axis.
    gauss_h = _banded(W, g, delta_is_col_minus_row=False)
    sob_diff_h = _banded(W, [-1.0, 0.0, 1.0], delta_is_col_minus_row=False)
    sob_smooth_h = _banded(W, [1.0, 2.0, 1.0], delta_is_col_minus_row=False)
    hmats = np.stack([gauss_v, sob_smooth_v, sob_diff_v]).astype(np.float32)
    wmats = np.stack([gauss_h, sob_diff_h, sob_smooth_h]).astype(np.float32)
    return hmats, wmats


def _vmem_capacity_bytes():
    try:
        return int(pltpu.get_tpu_info().vmem_capacity_bytes)
    except Exception:
        return 64 * 1024 * 1024   # conservative (v7x per-TC VMEM)


def _footprint_bytes(tb, H, W, n_img_inputs):
    tbh = tb * H
    img = 2 * n_img_inputs * tbh * W          # double-buffered streamed images
    ops = 3 * tbh * tbh + 3 * W * W           # resident operator matrices
    tmp = 30 * tbh * W                        # stacked channels / conv / SSIM temps
    return 4 * (img + ops + tmp)


def _select_tb(B, H, W, n_img_inputs, vmem_cap):
    """Images per grid step: aim for TB*H >= 256 (MXU fill), cap TB*H <= 512
    (block-diag operator cost), shrink until the block fits the VMEM budget."""
    budget = int(vmem_cap * 0.45)
    tb = max(1, min(B, (256 + H - 1) // H, max(1, 512 // H)))
    while tb > 1 and _footprint_bytes(tb, H, W, n_img_inputs) > budget:
        tb -= 1
    return tb


def _combined_loss_kernel(*refs, tb, h, w, b_true, has_mask, needs_pad_mask,
                          use_bf16):
    """Per grid step: pred/target[/mask] (TB, H, W), hmats (3, TB*H, TB*H),
    wmats (3, W, W) -> out (1, 128) partial sums
    [sum_sq, sum_abs, sum_ssim_map, sum_edge, 0, ...]."""
    if has_mask:
        p_ref, t_ref, m_ref, hm_ref, wm_ref, out_ref = refs
    else:
        p_ref, t_ref, hm_ref, wm_ref, out_ref = refs
        m_ref = None

    f32 = jnp.float32
    tbh = tb * h

    p = p_ref[...].reshape(tbh, w)
    t = t_ref[...].reshape(tbh, w)
    if m_ref is not None:                      # fused valid_mask multiply
        m = m_ref[...].astype(f32).reshape(tbh, w)
        p = p * m
        t = t * m

    gauss_v = hm_ref[0]          # (TB*H, TB*H) block-diag, taps = ones(11)
    sob_smooth_v = hm_ref[1]     # block-diag [1, 2, 1]
    sob_diff_v = hm_ref[2]       # block-diag [-1, 0, 1]
    gauss_h = wm_ref[0]          # (W, W) gaussian 11-tap band
    sob_diff_h = wm_ref[1]       # (W, W) [-1, 0, 1]
    sob_smooth_h = wm_ref[2]     # (W, W) [1, 2, 1]

    mm_dtype = jnp.bfloat16 if use_bf16 else f32

    def mm(a, b):
        return jnp.dot(a.astype(mm_dtype), b.astype(mm_dtype),
                       preferred_element_type=f32)

    # ---- MSE / L1 partial sums ---------------------------------------------
    diff = p - t
    sum_sq = jnp.sum(diff * diff)
    sum_abs = jnp.sum(jnp.abs(diff))

    # ---- SSIM ----------------------------------------------------------------
    # Reference kernel: kernel[i, j] = g[j]  =>  unweighted vertical 11-sum
    # then gaussian horizontal 11-sum.  Stack the 5 conv inputs so the right
    # (lane-axis) conv is one tall MXU matmul; then block-diag left matmuls.
    sstack = jnp.concatenate([p, t, p * p, t * t, p * t], axis=0)   # (5*TBH, W)
    sr = mm(sstack, gauss_h)

    def chunk(i):
        return sr[i * tbh:(i + 1) * tbh, :]

    mu1 = mm(gauss_v, chunk(0))
    mu2 = mm(gauss_v, chunk(1))
    mu1_mu2 = mu1 * mu2
    mu1_sq = mu1 * mu1
    mu2_sq = mu2 * mu2
    # Form num / den as soon as their ingredients exist to keep the live set
    # of (TB*H, W) f32 temporaries small.
    sigma12 = mm(gauss_v, chunk(4)) - mu1_mu2
    num = (2.0 * mu1_mu2 + _C1) * (2.0 * sigma12 + _C2)
    sigma1_sq = mm(gauss_v, chunk(2)) - mu1_sq
    sigma2_sq = mm(gauss_v, chunk(3)) - mu2_sq
    den = (mu1_sq + mu2_sq + _C1) * (sigma1_sq + sigma2_sq + _C2)
    # EUP reciprocal + one Newton step (near-exact divide, off the VALU path).
    r = pl.reciprocal(den, approx=True)
    r = r * (2.0 - den * r)
    ssim_map = num * r
    if needs_pad_mask:
        # Zero-padded images (batch padding to a multiple of TB) have an SSIM
        # map of exactly 1.0; mask their rows out of the sum.
        row = jax.lax.broadcasted_iota(jnp.int32, (tbh, 1), 0)
        img = pl.program_id(0) * tb + row // h
        ssim_map = ssim_map * (img < b_true).astype(f32)
    sum_ssim = jnp.sum(ssim_map)

    # ---- Sobel edge loss ([1,2,1] (x) [-1,0,1] and its transpose) ------------
    pt_stack = jnp.concatenate([p, t], axis=0)          # (2*TBH, W)
    gx_r = mm(pt_stack, sob_diff_h)
    gy_r = mm(pt_stack, sob_smooth_h)
    gx_p = mm(sob_smooth_v, gx_r[:tbh, :])
    gx_t = mm(sob_smooth_v, gx_r[tbh:, :])
    gy_p = mm(sob_diff_v, gy_r[:tbh, :])
    gy_t = mm(sob_diff_v, gy_r[tbh:, :])
    gmag_p = jnp.sqrt(gx_p * gx_p + gy_p * gy_p + 1e-8)
    gmag_t = jnp.sqrt(gx_t * gx_t + gy_t * gy_t + 1e-8)
    sum_edge = jnp.sum(jnp.abs(gmag_p - gmag_t))

    # ---- lane-packed per-block partial sums (parallel grid, no SMEM RMW) -----
    lane = jax.lax.broadcasted_iota(jnp.int32, (1, 128), 1)
    out_ref[...] = (jnp.where(lane == 0, sum_sq, 0.0)
                    + jnp.where(lane == 1, sum_abs, 0.0)
                    + jnp.where(lane == 2, sum_ssim, 0.0)
                    + jnp.where(lane == 3, sum_edge, 0.0))


def combined_loss(pred, target, valid_mask=None, *, use_bf16_matmul=False):
    """pred/target: (N, C, H, W) with C == 1 (NCHW single-channel depth).
    Returns (total, mse, l1, ssim, edge, perceptual) float32 scalars."""
    N, C, H, W = pred.shape
    assert C == 1, "edge loss (single-channel Sobel) requires C == 1"
    B = N * C
    p = pred.astype(jnp.float32).reshape(B, H, W)
    t = target.astype(jnp.float32).reshape(B, H, W)

    has_mask = valid_mask is not None
    n_img_inputs = 3 if has_mask else 2
    vmem_cap = _vmem_capacity_bytes()
    TB = _select_tb(B, H, W, n_img_inputs, vmem_cap)
    num_blocks = -(-B // TB)
    B_pad = num_blocks * TB
    needs_pad_mask = B_pad != B

    if needs_pad_mask:
        zpad = jnp.zeros((B_pad - B, H, W), jnp.float32)
        p = jnp.concatenate([p, zpad], axis=0)
        t = jnp.concatenate([t, zpad], axis=0)

    img_spec = pl.BlockSpec((TB, H, W), lambda b: (b, 0, 0))
    inputs = [p, t]
    in_specs = [img_spec, img_spec]
    if has_mask:
        # Stream the mask in a narrow dtype; cast to f32 inside the kernel.
        m = jnp.broadcast_to(valid_mask, pred.shape).reshape(B, H, W)
        if not jnp.issubdtype(m.dtype, jnp.floating):
            m = m.astype(jnp.bfloat16)
        if needs_pad_mask:
            m = jnp.concatenate(
                [m, jnp.zeros((B_pad - B, H, W), m.dtype)], axis=0)
        inputs.append(m)
        in_specs.append(img_spec)

    hmats_np, wmats_np = _conv_operators(H, W, TB)
    inputs.append(jnp.asarray(hmats_np))
    inputs.append(jnp.asarray(wmats_np))

    kernel = functools.partial(
        _combined_loss_kernel, tb=TB, h=H, w=W, b_true=B, has_mask=has_mask,
        needs_pad_mask=needs_pad_mask, use_bf16=use_bf16_matmul)

    footprint = _footprint_bytes(TB, H, W, n_img_inputs)
    vmem_limit = int(min(max(2 * footprint, 32 * 1024 * 1024),
                         int(vmem_cap * 0.85)))

    def _call(single_buffer_ops):
        # Constant index_map -> operators are DMA'd once and stay resident.
        # Buffered(1) removes their (useless) second pipeline buffer.
        if single_buffer_ops:
            hspec = pl.BlockSpec((3, TB * H, TB * H), lambda b: (0, 0, 0),
                                 pipeline_mode=pl.Buffered(1))
            wspec = pl.BlockSpec((3, W, W), lambda b: (0, 0, 0),
                                 pipeline_mode=pl.Buffered(1))
        else:
            hspec = pl.BlockSpec((3, TB * H, TB * H), lambda b: (0, 0, 0))
            wspec = pl.BlockSpec((3, W, W), lambda b: (0, 0, 0))
        out = pl.pallas_call(
            kernel,
            out_shape=jax.ShapeDtypeStruct((num_blocks, 128), jnp.float32),
            grid_spec=pltpu.PrefetchScalarGridSpec(
                num_scalar_prefetch=0,
                grid=(num_blocks,),
                in_specs=in_specs + [hspec, wspec],
                out_specs=pl.BlockSpec((1, 128), lambda b: (b, 0)),
            ),
            compiler_params=pltpu.CompilerParams(
                # Each block writes its own partial-sum row -> no cross-step
                # dependence, so the grid axis can be megacore-parallel.
                dimension_semantics=("parallel",),
                vmem_limit_bytes=vmem_limit,
            ),
        )(*inputs)
        return jax.block_until_ready(out)

    try:
        parts = _call(True)
    except Exception:
        # Fallback for JAX versions that reject pipeline_mode / Buffered(1).
        parts = _call(False)

    # Final 4-element reduction + weight fold (tiny, done in the wrapper so the
    # kernel grid stays embarrassingly parallel).
    sums = jnp.sum(parts, axis=0)
    inv_n = 1.0 / float(B * H * W)
    mse = sums[0] * (MSE_WEIGHT * inv_n)
    l1 = sums[1] * inv_n
    ssim = (1.0 - sums[2] * inv_n) * SSIM_WEIGHT
    edge = sums[3] * (EDGE_WEIGHT * inv_n)
    total = mse + l1 + ssim + edge
    perceptual = jnp.zeros((), jnp.float32)   # use_perceptual=False path
    return total, mse, l1, ssim, edge, perceptual


if __name__ == "__main__":
    key = jax.random.PRNGKey(0)
    k1, k2 = jax.random.split(key)
    # depth-image style inputs: N=2, C=1, H=W=16
    pred = jax.random.uniform(k1, (2, 1, 16, 16), dtype=jnp.float32)
    target = jax.random.uniform(k2, (2, 1, 16, 16), dtype=jnp.float32)

    outs = combined_loss(pred, target)
    jax.block_until_ready(outs)
    print("KERNEL_OK")
</pallas_src>

<mosaic_0001>
module attributes {stable_mosaic.version = 11 : i64} {
  func.func @_combined_loss_kernel(%arg0: i32, %arg1: memref<2x16x16xf32, #tpu.memory_space<vmem>>, %arg2: memref<2x16x16xf32, #tpu.memory_space<vmem>>, %arg3: memref<3x32x32xf32, #tpu.memory_space<vmem>>, %arg4: memref<3x16x16xf32, #tpu.memory_space<vmem>>, %arg5: memref<1x128xf32, #tpu.memory_space<vmem>>) attributes {dimension_semantics = [#tpu.dimension_semantics<parallel>], iteration_bounds = array<i64: 1>, scalar_prefetch = 0 : i64, scratch_operands = 0 : i64, tpu.core_type = #tpu.core_type<tc>, window_params = [{transform_indices = @transform_0, window_bounds = array<i64: 2, 16, 16>}, {transform_indices = @transform_1, window_bounds = array<i64: 2, 16, 16>}, {pipeline_mode = #tpu.pipeline_mode<synchronous>, transform_indices = @transform_2, window_bounds = array<i64: 3, 32, 32>}, {pipeline_mode = #tpu.pipeline_mode<synchronous>, transform_indices = @transform_3, window_bounds = array<i64: 3, 16, 16>}, {transform_indices = @transform_4, window_bounds = array<i64: 1, 128>}]} {
    %c0 = arith.constant 0 : index
    %c0_0 = arith.constant 0 : index
    %c0_1 = arith.constant 0 : index
    %0 = vector.load %arg1[%c0, %c0_0, %c0_1] : memref<2x16x16xf32, #tpu.memory_space<vmem>>, vector<2x16x16xf32>
    %1 = vector.shape_cast %0 : vector<2x16x16xf32> to vector<32x16xf32>
    %c0_2 = arith.constant 0 : index
    %c0_3 = arith.constant 0 : index
    %c0_4 = arith.constant 0 : index
    %2 = vector.load %arg2[%c0_2, %c0_3, %c0_4] : memref<2x16x16xf32, #tpu.memory_space<vmem>>, vector<2x16x16xf32>
    %3 = vector.shape_cast %2 : vector<2x16x16xf32> to vector<32x16xf32>
    %c0_5 = arith.constant 0 : index
    %c0_6 = arith.constant 0 : index
    %c0_7 = arith.constant 0 : index
    %4 = vector.load %arg3[%c0_5, %c0_6, %c0_7] : memref<3x32x32xf32, #tpu.memory_space<vmem>>, vector<1x32x32xf32>
    %5 = vector.shape_cast %4 : vector<1x32x32xf32> to vector<32x32xf32>
    %c1 = arith.constant 1 : index
    %c0_8 = arith.constant 0 : index
    %c0_9 = arith.constant 0 : index
    %6 = vector.load %arg3[%c1, %c0_8, %c0_9] : memref<3x32x32xf32, #tpu.memory_space<vmem>>, vector<1x32x32xf32>
    %7 = vector.shape_cast %6 : vector<1x32x32xf32> to vector<32x32xf32>
    %c2 = arith.constant 2 : index
    %c0_10 = arith.constant 0 : index
    %c0_11 = arith.constant 0 : index
    %8 = vector.load %arg3[%c2, %c0_10, %c0_11] : memref<3x32x32xf32, #tpu.memory_space<vmem>>, vector<1x32x32xf32>
    %9 = vector.shape_cast %8 : vector<1x32x32xf32> to vector<32x32xf32>
    %c0_12 = arith.constant 0 : index
    %c0_13 = arith.constant 0 : index
    %c0_14 = arith.constant 0 : index
    %10 = vector.load %arg4[%c0_12, %c0_13, %c0_14] : memref<3x16x16xf32, #tpu.memory_space<vmem>>, vector<1x16x16xf32>
    %11 = vector.shape_cast %10 : vector<1x16x16xf32> to vector<16x16xf32>
    %c1_15 = arith.constant 1 : index
    %c0_16 = arith.constant 0 : index
    %c0_17 = arith.constant 0 : index
    %12 = vector.load %arg4[%c1_15, %c0_16, %c0_17] : memref<3x16x16xf32, #tpu.memory_space<vmem>>, vector<1x16x16xf32>
    %13 = vector.shape_cast %12 : vector<1x16x16xf32> to vector<16x16xf32>
    %c2_18 = arith.constant 2 : index
    %c0_19 = arith.constant 0 : index
    %c0_20 = arith.constant 0 : index
    %14 = vector.load %arg4[%c2_18, %c0_19, %c0_20] : memref<3x16x16xf32, #tpu.memory_space<vmem>>, vector<1x16x16xf32>
    %15 = vector.shape_cast %14 : vector<1x16x16xf32> to vector<16x16xf32>
    %16 = arith.subf %1, %3 : vector<32x16xf32>
    %17 = arith.mulf %16, %16 : vector<32x16xf32>
    %18 = vector.shape_cast %17 : vector<32x16xf32> to vector<1x32x16xf32>
    %cst = arith.constant dense<0.000000e+00> : vector<1xf32>
    %19 = vector.multi_reduction <add>, %18, %cst [1, 2] : vector<1x32x16xf32> to vector<1xf32>
    %20 = vector.shape_cast %19 : vector<1xf32> to vector<1x1x1xf32>
    %21 = vector.extract %20[0, 0, 0] : f32 from vector<1x1x1xf32>
    %22 = math.absf %16 : vector<32x16xf32>
    %23 = vector.shape_cast %22 : vector<32x16xf32> to vector<1x32x16xf32>
    %cst_21 = arith.constant dense<0.000000e+00> : vector<1xf32>
    %24 = vector.multi_reduction <add>, %23, %cst_21 [1, 2] : vector<1x32x16xf32> to vector<1xf32>
    %25 = vector.shape_cast %24 : vector<1xf32> to vector<1x1x1xf32>
    %26 = vector.extract %25[0, 0, 0] : f32 from vector<1x1x1xf32>
    %27 = arith.mulf %1, %1 : vector<32x16xf32>
    %28 = arith.mulf %3, %3 : vector<32x16xf32>
    %29 = arith.mulf %1, %3 : vector<32x16xf32>
    %30 = tpu.concatenate %1, %3, %27, %28, %29 in 0 : vector<32x16xf32>, vector<32x16xf32>, vector<32x16xf32>, vector<32x16xf32>, vector<32x16xf32> -> vector<160x16xf32>
    %cst_22 = arith.constant dense<0.000000e+00> : vector<160x16xf32>
    %31 = tpu.matmul %30, %11, %cst_22 {dimension_numbers = #tpu.dot_dimension_numbers<[1], [0], [0], [1], [0, 0, 1, 1], [], []>} : vector<160x16xf32>, vector<16x16xf32>, vector<160x16xf32> -> vector<160x16xf32>
    %32 = vector.extract_strided_slice %31 {offsets = [0, 0], sizes = [32, 16], strides = [1, 1]} : vector<160x16xf32> to vector<32x16xf32>
    %cst_23 = arith.constant dense<0.000000e+00> : vector<32x16xf32>
    %33 = tpu.matmul %5, %32, %cst_23 {dimension_numbers = #tpu.dot_dimension_numbers<[1], [0], [0], [1], [0, 0, 1, 1], [], []>} : vector<32x32xf32>, vector<32x16xf32>, vector<32x16xf32> -> vector<32x16xf32>
    %34 = vector.extract_strided_slice %31 {offsets = [32, 0], sizes = [32, 16], strides = [1, 1]} : vector<160x16xf32> to vector<32x16xf32>
    %cst_24 = arith.constant dense<0.000000e+00> : vector<32x16xf32>
    %35 = tpu.matmul %5, %34, %cst_24 {dimension_numbers = #tpu.dot_dimension_numbers<[1], [0], [0], [1], [0, 0, 1, 1], [], []>} : vector<32x32xf32>, vector<32x16xf32>, vector<32x16xf32> -> vector<32x16xf32>
    %36 = arith.mulf %33, %35 : vector<32x16xf32>
    %37 = arith.mulf %33, %33 : vector<32x16xf32>
    %38 = arith.mulf %35, %35 : vector<32x16xf32>
    %39 = vector.extract_strided_slice %31 {offsets = [128, 0], sizes = [32, 16], strides = [1, 1]} : vector<160x16xf32> to vector<32x16xf32>
    %cst_25 = arith.constant dense<0.000000e+00> : vector<32x16xf32>
    %40 = tpu.matmul %5, %39, %cst_25 {dimension_numbers = #tpu.dot_dimension_numbers<[1], [0], [0], [1], [0, 0, 1, 1], [], []>} : vector<32x32xf32>, vector<32x16xf32>, vector<32x16xf32> -> vector<32x16xf32>
    %41 = arith.subf %40, %36 : vector<32x16xf32>
    %cst_26 = arith.constant 2.000000e+00 : f32
    %42 = vector.broadcast %cst_26 : f32 to vector<32x16xf32>
    %43 = arith.mulf %42, %36 : vector<32x16xf32>
    %cst_27 = arith.constant 9.99999974E-5 : f32
    %44 = vector.broadcast %cst_27 : f32 to vector<32x16xf32>
    %45 = arith.addf %43, %44 : vector<32x16xf32>
    %cst_28 = arith.constant 2.000000e+00 : f32
    %46 = vector.broadcast %cst_28 : f32 to vector<32x16xf32>
    %47 = arith.mulf %46, %41 : vector<32x16xf32>
    %cst_29 = arith.constant 8.99999984E-4 : f32
    %48 = vector.broadcast %cst_29 : f32 to vector<32x16xf32>
    %49 = arith.addf %47, %48 : vector<32x16xf32>
    %50 = arith.mulf %45, %49 : vector<32x16xf32>
    %51 = vector.extract_strided_slice %31 {offsets = [64, 0], sizes = [32, 16], strides = [1, 1]} : vector<160x16xf32> to vector<32x16xf32>
    %cst_30 = arith.constant dense<0.000000e+00> : vector<32x16xf32>
    %52 = tpu.matmul %5, %51, %cst_30 {dimension_numbers = #tpu.dot_dimension_numbers<[1], [0], [0], [1], [0, 0, 1, 1], [], []>} : vector<32x32xf32>, vector<32x16xf32>, vector<32x16xf32> -> vector<32x16xf32>
    %53 = arith.subf %52, %37 : vector<32x16xf32>
    %54 = vector.extract_strided_slice %31 {offsets = [96, 0], sizes = [32, 16], strides = [1, 1]} : vector<160x16xf32> to vector<32x16xf32>
    %cst_31 = arith.constant dense<0.000000e+00> : vector<32x16xf32>
    %55 = tpu.matmul %5, %54, %cst_31 {dimension_numbers = #tpu.dot_dimension_numbers<[1], [0], [0], [1], [0, 0, 1, 1], [], []>} : vector<32x32xf32>, vector<32x16xf32>, vector<32x16xf32> -> vector<32x16xf32>
    %56 = arith.subf %55, %38 : vector<32x16xf32>
    %57 = arith.addf %37, %38 : vector<32x16xf32>
    %cst_32 = arith.constant 9.99999974E-5 : f32
    %58 = vector.broadcast %cst_32 : f32 to vector<32x16xf32>
    %59 = arith.addf %57, %58 : vector<32x16xf32>
    %60 = arith.addf %53, %56 : vector<32x16xf32>
    %cst_33 = arith.constant 8.99999984E-4 : f32
    %61 = vector.broadcast %cst_33 : f32 to vector<32x16xf32>
    %62 = arith.addf %60, %61 : vector<32x16xf32>
    %63 = arith.mulf %59, %62 : vector<32x16xf32>
    %64 = tpu.reciprocal %63 {approx = true} : vector<32x16xf32> -> vector<32x16xf32>
    %65 = arith.mulf %63, %64 : vector<32x16xf32>
    %cst_34 = arith.constant 2.000000e+00 : f32
    %66 = vector.broadcast %cst_34 : f32 to vector<32x16xf32>
    %67 = arith.subf %66, %65 : vector<32x16xf32>
    %68 = arith.mulf %64, %67 : vector<32x16xf32>
    %69 = arith.mulf %50, %68 : vector<32x16xf32>
    %70 = vector.shape_cast %69 : vector<32x16xf32> to vector<1x32x16xf32>
    %cst_35 = arith.constant dense<0.000000e+00> : vector<1xf32>
    %71 = vector.multi_reduction <add>, %70, %cst_35 [1, 2] : vector<1x32x16xf32> to vector<1xf32>
    %72 = vector.shape_cast %71 : vector<1xf32> to vector<1x1x1xf32>
    %73 = vector.extract %72[0, 0, 0] : f32 from vector<1x1x1xf32>
    %74 = tpu.concatenate %1, %3 in 0 : vector<32x16xf32>, vector<32x16xf32> -> vector<64x16xf32>
    %cst_36 = arith.constant dense<0.000000e+00> : vector<64x16xf32>
    %75 = tpu.matmul %74, %13, %cst_36 {dimension_numbers = #tpu.dot_dimension_numbers<[1], [0], [0], [1], [0, 0, 1, 1], [], []>} : vector<64x16xf32>, vector<16x16xf32>, vector<64x16xf32> -> vector<64x16xf32>
    %cst_37 = arith.constant dense<0.000000e+00> : vector<64x16xf32>
    %76 = tpu.matmul %74, %15, %cst_37 {dimension_numbers = #tpu.dot_dimension_numbers<[1], [0], [0], [1], [0, 0, 1, 1], [], []>} : vector<64x16xf32>, vector<16x16xf32>, vector<64x16xf32> -> vector<64x16xf32>
    %77 = vector.extract_strided_slice %75 {offsets = [0, 0], sizes = [32, 16], strides = [1, 1]} : vector<64x16xf32> to vector<32x16xf32>
    %cst_38 = arith.constant dense<0.000000e+00> : vector<32x16xf32>
    %78 = tpu.matmul %7, %77, %cst_38 {dimension_numbers = #tpu.dot_dimension_numbers<[1], [0], [0], [1], [0, 0, 1, 1], [], []>} : vector<32x32xf32>, vector<32x16xf32>, vector<32x16xf32> -> vector<32x16xf32>
    %79 = vector.extract_strided_slice %75 {offsets = [32, 0], sizes = [32, 16], strides = [1, 1]} : vector<64x16xf32> to vector<32x16xf32>
    %cst_39 = arith.constant dense<0.000000e+00> : vector<32x16xf32>
    %80 = tpu.matmul %7, %79, %cst_39 {dimension_numbers = #tpu.dot_dimension_numbers<[1], [0], [0], [1], [0, 0, 1, 1], [], []>} : vector<32x32xf32>, vector<32x16xf32>, vector<32x16xf32> -> vector<32x16xf32>
    %81 = vector.extract_strided_slice %76 {offsets = [0, 0], sizes = [32, 16], strides = [1, 1]} : vector<64x16xf32> to vector<32x16xf32>
    %cst_40 = arith.constant dense<0.000000e+00> : vector<32x16xf32>
    %82 = tpu.matmul %9, %81, %cst_40 {dimension_numbers = #tpu.dot_dimension_numbers<[1], [0], [0], [1], [0, 0, 1, 1], [], []>} : vector<32x32xf32>, vector<32x16xf32>, vector<32x16xf32> -> vector<32x16xf32>
    %83 = vector.extract_strided_slice %76 {offsets = [32, 0], sizes = [32, 16], strides = [1, 1]} : vector<64x16xf32> to vector<32x16xf32>
    %cst_41 = arith.constant dense<0.000000e+00> : vector<32x16xf32>
    %84 = tpu.matmul %9, %83, %cst_41 {dimension_numbers = #tpu.dot_dimension_numbers<[1], [0], [0], [1], [0, 0, 1, 1], [], []>} : vector<32x32xf32>, vector<32x16xf32>, vector<32x16xf32> -> vector<32x16xf32>
    %85 = arith.mulf %78, %78 : vector<32x16xf32>
    %86 = arith.mulf %82, %82 : vector<32x16xf32>
    %87 = arith.addf %85, %86 : vector<32x16xf32>
    %cst_42 = arith.constant 9.99999993E-9 : f32
    %88 = vector.broadcast %cst_42 : f32 to vector<32x16xf32>
    %89 = arith.addf %87, %88 : vector<32x16xf32>
    %90 = math.sqrt %89 : vector<32x16xf32>
    %91 = arith.mulf %80, %80 : vector<32x16xf32>
    %92 = arith.mulf %84, %84 : vector<32x16xf32>
    %93 = arith.addf %91, %92 : vector<32x16xf32>
    %cst_43 = arith.constant 9.99999993E-9 : f32
    %94 = vector.broadcast %cst_43 : f32 to vector<32x16xf32>
    %95 = arith.addf %93, %94 : vector<32x16xf32>
    %96 = math.sqrt %95 : vector<32x16xf32>
    %97 = arith.subf %90, %96 : vector<32x16xf32>
    %98 = math.absf %97 : vector<32x16xf32>
    %99 = vector.shape_cast %98 : vector<32x16xf32> to vector<1x32x16xf32>
    %cst_44 = arith.constant dense<0.000000e+00> : vector<1xf32>
    %100 = vector.multi_reduction <add>, %99, %cst_44 [1, 2] : vector<1x32x16xf32> to vector<1xf32>
    %101 = vector.shape_cast %100 : vector<1xf32> to vector<1x1x1xf32>
    %102 = vector.extract %101[0, 0, 0] : f32 from vector<1x1x1xf32>
    %103 = tpu.iota {dimensions = array<i32: 1>} : vector<1x128xi32>
    %c0_i32 = arith.constant 0 : i32
    %104 = vector.broadcast %c0_i32 : i32 to vector<1x128xi32>
    %105 = arith.cmpi eq, %103, %104 : vector<1x128xi32>
    %cst_45 = arith.constant 0.000000e+00 : f32
    %106 = vector.broadcast %21 : f32 to vector<1x128xf32>
    %107 = vector.broadcast %cst_45 : f32 to vector<1x128xf32>
    %108 = arith.select %105, %106, %107 : vector<1x128xi1>, vector<1x128xf32>
    %c1_i32 = arith.constant 1 : i32
    %109 = vector.broadcast %c1_i32 : i32 to vector<1x128xi32>
    %110 = arith.cmpi eq, %103, %109 : vector<1x128xi32>
    %cst_46 = arith.constant 0.000000e+00 : f32
    %111 = vector.broadcast %26 : f32 to vector<1x128xf32>
    %112 = vector.broadcast %cst_46 : f32 to vector<1x128xf32>
    %113 = arith.select %110, %111, %112 : vector<1x128xi1>, vector<1x128xf32>
    %114 = arith.addf %108, %113 : vector<1x128xf32>
    %c2_i32 = arith.constant 2 : i32
    %115 = vector.broadcast %c2_i32 : i32 to vector<1x128xi32>
    %116 = arith.cmpi eq, %103, %115 : vector<1x128xi32>
    %cst_47 = arith.constant 0.000000e+00 : f32
    %117 = vector.broadcast %73 : f32 to vector<1x128xf32>
    %118 = vector.broadcast %cst_47 : f32 to vector<1x128xf32>
    %119 = arith.select %116, %117, %118 : vector<1x128xi1>, vector<1x128xf32>
    %120 = arith.addf %114, %119 : vector<1x128xf32>
    %c3_i32 = arith.constant 3 : i32
    %121 = vector.broadcast %c3_i32 : i32 to vector<1x128xi32>
    %122 = arith.cmpi eq, %103, %121 : vector<1x128xi32>
    %cst_48 = arith.constant 0.000000e+00 : f32
    %123 = vector.broadcast %102 : f32 to vector<1x128xf32>
    %124 = vector.broadcast %cst_48 : f32 to vector<1x128xf32>
    %125 = arith.select %122, %123, %124 : vector<1x128xi1>, vector<1x128xf32>
    %126 = arith.addf %120, %125 : vector<1x128xf32>
    %c0_49 = arith.constant 0 : index
    %c0_50 = arith.constant 0 : index
    %127 = vector.load %arg5[%c0_49, %c0_50] : memref<1x128xf32, #tpu.memory_space<vmem>>, vector<1x128xf32>
    tpu.vector_store %arg5[%c0_49, %c0_50], %126 {strides = array<i32>} : memref<1x128xf32, #tpu.memory_space<vmem>>, vector<1x128xf32>,
    return
  }
  func.func @transform_0(%arg0: i32) -> (i32, i32, i32) {
    %c0_i32 = arith.constant 0 : i32
    %c0_i32_0 = arith.constant 0 : i32
    %c0_i32_1 = arith.constant 0 : i32
    return %arg0, %c0_i32, %c0_i32_0 : i32, i32, i32
  }
  func.func @transform_1(%arg0: i32) -> (i32, i32, i32) {
    %c0_i32 = arith.constant 0 : i32
    %c0_i32_0 = arith.constant 0 : i32
    %c0_i32_1 = arith.constant 0 : i32
    return %arg0, %c0_i32, %c0_i32_0 : i32, i32, i32
  }
  func.func @transform_2(%arg0: i32) -> (i32, i32, i32) {
    %c0_i32 = arith.constant 0 : i32
    %c0_i32_0 = arith.constant 0 : i32
    %c0_i32_1 = arith.constant 0 : i32
    %c0_i32_2 = arith.constant 0 : i32
    return %c0_i32, %c0_i32_0, %c0_i32_1 : i32, i32, i32
  }
  func.func @transform_3(%arg0: i32) -> (i32, i32, i32) {
    %c0_i32 = arith.constant 0 : i32
    %c0_i32_0 = arith.constant 0 : i32
    %c0_i32_1 = arith.constant 0 : i32
    %c0_i32_2 = arith.constant 0 : i32
    return %c0_i32, %c0_i32_0, %c0_i32_1 : i32, i32, i32
  }
  func.func @transform_4(%arg0: i32) -> (i32, i32) {
    %c0_i32 = arith.constant 0 : i32
    %c0_i32_0 = arith.constant 0 : i32
    return %arg0, %c0_i32 : i32, i32
  }
}

module attributes {stable_mosaic.version = 11 : i64} {
  func.func @_combined_loss_kernel(%arg0: i32, %arg1: memref<2x16x16xf32, #tpu.memory_space<vmem>>, %arg2: memref<2x16x16xf32, #tpu.memory_space<vmem>>, %arg3: memref<3x32x32xf32, #tpu.memory_space<vmem>>, %arg4: memref<3x16x16xf32, #tpu.memory_space<vmem>>, %arg5: memref<1x128xf32, #tpu.memory_space<vmem>>) attributes {dimension_semantics = [#tpu.dimension_semantics<parallel>], iteration_bounds = array<i64: 1>, scalar_prefetch = 0 : i64, scratch_operands = 0 : i64, tpu.core_type = #tpu.core_type<tc>, window_params = [{transform_indices = @transform_0, window_bounds = array<i64: 2, 16, 16>}, {transform_indices = @transform_1, window_bounds = array<i64: 2, 16, 16>}, {pipeline_mode = #tpu.pipeline_mode<synchronous>, transform_indices = @transform_2, window_bounds = array<i64: 3, 32, 32>}, {pipeline_mode = #tpu.pipeline_mode<synchronous>, transform_indices = @transform_3, window_bounds = array<i64: 3, 16, 16>}, {transform_indices = @transform_4, window_bounds = array<i64: 1, 128>}]} {
    %c0 = arith.constant 0 : index
    %c0_0 = arith.constant 0 : index
    %c0_1 = arith.constant 0 : index
    %0 = vector.load %arg1[%c0, %c0_0, %c0_1] : memref<2x16x16xf32, #tpu.memory_space<vmem>>, vector<2x16x16xf32>
    %1 = vector.shape_cast %0 : vector<2x16x16xf32> to vector<32x16xf32>
    %c0_2 = arith.constant 0 : index
    %c0_3 = arith.constant 0 : index
    %c0_4 = arith.constant 0 : index
    %2 = vector.load %arg2[%c0_2, %c0_3, %c0_4] : memref<2x16x16xf32, #tpu.memory_space<vmem>>, vector<2x16x16xf32>
    %3 = vector.shape_cast %2 : vector<2x16x16xf32> to vector<32x16xf32>
    %c0_5 = arith.constant 0 : index
    %c0_6 = arith.constant 0 : index
    %c0_7 = arith.constant 0 : index
    %4 = vector.load %arg3[%c0_5, %c0_6, %c0_7] : memref<3x32x32xf32, #tpu.memory_space<vmem>>, vector<1x32x32xf32>
    %5 = vector.shape_cast %4 : vector<1x32x32xf32> to vector<32x32xf32>
    %c1 = arith.constant 1 : index
    %c0_8 = arith.constant 0 : index
    %c0_9 = arith.constant 0 : index
    %6 = vector.load %arg3[%c1, %c0_8, %c0_9] : memref<3x32x32xf32, #tpu.memory_space<vmem>>, vector<1x32x32xf32>
    %7 = vector.shape_cast %6 : vector<1x32x32xf32> to vector<32x32xf32>
    %c2 = arith.constant 2 : index
    %c0_10 = arith.constant 0 : index
    %c0_11 = arith.constant 0 : index
    %8 = vector.load %arg3[%c2, %c0_10, %c0_11] : memref<3x32x32xf32, #tpu.memory_space<vmem>>, vector<1x32x32xf32>
    %9 = vector.shape_cast %8 : vector<1x32x32xf32> to vector<32x32xf32>
    %c0_12 = arith.constant 0 : index
    %c0_13 = arith.constant 0 : index
    %c0_14 = arith.constant 0 : index
    %10 = vector.load %arg4[%c0_12, %c0_13, %c0_14] : memref<3x16x16xf32, #tpu.memory_space<vmem>>, vector<1x16x16xf32>
    %11 = vector.shape_cast %10 : vector<1x16x16xf32> to vector<16x16xf32>
    %c1_15 = arith.constant 1 : index
    %c0_16 = arith.constant 0 : index
    %c0_17 = arith.constant 0 : index
    %12 = vector.load %arg4[%c1_15, %c0_16, %c0_17] : memref<3x16x16xf32, #tpu.memory_space<vmem>>, vector<1x16x16xf32>
    %13 = vector.shape_cast %12 : vector<1x16x16xf32> to vector<16x16xf32>
    %c2_18 = arith.constant 2 : index
    %c0_19 = arith.constant 0 : index
    %c0_20 = arith.constant 0 : index
    %14 = vector.load %arg4[%c2_18, %c0_19, %c0_20] : memref<3x16x16xf32, #tpu.memory_space<vmem>>, vector<1x16x16xf32>
    %15 = vector.shape_cast %14 : vector<1x16x16xf32> to vector<16x16xf32>
    %16 = arith.subf %1, %3 : vector<32x16xf32>
    %17 = arith.mulf %16, %16 : vector<32x16xf32>
    %18 = vector.shape_cast %17 : vector<32x16xf32> to vector<1x32x16xf32>
    %cst = arith.constant dense<0.000000e+00> : vector<1xf32>
    %19 = vector.multi_reduction <add>, %18, %cst [1, 2] : vector<1x32x16xf32> to vector<1xf32>
    %20 = vector.shape_cast %19 : vector<1xf32> to vector<1x1x1xf32>
    %21 = vector.extract %20[0, 0, 0] : f32 from vector<1x1x1xf32>
    %22 = math.absf %16 : vector<32x16xf32>
    %23 = vector.shape_cast %22 : vector<32x16xf32> to vector<1x32x16xf32>
    %cst_21 = arith.constant dense<0.000000e+00> : vector<1xf32>
    %24 = vector.multi_reduction <add>, %23, %cst_21 [1, 2] : vector<1x32x16xf32> to vector<1xf32>
    %25 = vector.shape_cast %24 : vector<1xf32> to vector<1x1x1xf32>
    %26 = vector.extract %25[0, 0, 0] : f32 from vector<1x1x1xf32>
    %27 = arith.mulf %1, %1 : vector<32x16xf32>
    %28 = arith.mulf %3, %3 : vector<32x16xf32>
    %29 = arith.mulf %1, %3 : vector<32x16xf32>
    %30 = tpu.concatenate %1, %3, %27, %28, %29 in 0 : vector<32x16xf32>, vector<32x16xf32>, vector<32x16xf32>, vector<32x16xf32>, vector<32x16xf32> -> vector<160x16xf32>
    %cst_22 = arith.constant dense<0.000000e+00> : vector<160x16xf32>
    %31 = tpu.matmul %30, %11, %cst_22 {dimension_numbers = #tpu.dot_dimension_numbers<[1], [0], [0], [1], [0, 0, 1, 1], [], []>} : vector<160x16xf32>, vector<16x16xf32>, vector<160x16xf32> -> vector<160x16xf32>
    %32 = vector.extract_strided_slice %31 {offsets = [0, 0], sizes = [32, 16], strides = [1, 1]} : vector<160x16xf32> to vector<32x16xf32>
    %cst_23 = arith.constant dense<0.000000e+00> : vector<32x16xf32>
    %33 = tpu.matmul %5, %32, %cst_23 {dimension_numbers = #tpu.dot_dimension_numbers<[1], [0], [0], [1], [0, 0, 1, 1], [], []>} : vector<32x32xf32>, vector<32x16xf32>, vector<32x16xf32> -> vector<32x16xf32>
    %34 = vector.extract_strided_slice %31 {offsets = [32, 0], sizes = [32, 16], strides = [1, 1]} : vector<160x16xf32> to vector<32x16xf32>
    %cst_24 = arith.constant dense<0.000000e+00> : vector<32x16xf32>
    %35 = tpu.matmul %5, %34, %cst_24 {dimension_numbers = #tpu.dot_dimension_numbers<[1], [0], [0], [1], [0, 0, 1, 1], [], []>} : vector<32x32xf32>, vector<32x16xf32>, vector<32x16xf32> -> vector<32x16xf32>
    %36 = arith.mulf %33, %35 : vector<32x16xf32>
    %37 = arith.mulf %33, %33 : vector<32x16xf32>
    %38 = arith.mulf %35, %35 : vector<32x16xf32>
    %39 = vector.extract_strided_slice %31 {offsets = [128, 0], sizes = [32, 16], strides = [1, 1]} : vector<160x16xf32> to vector<32x16xf32>
    %cst_25 = arith.constant dense<0.000000e+00> : vector<32x16xf32>
    %40 = tpu.matmul %5, %39, %cst_25 {dimension_numbers = #tpu.dot_dimension_numbers<[1], [0], [0], [1], [0, 0, 1, 1], [], []>} : vector<32x32xf32>, vector<32x16xf32>, vector<32x16xf32> -> vector<32x16xf32>
    %41 = arith.subf %40, %36 : vector<32x16xf32>
    %cst_26 = arith.constant 2.000000e+00 : f32
    %42 = vector.broadcast %cst_26 : f32 to vector<32x16xf32>
    %43 = arith.mulf %42, %36 : vector<32x16xf32>
    %cst_27 = arith.constant 9.99999974E-5 : f32
    %44 = vector.broadcast %cst_27 : f32 to vector<32x16xf32>
    %45 = arith.addf %43, %44 : vector<32x16xf32>
    %cst_28 = arith.constant 2.000000e+00 : f32
    %46 = vector.broadcast %cst_28 : f32 to vector<32x16xf32>
    %47 = arith.mulf %46, %41 : vector<32x16xf32>
    %cst_29 = arith.constant 8.99999984E-4 : f32
    %48 = vector.broadcast %cst_29 : f32 to vector<32x16xf32>
    %49 = arith.addf %47, %48 : vector<32x16xf32>
    %50 = arith.mulf %45, %49 : vector<32x16xf32>
    %51 = vector.extract_strided_slice %31 {offsets = [64, 0], sizes = [32, 16], strides = [1, 1]} : vector<160x16xf32> to vector<32x16xf32>
    %cst_30 = arith.constant dense<0.000000e+00> : vector<32x16xf32>
    %52 = tpu.matmul %5, %51, %cst_30 {dimension_numbers = #tpu.dot_dimension_numbers<[1], [0], [0], [1], [0, 0, 1, 1], [], []>} : vector<32x32xf32>, vector<32x16xf32>, vector<32x16xf32> -> vector<32x16xf32>
    %53 = arith.subf %52, %37 : vector<32x16xf32>
    %54 = vector.extract_strided_slice %31 {offsets = [96, 0], sizes = [32, 16], strides = [1, 1]} : vector<160x16xf32> to vector<32x16xf32>
    %cst_31 = arith.constant dense<0.000000e+00> : vector<32x16xf32>
    %55 = tpu.matmul %5, %54, %cst_31 {dimension_numbers = #tpu.dot_dimension_numbers<[1], [0], [0], [1], [0, 0, 1, 1], [], []>} : vector<32x32xf32>, vector<32x16xf32>, vector<32x16xf32> -> vector<32x16xf32>
    %56 = arith.subf %55, %38 : vector<32x16xf32>
    %57 = arith.addf %37, %38 : vector<32x16xf32>
    %cst_32 = arith.constant 9.99999974E-5 : f32
    %58 = vector.broadcast %cst_32 : f32 to vector<32x16xf32>
    %59 = arith.addf %57, %58 : vector<32x16xf32>
    %60 = arith.addf %53, %56 : vector<32x16xf32>
    %cst_33 = arith.constant 8.99999984E-4 : f32
    %61 = vector.broadcast %cst_33 : f32 to vector<32x16xf32>
    %62 = arith.addf %60, %61 : vector<32x16xf32>
    %63 = arith.mulf %59, %62 : vector<32x16xf32>
    %64 = tpu.reciprocal %63 {approx = true} : vector<32x16xf32> -> vector<32x16xf32>
    %65 = arith.mulf %63, %64 : vector<32x16xf32>
    %cst_34 = arith.constant 2.000000e+00 : f32
    %66 = vector.broadcast %cst_34 : f32 to vector<32x16xf32>
    %67 = arith.subf %66, %65 : vector<32x16xf32>
    %68 = arith.mulf %64, %67 : vector<32x16xf32>
    %69 = arith.mulf %50, %68 : vector<32x16xf32>
    %70 = vector.shape_cast %69 : vector<32x16xf32> to vector<1x32x16xf32>
    %cst_35 = arith.constant dense<0.000000e+00> : vector<1xf32>
    %71 = vector.multi_reduction <add>, %70, %cst_35 [1, 2] : vector<1x32x16xf32> to vector<1xf32>
    %72 = vector.shape_cast %71 : vector<1xf32> to vector<1x1x1xf32>
    %73 = vector.extract %72[0, 0, 0] : f32 from vector<1x1x1xf32>
    %74 = tpu.concatenate %1, %3 in 0 : vector<32x16xf32>, vector<32x16xf32> -> vector<64x16xf32>
    %cst_36 = arith.constant dense<0.000000e+00> : vector<64x16xf32>
    %75 = tpu.matmul %74, %13, %cst_36 {dimension_numbers = #tpu.dot_dimension_numbers<[1], [0], [0], [1], [0, 0, 1, 1], [], []>} : vector<64x16xf32>, vector<16x16xf32>, vector<64x16xf32> -> vector<64x16xf32>
    %cst_37 = arith.constant dense<0.000000e+00> : vector<64x16xf32>
    %76 = tpu.matmul %74, %15, %cst_37 {dimension_numbers = #tpu.dot_dimension_numbers<[1], [0], [0], [1], [0, 0, 1, 1], [], []>} : vector<64x16xf32>, vector<16x16xf32>, vector<64x16xf32> -> vector<64x16xf32>
    %77 = vector.extract_strided_slice %75 {offsets = [0, 0], sizes = [32, 16], strides = [1, 1]} : vector<64x16xf32> to vector<32x16xf32>
    %cst_38 = arith.constant dense<0.000000e+00> : vector<32x16xf32>
    %78 = tpu.matmul %7, %77, %cst_38 {dimension_numbers = #tpu.dot_dimension_numbers<[1], [0], [0], [1], [0, 0, 1, 1], [], []>} : vector<32x32xf32>, vector<32x16xf32>, vector<32x16xf32> -> vector<32x16xf32>
    %79 = vector.extract_strided_slice %75 {offsets = [32, 0], sizes = [32, 16], strides = [1, 1]} : vector<64x16xf32> to vector<32x16xf32>
    %cst_39 = arith.constant dense<0.000000e+00> : vector<32x16xf32>
    %80 = tpu.matmul %7, %79, %cst_39 {dimension_numbers = #tpu.dot_dimension_numbers<[1], [0], [0], [1], [0, 0, 1, 1], [], []>} : vector<32x32xf32>, vector<32x16xf32>, vector<32x16xf32> -> vector<32x16xf32>
    %81 = vector.extract_strided_slice %76 {offsets = [0, 0], sizes = [32, 16], strides = [1, 1]} : vector<64x16xf32> to vector<32x16xf32>
    %cst_40 = arith.constant dense<0.000000e+00> : vector<32x16xf32>
    %82 = tpu.matmul %9, %81, %cst_40 {dimension_numbers = #tpu.dot_dimension_numbers<[1], [0], [0], [1], [0, 0, 1, 1], [], []>} : vector<32x32xf32>, vector<32x16xf32>, vector<32x16xf32> -> vector<32x16xf32>
    %83 = vector.extract_strided_slice %76 {offsets = [32, 0], sizes = [32, 16], strides = [1, 1]} : vector<64x16xf32> to vector<32x16xf32>
    %cst_41 = arith.constant dense<0.000000e+00> : vector<32x16xf32>
    %84 = tpu.matmul %9, %83, %cst_41 {dimension_numbers = #tpu.dot_dimension_numbers<[1], [0], [0], [1], [0, 0, 1, 1], [], []>} : vector<32x32xf32>, vector<32x16xf32>, vector<32x16xf32> -> vector<32x16xf32>
    %85 = arith.mulf %78, %78 : vector<32x16xf32>
    %86 = arith.mulf %82, %82 : vector<32x16xf32>
    %87 = arith.addf %85, %86 : vector<32x16xf32>
    %cst_42 = arith.constant 9.99999993E-9 : f32
    %88 = vector.broadcast %cst_42 : f32 to vector<32x16xf32>
    %89 = arith.addf %87, %88 : vector<32x16xf32>
    %90 = math.sqrt %89 : vector<32x16xf32>
    %91 = arith.mulf %80, %80 : vector<32x16xf32>
    %92 = arith.mulf %84, %84 : vector<32x16xf32>
    %93 = arith.addf %91, %92 : vector<32x16xf32>
    %cst_43 = arith.constant 9.99999993E-9 : f32
    %94 = vector.broadcast %cst_43 : f32 to vector<32x16xf32>
    %95 = arith.addf %93, %94 : vector<32x16xf32>
    %96 = math.sqrt %95 : vector<32x16xf32>
    %97 = arith.subf %90, %96 : vector<32x16xf32>
    %98 = math.absf %97 : vector<32x16xf32>
    %99 = vector.shape_cast %98 : vector<32x16xf32> to vector<1x32x16xf32>
    %cst_44 = arith.constant dense<0.000000e+00> : vector<1xf32>
    %100 = vector.multi_reduction <add>, %99, %cst_44 [1, 2] : vector<1x32x16xf32> to vector<1xf32>
    %101 = vector.shape_cast %100 : vector<1xf32> to vector<1x1x1xf32>
    %102 = vector.extract %101[0, 0, 0] : f32 from vector<1x1x1xf32>
    %103 = tpu.iota {dimensions = array<i32: 1>} : vector<1x128xi32>
    %c0_i32 = arith.constant 0 : i32
    %104 = vector.broadcast %c0_i32 : i32 to vector<1x128xi32>
    %105 = arith.cmpi eq, %103, %104 : vector<1x128xi32>
    %cst_45 = arith.constant 0.000000e+00 : f32
    %106 = vector.broadcast %21 : f32 to vector<1x128xf32>
    %107 = vector.broadcast %cst_45 : f32 to vector<1x128xf32>
    %108 = arith.select %105, %106, %107 : vector<1x128xi1>, vector<1x128xf32>
    %c1_i32 = arith.constant 1 : i32
    %109 = vector.broadcast %c1_i32 : i32 to vector<1x128xi32>
    %110 = arith.cmpi eq, %103, %109 : vector<1x128xi32>
    %cst_46 = arith.constant 0.000000e+00 : f32
    %111 = vector.broadcast %26 : f32 to vector<1x128xf32>
    %112 = vector.broadcast %cst_46 : f32 to vector<1x128xf32>
    %113 = arith.select %110, %111, %112 : vector<1x128xi1>, vector<1x128xf32>
    %114 = arith.addf %108, %113 : vector<1x128xf32>
    %c2_i32 = arith.constant 2 : i32
    %115 = vector.broadcast %c2_i32 : i32 to vector<1x128xi32>
    %116 = arith.cmpi eq, %103, %115 : vector<1x128xi32>
    %cst_47 = arith.constant 0.000000e+00 : f32
    %117 = vector.broadcast %73 : f32 to vector<1x128xf32>
    %118 = vector.broadcast %cst_47 : f32 to vector<1x128xf32>
    %119 = arith.select %116, %117, %118 : vector<1x128xi1>, vector<1x128xf32>
    %120 = arith.addf %114, %119 : vector<1x128xf32>
    %c3_i32 = arith.constant 3 : i32
    %121 = vector.broadcast %c3_i32 : i32 to vector<1x128xi32>
    %122 = arith.cmpi eq, %103, %121 : vector<1x128xi32>
    %cst_48 = arith.constant 0.000000e+00 : f32
    %123 = vector.broadcast %102 : f32 to vector<1x128xf32>
    %124 = vector.broadcast %cst_48 : f32 to vector<1x128xf32>
    %125 = arith.select %122, %123, %124 : vector<1x128xi1>, vector<1x128xf32>
    %126 = arith.addf %120, %125 : vector<1x128xf32>
    %c0_49 = arith.constant 0 : index
    %c0_50 = arith.constant 0 : index
    %127 = vector.load %arg5[%c0_49, %c0_50] : memref<1x128xf32, #tpu.memory_space<vmem>>, vector<1x128xf32>
    tpu.vector_store %arg5[%c0_49, %c0_50], %126 {strides = array<i32>} : memref<1x128xf32, #tpu.memory_space<vmem>>, vector<1x128xf32>,
    return
  }
  func.func @transform_0(%arg0: i32) -> (i32, i32, i32) {
    %c0_i32 = arith.constant 0 : i32
    %c0_i32_0 = arith.constant 0 : i32
    %c0_i32_1 = arith.constant 0 : i32
    return %arg0, %c0_i32, %c0_i32_0 : i32, i32, i32
  }
  func.func @transform_1(%arg0: i32) -> (i32, i32, i32) {
    %c0_i32 = arith.constant 0 : i32
    %c0_i32_0 = arith.constant 0 : i32
    %c0_i32_1 = arith.constant 0 : i32
    return %arg0, %c0_i32, %c0_i32_0 : i32, i32, i32
  }
  func.func @transform_2(%arg0: i32) -> (i32, i32, i32) {
    %c0_i32 = arith.constant 0 : i32
    %c0_i32_0 = arith.constant 0 : i32
    %c0_i32_1 = arith.constant 0 : i32
    %c0_i32_2 = arith.constant 0 : i32
    return %c0_i32, %c0_i32_0, %c0_i32_1 : i32, i32, i32
  }
  func.func @transform_3(%arg0: i32) -> (i32, i32, i32) {
    %c0_i32 = arith.constant 0 : i32
    %c0_i32_0 = arith.constant 0 : i32
    %c0_i32_1 = arith.constant 0 : i32
    %c0_i32_2 = arith.constant 0 : i32
    return %c0_i32, %c0_i32_0, %c0_i32_1 : i32, i32, i32
  }
  func.func @transform_4(%arg0: i32) -> (i32, i32) {
    %c0_i32 = arith.constant 0 : i32
    %c0_i32_0 = arith.constant 0 : i32
    return %arg0, %c0_i32 : i32, i32
  }
}

</mosaic_0001>

<llo_original>
// kernel: tpu_custom_call.1
$region0: #{tpu_custom_call.1}
  #allocation0 [shape = 'u32[]', space=smem, size = 0x4, offset = 0x4, fixed_abs, tag = 'smem constant byte address 0x4 - core index']
  #allocation1 [shape = 'u32[144,128]{1,0:T(1,128)}', space=vmem, size = 0x12000, scoped, tag = 'internal scratch']
  %s0 = inlined_call_operand.hbm [shape: f32[2,16,16], index: 0, kind: input, shape index: {}]
  %s1 = inlined_call_operand.hbm [shape: f32[2,16,16], index: 1, kind: input, shape index: {}]
  %s2 = inlined_call_operand.hbm [shape: f32[3,32,32], index: 2, kind: input, shape index: {}]
  %s3 = inlined_call_operand.hbm [shape: f32[3,16,16], index: 3, kind: input, shape index: {}]
  %s4 = inlined_call_operand.hbm [shape: f32[1,128], index: 4, kind: output, shape index: {}]
  %s5 = sld [smem:[#allocation0]]
  $region42: #{tpu_custom_call.1} parent=0
    _
  %s7 = ssub.s32 1, %s5
  %s8 = scalar_select 0, %s7, %s5
  $region1: #{tpu_custom_call.1} parent=0
    #allocation2 [shape = 'u8[16384]{0}', space=vmem, size = 0x4000, scoped, tag = 'input window, operand 0, single buffered']
    #allocation3 [shape = 's32[1]{0}', space=sflag, size = 0x4, scoped, tag = 'scoped memory for tpu_custom_call.1']
    #allocation4 [shape = 's32[1]{0}', space=sflag, size = 0x4, scoped, tag = 'scoped memory for tpu_custom_call.1']
    #allocation5 [shape = 'u8[16384]{0}', space=vmem, size = 0x4000, scoped, tag = 'input window, operand 1, single buffered']
    #allocation6 [shape = 's32[1]{0}', space=sflag, size = 0x4, scoped, tag = 'scoped memory for tpu_custom_call.1']
    #allocation7 [shape = 'u8[49152]{0}', space=vmem, size = 0xc000, scoped, tag = 'input window, operand 2, single buffered']
    #allocation8 [shape = 'u8[24576]{0}', space=vmem, size = 0x6000, scoped, tag = 'input window, operand 3, single buffered']
    #allocation9 [shape = 's32[1]{0}', space=sflag, size = 0x4, scoped, tag = 'scoped memory for tpu_custom_call.1']
    #allocation10 [shape = 'u8[512]{0}', space=vmem, size = 0x400, scoped, tag = 'output window, operand 0, single buffered']
    %9 = vsyncpa [#allocation3], 0
    %10 = vsyncpa [#allocation6], 0
    %11 = vsyncpa [#allocation9], 0
    %12 = vsyncpa [#allocation4], 0
    // Predicated region
    $region2: #{tpu_custom_call.1} parent=1 // pred_check
      _
    $region3: #{tpu_custom_call.1} parent=1 // pred_check_branch
      %14 = sbr.rel (0) target = $region5
    $region4: #{tpu_custom_call.1} parent=1 // pred_region
      %s16 = ssub.s32 512, 512
      %17 = vsyncadd [#allocation3], %s16
      %s18 = sshll.u32 [#allocation2], 4
      %s19 = int_to_ptr.vmem [resolvable:$true] %s18
      %24 = dma.hbm_to_vmem [thread:$0]  %s0, 512, %s19, [#allocation3], 128, 128, 8
    $region5: #{tpu_custom_call.1} parent=1 // pred_fallthru
      _
    // Predicated region
    $region6: #{tpu_custom_call.1} parent=1 // pred_check
      _
    $region7: #{tpu_custom_call.1} parent=1 // pred_check_branch
      %26 = sbr.rel (0) target = $region9
    $region8: #{tpu_custom_call.1} parent=1 // pred_region
      %s28 = ssub.s32 512, 512
      %29 = vsyncadd [#allocation6], %s28
      %s30 = sshll.u32 [#allocation5], 4
      %s31 = int_to_ptr.vmem [resolvable:$true] %s30
      %36 = dma.hbm_to_vmem [thread:$0]  %s1, 512, %s31, [#allocation6], 128, 128, 8
    $region9: #{tpu_custom_call.1} parent=1 // pred_fallthru
      _
    // Predicated region
    $region10: #{tpu_custom_call.1} parent=1 // pred_check
      _
    $region11: #{tpu_custom_call.1} parent=1 // pred_check_branch
      %38 = sbr.rel (0) target = $region13
    $region12: #{tpu_custom_call.1} parent=1 // pred_region
      %s40 = ssub.s32 1536, 1536
      %41 = vsyncadd [#allocation6], %s40
      %s42 = sshll.u32 [#allocation7], 4
      %s43 = int_to_ptr.vmem [resolvable:$true] %s42
      %48 = dma.hbm_to_vmem [thread:$0]  %s2, 1536, %s43, [#allocation6], 128, 128, 8
    $region13: #{tpu_custom_call.1} parent=1 // pred_fallthru
      _
    // Predicated region
    $region14: #{tpu_custom_call.1} parent=1 // pred_check
      _
    $region15: #{tpu_custom_call.1} parent=1 // pred_check_branch
      %50 = sbr.rel (0) target = $region17
    $region16: #{tpu_custom_call.1} parent=1 // pred_region
      %s52 = ssub.s32 768, 768
      %53 = vsyncadd [#allocation9], %s52
      %s54 = sshll.u32 [#allocation8], 4
      %s55 = int_to_ptr.vmem [resolvable:$true] %s54
      %60 = dma.hbm_to_vmem [thread:$0]  %s3, 768, %s55, [#allocation9], 128, 128, 8
    $region17: #{tpu_custom_call.1} parent=1 // pred_fallthru
      _
    // Predicated region
    $region18: #{tpu_custom_call.1} parent=1 // pred_check
      _
    $region19: #{tpu_custom_call.1} parent=1 // pred_check_branch
      %62 = sbr.rel (0) target = $region21
    $region20: #{tpu_custom_call.1} parent=1 // pred_region
      %63 = dma.done [#allocation3], 512
    $region21: #{tpu_custom_call.1} parent=1 // pred_fallthru
      _
    // Predicated region
    $region22: #{tpu_custom_call.1} parent=1 // pred_check
      _
    $region23: #{tpu_custom_call.1} parent=1 // pred_check_branch
      %65 = sbr.rel (0) target = $region25
    $region24: #{tpu_custom_call.1} parent=1 // pred_region
      %66 = dma.done [#allocation6], 512
    $region25: #{tpu_custom_call.1} parent=1 // pred_fallthru
      _
    // Predicated region
    $region26: #{tpu_custom_call.1} parent=1 // pred_check
      _
    $region27: #{tpu_custom_call.1} parent=1 // pred_check_branch
      %68 = sbr.rel (0) target = $region29
    $region28: #{tpu_custom_call.1} parent=1 // pred_region
      %69 = dma.done [#allocation6], 1536
    $region29: #{tpu_custom_call.1} parent=1 // pred_fallthru
      _
    // Predicated region
    $region30: #{tpu_custom_call.1} parent=1 // pred_check
      _
    $region31: #{tpu_custom_call.1} parent=1 // pred_check_branch
      %71 = sbr.rel (0) target = $region33
    $region32: #{tpu_custom_call.1} parent=1 // pred_region
      %72 = dma.done [#allocation9], 768
    $region33: #{tpu_custom_call.1} parent=1 // pred_fallthru
      _
    %v73 = vld [vmem:[#allocation2] sm:$0xff]
    %v74 = vld [vmem:[#allocation2 + $0x8] sm:$0xff]
    %v75 = vld [vmem:[#allocation2 + $0x10] sm:$0xff]
    %v76 = vld [vmem:[#allocation2 + $0x18] sm:$0xff]
    %v77 = vld [vmem:[#allocation5] sm:$0xff]
    %v78 = vld [vmem:[#allocation5 + $0x8] sm:$0xff]
    %v79 = vld [vmem:[#allocation5 + $0x10] sm:$0xff]
    %v80 = vld [vmem:[#allocation5 + $0x18] sm:$0xff]
    %v81 = vld [vmem:[#allocation7] sm:$0xff]
    %v82 = vld [vmem:[#allocation7 + $0x8] sm:$0xff]
    %v83 = vld [vmem:[#allocation7 + $0x10] sm:$0xff]
    %v84 = vld [vmem:[#allocation7 + $0x18] sm:$0xff]
    %s85 = scalar_lea.vmem [#allocation7], 32
    %v86 = vld [vmem:[%s85] sm:$0xff]
    %v87 = vld [vmem:[%s85 + $0x8] sm:$0xff]
    %v88 = vld [vmem:[%s85 + $0x10] sm:$0xff]
    %v89 = vld [vmem:[%s85 + $0x18] sm:$0xff]
    %s90 = scalar_lea.vmem [#allocation7], 64
    %v91 = vld [vmem:[%s90] sm:$0xff]
    %v92 = vld [vmem:[%s90 + $0x8] sm:$0xff]
    %v93 = vld [vmem:[%s90 + $0x10] sm:$0xff]
    %v94 = vld [vmem:[%s90 + $0x18] sm:$0xff]
    %v95 = vld [vmem:[#allocation8] sm:$0xff]
    %v96 = vld [vmem:[#allocation8 + $0x8] sm:$0xff]
    %s97 = scalar_lea.vmem [#allocation8], 16
    %v98 = vld [vmem:[%s97] sm:$0xff]
    %v99 = vld [vmem:[%s97 + $0x8] sm:$0xff]
    %s100 = scalar_lea.vmem [#allocation8], 32
    %v101 = vld [vmem:[%s100] sm:$0xff]
    %v102 = vld [vmem:[%s100 + $0x8] sm:$0xff]
    %v103 = vsub.f32 %v73, %v77
    %v104 = vsub.f32 %v74, %v78
    %v105 = vsub.f32 %v75, %v79
    %v106 = vsub.f32 %v76, %v80
    %v107 = vmul.f32 %v103, %v103
    %v108 = vmul.f32 %v104, %v104
    %v109 = vmul.f32 %v105, %v105
    %v110 = vmul.f32 %v106, %v106
    %vm111 = vcmask 130048
    %v112 = vsel %vm111, %v107, 0.0
    %v113 = vsel %vm111, %v108, 0.0
    %v114 = vadd.f32 %v112, %v113
    %v115 = vsel %vm111, %v109, 0.0
    %v116 = vadd.f32 %v114, %v115
    %v117 = vsel %vm111, %v110, 0.0
    %v118 = vadd.f32 %v116, %v117
    %119 = vadd.xlane.f32.xlu0 %v118
    %v120 = vpop.xlane.xlu0 %119
    %v121 = vrot.slane %v120, 4
    %v122 = vadd.f32 %v120, %v121
    %v123 = vrot.slane %v122, 2
    %v124 = vadd.f32 %v122, %v123
    %v125 = vrot.slane %v124, 1
    %v126 = vadd.f32 %v124, %v125
    %s127 = vtos %v126
    %v128 = vand.u32 2147483647, %v103
    %v129 = vand.u32 2147483647, %v104
    %v130 = vand.u32 2147483647, %v105
    %v131 = vand.u32 2147483647, %v106
    %v132 = vsel %vm111, %v128, 0.0
    %v133 = vsel %vm111, %v129, 0.0
    %v134 = vadd.f32 %v132, %v133
    %v135 = vsel %vm111, %v130, 0.0
    %v136 = vadd.f32 %v134, %v135
    %v137 = vsel %vm111, %v131, 0.0
    %v138 = vadd.f32 %v136, %v137
    %139 = vadd.xlane.f32.xlu0 %v138
    %v140 = vpop.xlane.xlu0 %139
    %v141 = vrot.slane %v140, 4
    %v142 = vadd.f32 %v140, %v141
    %v143 = vrot.slane %v142, 2
    %v144 = vadd.f32 %v142, %v143
    %v145 = vrot.slane %v144, 1
    %v146 = vadd.f32 %v144, %v145
    %s147 = vtos %v146
    %v148 = vmul.f32 %v73, %v73
    %v149 = vmul.f32 %v74, %v74
    %v150 = vmul.f32 %v75, %v75
    %v151 = vmul.f32 %v76, %v76
    %v152 = vmul.f32 %v77, %v77
    %v153 = vmul.f32 %v78, %v78
    %v154 = vmul.f32 %v79, %v79
    %v155 = vmul.f32 %v80, %v80
    %v156 = vmul.f32 %v73, %v77
    %v157 = vmul.f32 %v74, %v78
    %v158 = vmul.f32 %v75, %v79
    %v159 = vmul.f32 %v76, %v80
    %v161 = vsel %vm111, %v73, 0
    %v164 = vsel %vm111, %v74, 0
    %v167 = vsel %vm111, %v75, 0
    %v170 = vsel %vm111, %v76, 0
    %v173 = vsel %vm111, %v77, 0
    %v176 = vsel %vm111, %v78, 0
    %v179 = vsel %vm111, %v79, 0
    %v182 = vsel %vm111, %v80, 0
    %v185 = vsel %vm111, %v148, 0
    %v188 = vsel %vm111, %v149, 0
    %v191 = vsel %vm111, %v150, 0
    %v194 = vsel %vm111, %v151, 0
    %v197 = vsel %vm111, %v152, 0
    %v200 = vsel %vm111, %v153, 0
    %v203 = vsel %vm111, %v154, 0
    %v206 = vsel %vm111, %v155, 0
    %v209 = vsel %vm111, %v156, 0
    %v212 = vsel %vm111, %v157, 0
    %v215 = vsel %vm111, %v158, 0
    %v218 = vsel %vm111, %v159, 0
    %220 = vmatprep.subr.mxu0 0.0
    %221 = vmatpush1.msra.mxu0 %v95
    %222 = vmatprep.subr.mxu0 0.0
    %223 = vmatpush1.msra.mxu0 %v96
    %224 = vmatprep.subr.mxu0 0.0
    %225 = vmatpush1.msra.mxu0 0.0
    %226 = vmatprep.subr.mxu0 0.0
    %227 = vmatpush1.msra.mxu0 0.0
    %228 = vmatprep.subr.mxu0 0.0
    %229 = vmatpush1.msra.mxu0 0.0
    %230 = vmatprep.subr.mxu0 0.0
    %231 = vmatpush1.msra.mxu0 0.0
    %232 = vmatprep.subr.mxu0 0.0
    %233 = vmatpush1.msra.mxu0 0.0
    %234 = vmatprep.subr.mxu0 0.0
    %235 = vmatpush1.msra.mxu0 0.0
    %236 = vmatprep.subr.mxu0 0.0
    %237 = vmatpush1.msra.mxu0 0.0
    %238 = vmatprep.subr.mxu0 0.0
    %239 = vmatpush1.msra.mxu0 0.0
    %240 = vmatprep.subr.mxu0 0.0
    %241 = vmatpush1.msra.mxu0 0.0
    %242 = vmatprep.subr.mxu0 0.0
    %243 = vmatpush1.msra.mxu0 0.0
    %244 = vmatprep.subr.mxu0 0.0
    %245 = vmatpush1.msra.mxu0 0.0
    %246 = vmatprep.subr.mxu0 0.0
    %247 = vmatpush1.msra.mxu0 0.0
    %248 = vmatprep.subr.mxu0 0.0
    %249 = vmatpush1.msra.mxu0 0.0
    %250 = vmatprep.subr.mxu0 0.0
    %251 = vmatpush1.msra.mxu0 0.0
    %252 = vmatprep.subr.mxu0 0.0
    %253 = vmatpush1.msra.mxu0 0.0
    %254 = vmatprep.subr.mxu0 0.0
    %255 = vmatpush1.msra.mxu0 0.0
    %256 = vmatprep.subr.mxu0 0.0
    %257 = vmatpush1.msra.mxu0 0.0
    %258 = vmatprep.subr.mxu0 0.0
    %259 = vmatpush1.msra.mxu0 0.0
    %260 = vmatprep.subr.mxu0 0.0
    %261 = vmatpush1.msra.mxu0 0.0
    %262 = vmatprep.subr.mxu0 0.0
    %263 = vmatpush1.msra.mxu0 0.0
    %264 = vmatprep.subr.mxu0 0.0
    %265 = vmatpush1.msra.mxu0 0.0
    %266 = vmatprep.subr.mxu0 0.0
    %267 = vmatpush1.msra.mxu0 0.0
    %268 = vmatprep.subr.mxu0 0.0
    %269 = vmatpush1.msra.mxu0 0.0
    %270 = vmatprep.subr.mxu0 0.0
    %271 = vmatpush1.msra.mxu0 0.0
    %272 = vmatprep.subr.mxu0 0.0
    %273 = vmatpush1.msra.mxu0 0.0
    %274 = vmatprep.subr.mxu0 0.0
    %275 = vmatpush1.msra.mxu0 0.0
    %276 = vmatprep.subr.mxu0 0.0
    %277 = vmatpush1.msra.mxu0 0.0
    %278 = vmatprep.subr.mxu0 0.0
    %279 = vmatpush1.msra.mxu0 0.0
    %280 = vmatprep.subr.mxu0 0.0
    %281 = vmatpush1.msra.mxu0 0.0
    %282 = vmatprep.subr.mxu0 0.0
    %283 = vmatpush1.msra.mxu0 0.0
    %284 = vmatprep.mubr.f32.mxu0 0.0
    %285 = vmatmul.mubr.f32.gmra.mrb[0].mxu0 %v161
    %v286 = vpop.f32.mrb[0].mxu0
    %v287 = vadd.f32 0.0, %v286
    %v288 = vpop.f32.mrb[0].mxu0
    %289 = vmatprep.mubr.f32.mxu0 0.0
    %290 = vmatmul.mubr.f32.gmra.mrb[0].mxu0 %v164
    %v291 = vpop.f32.mrb[0].mxu0
    %v292 = vadd.f32 0.0, %v291
    %v293 = vpop.f32.mrb[0].mxu0
    %294 = vmatprep.mubr.f32.mxu0 0.0
    %295 = vmatmul.mubr.f32.gmra.mrb[0].mxu0 %v167
    %v296 = vpop.f32.mrb[0].mxu0
    %v297 = vadd.f32 0.0, %v296
    %v298 = vpop.f32.mrb[0].mxu0
    %299 = vmatprep.mubr.f32.mxu0 0.0
    %300 = vmatmul.mubr.f32.gmra.mrb[0].mxu0 %v170
    %v301 = vpop.f32.mrb[0].mxu0
    %v302 = vadd.f32 0.0, %v301
    %v303 = vpop.f32.mrb[0].mxu0
    %304 = vmatprep.mubr.f32.mxu0 0.0
    %305 = vmatmul.mubr.f32.gmra.mrb[0].mxu0 %v173
    %v306 = vpop.f32.mrb[0].mxu0
    %v307 = vadd.f32 0.0, %v306
    %v308 = vpop.f32.mrb[0].mxu0
    %309 = vmatprep.mubr.f32.mxu0 0.0
    %310 = vmatmul.mubr.f32.gmra.mrb[0].mxu0 %v176
    %v311 = vpop.f32.mrb[0].mxu0
    %v312 = vadd.f32 0.0, %v311
    %v313 = vpop.f32.mrb[0].mxu0
    %314 = vmatprep.mubr.f32.mxu0 0.0
    %315 = vmatmul.mubr.f32.gmra.mrb[0].mxu0 %v179
    %v316 = vpop.f32.mrb[0].mxu0
    %v317 = vadd.f32 0.0, %v316
    %v318 = vpop.f32.mrb[0].mxu0
    %319 = vmatprep.mubr.f32.mxu0 0.0
    %320 = vmatmul.mubr.f32.gmra.mrb[0].mxu0 %v182
    %v321 = vpop.f32.mrb[0].mxu0
    %v322 = vadd.f32 0.0, %v321
    %v323 = vpop.f32.mrb[0].mxu0
    %324 = vmatprep.mubr.f32.mxu0 0.0
    %325 = vmatmul.mubr.f32.gmra.mrb[0].mxu0 %v185
    %v326 = vpop.f32.mrb[0].mxu0
    %v327 = vadd.f32 0.0, %v326
    %v328 = vpop.f32.mrb[0].mxu0
    %329 = vmatprep.mubr.f32.mxu0 0.0
    %330 = vmatmul.mubr.f32.gmra.mrb[0].mxu0 %v188
    %v331 = vpop.f32.mrb[0].mxu0
    %v332 = vadd.f32 0.0, %v331
    %v333 = vpop.f32.mrb[0].mxu0
    %334 = vmatprep.mubr.f32.mxu0 0.0
    %335 = vmatmul.mubr.f32.gmra.mrb[0].mxu0 %v191
    %v336 = vpop.f32.mrb[0].mxu0
    %v337 = vadd.f32 0.0, %v336
    %v338 = vpop.f32.mrb[0].mxu0
    %339 = vmatprep.mubr.f32.mxu0 0.0
    %340 = vmatmul.mubr.f32.gmra.mrb[0].mxu0 %v194
    %v341 = vpop.f32.mrb[0].mxu0
    %v342 = vadd.f32 0.0, %v341
    %v343 = vpop.f32.mrb[0].mxu0
    %344 = vmatprep.mubr.f32.mxu0 0.0
    %345 = vmatmul.mubr.f32.gmra.mrb[0].mxu0 %v197
    %v346 = vpop.f32.mrb[0].mxu0
    %v347 = vadd.f32 0.0, %v346
    %v348 = vpop.f32.mrb[0].mxu0
    %349 = vmatprep.mubr.f32.mxu0 0.0
    %350 = vmatmul.mubr.f32.gmra.mrb[0].mxu0 %v200
    %v351 = vpop.f32.mrb[0].mxu0
    %v352 = vadd.f32 0.0, %v351
    %v353 = vpop.f32.mrb[0].mxu0
    %354 = vmatprep.mubr.f32.mxu0 0.0
    %355 = vmatmul.mubr.f32.gmra.mrb[0].mxu0 %v203
    %v356 = vpop.f32.mrb[0].mxu0
    %v357 = vadd.f32 0.0, %v356
    %v358 = vpop.f32.mrb[0].mxu0
    %359 = vmatprep.mubr.f32.mxu0 0.0
    %360 = vmatmul.mubr.f32.gmra.mrb[0].mxu0 %v206
    %v361 = vpop.f32.mrb[0].mxu0
    %v362 = vadd.f32 0.0, %v361
    %v363 = vpop.f32.mrb[0].mxu0
    %364 = vmatprep.mubr.f32.mxu0 0.0
    %365 = vmatmul.mubr.f32.gmra.mrb[0].mxu0 %v209
    %v366 = vpop.f32.mrb[0].mxu0
    %v367 = vadd.f32 0.0, %v366
    %v368 = vpop.f32.mrb[0].mxu0
    %369 = vmatprep.mubr.f32.mxu0 0.0
    %370 = vmatmul.mubr.f32.gmra.mrb[0].mxu0 %v212
    %v371 = vpop.f32.mrb[0].mxu0
    %v372 = vadd.f32 0.0, %v371
    %v373 = vpop.f32.mrb[0].mxu0
    %374 = vmatprep.mubr.f32.mxu0 0.0
    %375 = vmatmul.mubr.f32.gmra.mrb[0].mxu0 %v215
    %v376 = vpop.f32.mrb[0].mxu0
    %v377 = vadd.f32 0.0, %v376
    %v378 = vpop.f32.mrb[0].mxu0
    %379 = vmatprep.mubr.f32.mxu0 0.0
    %380 = vmatmul.mubr.f32.gmra.mrb[0].mxu0 %v218
    %v381 = vpop.f32.mrb[0].mxu0
    %v382 = vadd.f32 0.0, %v381
    %v383 = vpop.f32.mrb[0].mxu0
    %384 = vdwg.mxu0
    %vm385 = vcmask 261120
    %v387 = vsel %vm385, %v81, 0
    %v390 = vsel %vm385, %v82, 0
    %v393 = vsel %vm385, %v83, 0
    %v396 = vsel %vm385, %v84, 0
    %398 = vmatprep.subr.mxu0 0.0
    %399 = vmatpush1.msra.mxu0 %v287
    %400 = vmatprep.subr.mxu0 0.0
    %401 = vmatpush1.msra.mxu0 %v292
    %402 = vmatprep.subr.mxu0 0.0
    %403 = vmatpush1.msra.mxu0 %v297
    %404 = vmatprep.subr.mxu0 0.0
    %405 = vmatpush1.msra.mxu0 %v302
    %406 = vmatprep.subr.mxu0 0.0
    %407 = vmatpush1.msra.mxu0 0.0
    %408 = vmatprep.subr.mxu0 0.0
    %409 = vmatpush1.msra.mxu0 0.0
    %410 = vmatprep.subr.mxu0 0.0
    %411 = vmatpush1.msra.mxu0 0.0
    %412 = vmatprep.subr.mxu0 0.0
    %413 = vmatpush1.msra.mxu0 0.0
    %414 = vmatprep.subr.mxu0 0.0
    %415 = vmatpush1.msra.mxu0 0.0
    %416 = vmatprep.subr.mxu0 0.0
    %417 = vmatpush1.msra.mxu0 0.0
    %418 = vmatprep.subr.mxu0 0.0
    %419 = vmatpush1.msra.mxu0 0.0
    %420 = vmatprep.subr.mxu0 0.0
    %421 = vmatpush1.msra.mxu0 0.0
    %422 = vmatprep.subr.mxu0 0.0
    %423 = vmatpush1.msra.mxu0 0.0
    %424 = vmatprep.subr.mxu0 0.0
    %425 = vmatpush1.msra.mxu0 0.0
    %426 = vmatprep.subr.mxu0 0.0
    %427 = vmatpush1.msra.mxu0 0.0
    %428 = vmatprep.subr.mxu0 0.0
    %429 = vmatpush1.msra.mxu0 0.0
    %430 = vmatprep.subr.mxu0 0.0
    %431 = vmatpush1.msra.mxu0 0.0
    %432 = vmatprep.subr.mxu0 0.0
    %433 = vmatpush1.msra.mxu0 0.0
    %434 = vmatprep.subr.mxu0 0.0
    %435 = vmatpush1.msra.mxu0 0.0
    %436 = vmatprep.subr.mxu0 0.0
    %437 = vmatpush1.msra.mxu0 0.0
    %438 = vmatprep.subr.mxu0 0.0
    %439 = vmatpush1.msra.mxu0 0.0
    %440 = vmatprep.subr.mxu0 0.0
    %441 = vmatpush1.msra.mxu0 0.0
    %442 = vmatprep.subr.mxu0 0.0
    %443 = vmatpush1.msra.mxu0 0.0
    %444 = vmatprep.subr.mxu0 0.0
    %445 = vmatpush1.msra.mxu0 0.0
    %446 = vmatprep.subr.mxu0 0.0
    %447 = vmatpush1.msra.mxu0 0.0
    %448 = vmatprep.subr.mxu0 0.0
    %449 = vmatpush1.msra.mxu0 0.0
    %450 = vmatprep.subr.mxu0 0.0
    %451 = vmatpush1.msra.mxu0 0.0
    %452 = vmatprep.subr.mxu0 0.0
    %453 = vmatpush1.msra.mxu0 0.0
    %454 = vmatprep.subr.mxu0 0.0
    %455 = vmatpush1.msra.mxu0 0.0
    %456 = vmatprep.subr.mxu0 0.0
    %457 = vmatpush1.msra.mxu0 0.0
    %458 = vmatprep.subr.mxu0 0.0
    %459 = vmatpush1.msra.mxu0 0.0
    %460 = vmatprep.subr.mxu0 0.0
    %461 = vmatpush1.msra.mxu0 0.0
    %462 = vmatprep.mubr.f32.mxu0 0.0
    %463 = vmatmul.mubr.f32.gmra.mrb[0].mxu0 %v387
    %v464 = vpop.f32.mrb[0].mxu0
    %v465 = vadd.f32 0.0, %v464
    %v466 = vpop.f32.mrb[0].mxu0
    %467 = vmatprep.mubr.f32.mxu0 0.0
    %468 = vmatmul.mubr.f32.gmra.mrb[0].mxu0 %v390
    %v469 = vpop.f32.mrb[0].mxu0
    %v470 = vadd.f32 0.0, %v469
    %v471 = vpop.f32.mrb[0].mxu0
    %472 = vmatprep.mubr.f32.mxu0 0.0
    %473 = vmatmul.mubr.f32.gmra.mrb[0].mxu0 %v393
    %v474 = vpop.f32.mrb[0].mxu0
    %v475 = vadd.f32 0.0, %v474
    %v476 = vpop.f32.mrb[0].mxu0
    %477 = vmatprep.mubr.f32.mxu0 0.0
    %478 = vmatmul.mubr.f32.gmra.mrb[0].mxu0 %v396
    %v479 = vpop.f32.mrb[0].mxu0
    %v480 = vadd.f32 0.0, %v479
    %v481 = vpop.f32.mrb[0].mxu0
    %482 = vdwg.mxu0
    %483 = vmatprep.subr.mxu0 0.0
    %484 = vmatpush1.msra.mxu0 %v307
    %485 = vmatprep.subr.mxu0 0.0
    %486 = vmatpush1.msra.mxu0 %v312
    %487 = vmatprep.subr.mxu0 0.0
    %488 = vmatpush1.msra.mxu0 %v317
    %489 = vmatprep.subr.mxu0 0.0
    %490 = vmatpush1.msra.mxu0 %v322
    %491 = vmatprep.subr.mxu0 0.0
    %492 = vmatpush1.msra.mxu0 0.0
    %493 = vmatprep.subr.mxu0 0.0
    %494 = vmatpush1.msra.mxu0 0.0
    %495 = vmatprep.subr.mxu0 0.0
    %496 = vmatpush1.msra.mxu0 0.0
    %497 = vmatprep.subr.mxu0 0.0
    %498 = vmatpush1.msra.mxu0 0.0
    %499 = vmatprep.subr.mxu0 0.0
    %500 = vmatpush1.msra.mxu0 0.0
    %501 = vmatprep.subr.mxu0 0.0
    %502 = vmatpush1.msra.mxu0 0.0
    %503 = vmatprep.subr.mxu0 0.0
    %504 = vmatpush1.msra.mxu0 0.0
    %505 = vmatprep.subr.mxu0 0.0
    %506 = vmatpush1.msra.mxu0 0.0
    %507 = vmatprep.subr.mxu0 0.0
    %508 = vmatpush1.msra.mxu0 0.0
    %509 = vmatprep.subr.mxu0 0.0
    %510 = vmatpush1.msra.mxu0 0.0
    %511 = vmatprep.subr.mxu0 0.0
    %512 = vmatpush1.msra.mxu0 0.0
    %513 = vmatprep.subr.mxu0 0.0
    %514 = vmatpush1.msra.mxu0 0.0
    %515 = vmatprep.subr.mxu0 0.0
    %516 = vmatpush1.msra.mxu0 0.0
    %517 = vmatprep.subr.mxu0 0.0
    %518 = vmatpush1.msra.mxu0 0.0
    %519 = vmatprep.subr.mxu0 0.0
    %520 = vmatpush1.msra.mxu0 0.0
    %521 = vmatprep.subr.mxu0 0.0
    %522 = vmatpush1.msra.mxu0 0.0
    %523 = vmatprep.subr.mxu0 0.0
    %524 = vmatpush1.msra.mxu0 0.0
    %525 = vmatprep.subr.mxu0 0.0
    %526 = vmatpush1.msra.mxu0 0.0
    %527 = vmatprep.subr.mxu0 0.0
    %528 = vmatpush1.msra.mxu0 0.0
    %529 = vmatprep.subr.mxu0 0.0
    %530 = vmatpush1.msra.mxu0 0.0
    %531 = vmatprep.subr.mxu0 0.0
    %532 = vmatpush1.msra.mxu0 0.0
    %533 = vmatprep.subr.mxu0 0.0
    %534 = vmatpush1.msra.mxu0 0.0
    %535 = vmatprep.subr.mxu0 0.0
    %536 = vmatpush1.msra.mxu0 0.0
    %537 = vmatprep.subr.mxu0 0.0
    %538 = vmatpush1.msra.mxu0 0.0
    %539 = vmatprep.subr.mxu0 0.0
    %540 = vmatpush1.msra.mxu0 0.0
    %541 = vmatprep.subr.mxu0 0.0
    %542 = vmatpush1.msra.mxu0 0.0
    %543 = vmatprep.subr.mxu0 0.0
    %544 = vmatpush1.msra.mxu0 0.0
    %545 = vmatprep.subr.mxu0 0.0
    %546 = vmatpush1.msra.mxu0 0.0
    %547 = vmatprep.mubr.f32.mxu0 0.0
    %548 = vmatmul.mubr.f32.gmra.mrb[0].mxu0 %v387
    %v549 = vpop.f32.mrb[0].mxu0
    %v550 = vadd.f32 0.0, %v549
    %v551 = vpop.f32.mrb[0].mxu0
    %552 = vmatprep.mubr.f32.mxu0 0.0
    %553 = vmatmul.mubr.f32.gmra.mrb[0].mxu0 %v390
    %v554 = vpop.f32.mrb[0].mxu0
    %v555 = vadd.f32 0.0, %v554
    %v556 = vpop.f32.mrb[0].mxu0
    %557 = vmatprep.mubr.f32.mxu0 0.0
    %558 = vmatmul.mubr.f32.gmra.mrb[0].mxu0 %v393
    %v559 = vpop.f32.mrb[0].mxu0
    %v560 = vadd.f32 0.0, %v559
    %v561 = vpop.f32.mrb[0].mxu0
    %562 = vmatprep.mubr.f32.mxu0 0.0
    %563 = vmatmul.mubr.f32.gmra.mrb[0].mxu0 %v396
    %v564 = vpop.f32.mrb[0].mxu0
    %v565 = vadd.f32 0.0, %v564
    %v566 = vpop.f32.mrb[0].mxu0
    %567 = vdwg.mxu0
    %v568 = vmul.f32 %v465, %v550
    %v569 = vmul.f32 %v470, %v555
    %v570 = vmul.f32 %v475, %v560
    %v571 = vmul.f32 %v480, %v565
    %v572 = vmul.f32 %v465, %v465
    %v573 = vmul.f32 %v470, %v470
    %v574 = vmul.f32 %v475, %v475
    %v575 = vmul.f32 %v480, %v480
    %v576 = vmul.f32 %v550, %v550
    %v577 = vmul.f32 %v555, %v555
    %v578 = vmul.f32 %v560, %v560
    %v579 = vmul.f32 %v565, %v565
    %580 = vmatprep.subr.mxu0 0.0
    %581 = vmatpush1.msra.mxu0 %v367
    %582 = vmatprep.subr.mxu0 0.0
    %583 = vmatpush1.msra.mxu0 %v372
    %584 = vmatprep.subr.mxu0 0.0
    %585 = vmatpush1.msra.mxu0 %v377
    %586 = vmatprep.subr.mxu0 0.0
    %587 = vmatpush1.msra.mxu0 %v382
    %588 = vmatprep.subr.mxu0 0.0
    %589 = vmatpush1.msra.mxu0 0.0
    %590 = vmatprep.subr.mxu0 0.0
    %591 = vmatpush1.msra.mxu0 0.0
    %592 = vmatprep.subr.mxu0 0.0
    %593 = vmatpush1.msra.mxu0 0.0
    %594 = vmatprep.subr.mxu0 0.0
    %595 = vmatpush1.msra.mxu0 0.0
    %596 = vmatprep.subr.mxu0 0.0
    %597 = vmatpush1.msra.mxu0 0.0
    %598 = vmatprep.subr.mxu0 0.0
    %599 = vmatpush1.msra.mxu0 0.0
    %600 = vmatprep.subr.mxu0 0.0
    %601 = vmatpush1.msra.mxu0 0.0
    %602 = vmatprep.subr.mxu0 0.0
    %603 = vmatpush1.msra.mxu0 0.0
    %604 = vmatprep.subr.mxu0 0.0
    %605 = vmatpush1.msra.mxu0 0.0
    %606 = vmatprep.subr.mxu0 0.0
    %607 = vmatpush1.msra.mxu0 0.0
    %608 = vmatprep.subr.mxu0 0.0
    %609 = vmatpush1.msra.mxu0 0.0
    %610 = vmatprep.subr.mxu0 0.0
    %611 = vmatpush1.msra.mxu0 0.0
    %612 = vmatprep.subr.mxu0 0.0
    %613 = vmatpush1.msra.mxu0 0.0
    %614 = vmatprep.subr.mxu0 0.0
    %615 = vmatpush1.msra.mxu0 0.0
    %616 = vmatprep.subr.mxu0 0.0
    %617 = vmatpush1.msra.mxu0 0.0
    %618 = vmatprep.subr.mxu0 0.0
    %619 = vmatpush1.msra.mxu0 0.0
    %620 = vmatprep.subr.mxu0 0.0
    %621 = vmatpush1.msra.mxu0 0.0
    %622 = vmatprep.subr.mxu0 0.0
    %623 = vmatpush1.msra.mxu0 0.0
    %624 = vmatprep.subr.mxu0 0.0
    %625 = vmatpush1.msra.mxu0 0.0
    %626 = vmatprep.subr.mxu0 0.0
    %627 = vmatpush1.msra.mxu0 0.0
    %628 = vmatprep.subr.mxu0 0.0
    %629 = vmatpush1.msra.mxu0 0.0
    %630 = vmatprep.subr.mxu0 0.0
    %631 = vmatpush1.msra.mxu0 0.0
    %632 = vmatprep.subr.mxu0 0.0
    %633 = vmatpush1.msra.mxu0 0.0
    %634 = vmatprep.subr.mxu0 0.0
    %635 = vmatpush1.msra.mxu0 0.0
    %636 = vmatprep.subr.mxu0 0.0
    %637 = vmatpush1.msra.mxu0 0.0
    %638 = vmatprep.subr.mxu0 0.0
    %639 = vmatpush1.msra.mxu0 0.0
    %640 = vmatprep.subr.mxu0 0.0
    %641 = vmatpush1.msra.mxu0 0.0
    %642 = vmatprep.subr.mxu0 0.0
    %643 = vmatpush1.msra.mxu0 0.0
    %644 = vmatprep.mubr.f32.mxu0 0.0
    %645 = vmatmul.mubr.f32.gmra.mrb[0].mxu0 %v387
    %v646 = vpop.f32.mrb[0].mxu0
    %v647 = vadd.f32 0.0, %v646
    %v648 = vpop.f32.mrb[0].mxu0
    %649 = vmatprep.mubr.f32.mxu0 0.0
    %650 = vmatmul.mubr.f32.gmra.mrb[0].mxu0 %v390
    %v651 = vpop.f32.mrb[0].mxu0
    %v652 = vadd.f32 0.0, %v651
    %v653 = vpop.f32.mrb[0].mxu0
    %654 = vmatprep.mubr.f32.mxu0 0.0
    %655 = vmatmul.mubr.f32.gmra.mrb[0].mxu0 %v393
    %v656 = vpop.f32.mrb[0].mxu0
    %v657 = vadd.f32 0.0, %v656
    %v658 = vpop.f32.mrb[0].mxu0
    %659 = vmatprep.mubr.f32.mxu0 0.0
    %660 = vmatmul.mubr.f32.gmra.mrb[0].mxu0 %v396
    %v661 = vpop.f32.mrb[0].mxu0
    %v662 = vadd.f32 0.0, %v661
    %v663 = vpop.f32.mrb[0].mxu0
    %664 = vdwg.mxu0
    %v665 = vsub.f32 %v647, %v568
    %v666 = vsub.f32 %v652, %v569
    %v667 = vsub.f32 %v657, %v570
    %v668 = vsub.f32 %v662, %v571
    %v669 = vmul.f32 %v568, 2.0
    %v670 = vmul.f32 %v569, 2.0
    %v671 = vmul.f32 %v570, 2.0
    %v672 = vmul.f32 %v571, 2.0
    %v673 = vadd.f32 %v669, 0.0001
    %v674 = vadd.f32 %v670, 0.0001
    %v675 = vadd.f32 %v671, 0.0001
    %v676 = vadd.f32 %v672, 0.0001
    %v677 = vmul.f32 %v665, 2.0
    %v678 = vmul.f32 %v666, 2.0
    %v679 = vmul.f32 %v667, 2.0
    %v680 = vmul.f32 %v668, 2.0
    %v681 = vadd.f32 %v677, 0.0009
    %v682 = vadd.f32 %v678, 0.0009
    %v683 = vadd.f32 %v679, 0.0009
    %v684 = vadd.f32 %v680, 0.0009
    %v685 = vmul.f32 %v673, %v681
    %v686 = vmul.f32 %v674, %v682
    %v687 = vmul.f32 %v675, %v683
    %v688 = vmul.f32 %v676, %v684
    %689 = vmatprep.subr.mxu0 0.0
    %690 = vmatpush1.msra.mxu0 %v327
    %691 = vmatprep.subr.mxu0 0.0
    %692 = vmatpush1.msra.mxu0 %v332
    %693 = vmatprep.subr.mxu0 0.0
    %694 = vmatpush1.msra.mxu0 %v337
    %695 = vmatprep.subr.mxu0 0.0
    %696 = vmatpush1.msra.mxu0 %v342
    %697 = vmatprep.subr.mxu0 0.0
    %698 = vmatpush1.msra.mxu0 0.0
    %699 = vmatprep.subr.mxu0 0.0
    %700 = vmatpush1.msra.mxu0 0.0
    %701 = vmatprep.subr.mxu0 0.0
    %702 = vmatpush1.msra.mxu0 0.0
    %703 = vmatprep.subr.mxu0 0.0
    %704 = vmatpush1.msra.mxu0 0.0
    %705 = vmatprep.subr.mxu0 0.0
    %706 = vmatpush1.msra.mxu0 0.0
    %707 = vmatprep.subr.mxu0 0.0
    %708 = vmatpush1.msra.mxu0 0.0
    %709 = vmatprep.subr.mxu0 0.0
    %710 = vmatpush1.msra.mxu0 0.0
    %711 = vmatprep.subr.mxu0 0.0
    %712 = vmatpush1.msra.mxu0 0.0
    %713 = vmatprep.subr.mxu0 0.0
    %714 = vmatpush1.msra.mxu0 0.0
    %715 = vmatprep.subr.mxu0 0.0
    %716 = vmatpush1.msra.mxu0 0.0
    %717 = vmatprep.subr.mxu0 0.0
    %718 = vmatpush1.msra.mxu0 0.0
    %719 = vmatprep.subr.mxu0 0.0
    %720 = vmatpush1.msra.mxu0 0.0
    %721 = vmatprep.subr.mxu0 0.0
    %722 = vmatpush1.msra.mxu0 0.0
    %723 = vmatprep.subr.mxu0 0.0
    %724 = vmatpush1.msra.mxu0 0.0
    %725 = vmatprep.subr.mxu0 0.0
    %726 = vmatpush1.msra.mxu0 0.0
    %727 = vmatprep.subr.mxu0 0.0
    %728 = vmatpush1.msra.mxu0 0.0
    %729 = vmatprep.subr.mxu0 0.0
    %730 = vmatpush1.msra.mxu0 0.0
    %731 = vmatprep.subr.mxu0 0.0
    %732 = vmatpush1.msra.mxu0 0.0
    %733 = vmatprep.subr.mxu0 0.0
    %734 = vmatpush1.msra.mxu0 0.0
    %735 = vmatprep.subr.mxu0 0.0
    %736 = vmatpush1.msra.mxu0 0.0
    %737 = vmatprep.subr.mxu0 0.0
    %738 = vmatpush1.msra.mxu0 0.0
    %739 = vmatprep.subr.mxu0 0.0
    %740 = vmatpush1.msra.mxu0 0.0
    %741 = vmatprep.subr.mxu0 0.0
    %742 = vmatpush1.msra.mxu0 0.0
    %743 = vmatprep.subr.mxu0 0.0
    %744 = vmatpush1.msra.mxu0 0.0
    %745 = vmatprep.subr.mxu0 0.0
    %746 = vmatpush1.msra.mxu0 0.0
    %747 = vmatprep.subr.mxu0 0.0
    %748 = vmatpush1.msra.mxu0 0.0
    %749 = vmatprep.subr.mxu0 0.0
    %750 = vmatpush1.msra.mxu0 0.0
    %751 = vmatprep.subr.mxu0 0.0
    %752 = vmatpush1.msra.mxu0 0.0
    %753 = vmatprep.mubr.f32.mxu0 0.0
    %754 = vmatmul.mubr.f32.gmra.mrb[0].mxu0 %v387
    %v755 = vpop.f32.mrb[0].mxu0
    %v756 = vadd.f32 0.0, %v755
    %v757 = vpop.f32.mrb[0].mxu0
    %758 = vmatprep.mubr.f32.mxu0 0.0
    %759 = vmatmul.mubr.f32.gmra.mrb[0].mxu0 %v390
    %v760 = vpop.f32.mrb[0].mxu0
    %v761 = vadd.f32 0.0, %v760
    %v762 = vpop.f32.mrb[0].mxu0
    %763 = vmatprep.mubr.f32.mxu0 0.0
    %764 = vmatmul.mubr.f32.gmra.mrb[0].mxu0 %v393
    %v765 = vpop.f32.mrb[0].mxu0
    %v766 = vadd.f32 0.0, %v765
    %v767 = vpop.f32.mrb[0].mxu0
    %768 = vmatprep.mubr.f32.mxu0 0.0
    %769 = vmatmul.mubr.f32.gmra.mrb[0].mxu0 %v396
    %v770 = vpop.f32.mrb[0].mxu0
    %v771 = vadd.f32 0.0, %v770
    %v772 = vpop.f32.mrb[0].mxu0
    %773 = vdwg.mxu0
    %v774 = vsub.f32 %v756, %v572
    %v775 = vsub.f32 %v761, %v573
    %v776 = vsub.f32 %v766, %v574
    %v777 = vsub.f32 %v771, %v575
    %778 = vmatprep.subr.mxu0 0.0
    %779 = vmatpush1.msra.mxu0 %v347
    %780 = vmatprep.subr.mxu0 0.0
    %781 = vmatpush1.msra.mxu0 %v352
    %782 = vmatprep.subr.mxu0 0.0
    %783 = vmatpush1.msra.mxu0 %v357
    %784 = vmatprep.subr.mxu0 0.0
    %785 = vmatpush1.msra.mxu0 %v362
    %786 = vmatprep.subr.mxu0 0.0
    %787 = vmatpush1.msra.mxu0 0.0
    %788 = vmatprep.subr.mxu0 0.0
    %789 = vmatpush1.msra.mxu0 0.0
    %790 = vmatprep.subr.mxu0 0.0
    %791 = vmatpush1.msra.mxu0 0.0
    %792 = vmatprep.subr.mxu0 0.0
    %793 = vmatpush1.msra.mxu0 0.0
    %794 = vmatprep.subr.mxu0 0.0
    %795 = vmatpush1.msra.mxu0 0.0
    %796 = vmatprep.subr.mxu0 0.0
    %797 = vmatpush1.msra.mxu0 0.0
    %798 = vmatprep.subr.mxu0 0.0
    %799 = vmatpush1.msra.mxu0 0.0
    %800 = vmatprep.subr.mxu0 0.0
    %801 = vmatpush1.msra.mxu0 0.0
    %802 = vmatprep.subr.mxu0 0.0
    %803 = vmatpush1.msra.mxu0 0.0
    %804 = vmatprep.subr.mxu0 0.0
    %805 = vmatpush1.msra.mxu0 0.0
    %806 = vmatprep.subr.mxu0 0.0
    %807 = vmatpush1.msra.mxu0 0.0
    %808 = vmatprep.subr.mxu0 0.0
    %809 = vmatpush1.msra.mxu0 0.0
    %810 = vmatprep.subr.mxu0 0.0
    %811 = vmatpush1.msra.mxu0 0.0
    %812 = vmatprep.subr.mxu0 0.0
    %813 = vmatpush1.msra.mxu0 0.0
    %814 = vmatprep.subr.mxu0 0.0
    %815 = vmatpush1.msra.mxu0 0.0
    %816 = vmatprep.subr.mxu0 0.0
    %817 = vmatpush1.msra.mxu0 0.0
    %818 = vmatprep.subr.mxu0 0.0
    %819 = vmatpush1.msra.mxu0 0.0
    %820 = vmatprep.subr.mxu0 0.0
    %821 = vmatpush1.msra.mxu0 0.0
    %822 = vmatprep.subr.mxu0 0.0
    %823 = vmatpush1.msra.mxu0 0.0
    %824 = vmatprep.subr.mxu0 0.0
    %825 = vmatpush1.msra.mxu0 0.0
    %826 = vmatprep.subr.mxu0 0.0
    %827 = vmatpush1.msra.mxu0 0.0
    %828 = vmatprep.subr.mxu0 0.0
    %829 = vmatpush1.msra.mxu0 0.0
    %830 = vmatprep.subr.mxu0 0.0
    %831 = vmatpush1.msra.mxu0 0.0
    %832 = vmatprep.subr.mxu0 0.0
    %833 = vmatpush1.msra.mxu0 0.0
    %834 = vmatprep.subr.mxu0 0.0
    %835 = vmatpush1.msra.mxu0 0.0
    %836 = vmatprep.subr.mxu0 0.0
    %837 = vmatpush1.msra.mxu0 0.0
    %838 = vmatprep.subr.mxu0 0.0
    %839 = vmatpush1.msra.mxu0 0.0
    %840 = vmatprep.subr.mxu0 0.0
    %841 = vmatpush1.msra.mxu0 0.0
    %842 = vmatprep.mubr.f32.mxu0 0.0
    %843 = vmatmul.mubr.f32.gmra.mrb[0].mxu0 %v387
    %v844 = vpop.f32.mrb[0].mxu0
    %v845 = vadd.f32 0.0, %v844
    %v846 = vpop.f32.mrb[0].mxu0
    %847 = vmatprep.mubr.f32.mxu0 0.0
    %848 = vmatmul.mubr.f32.gmra.mrb[0].mxu0 %v390
    %v849 = vpop.f32.mrb[0].mxu0
    %v850 = vadd.f32 0.0, %v849
    %v851 = vpop.f32.mrb[0].mxu0
    %852 = vmatprep.mubr.f32.mxu0 0.0
    %853 = vmatmul.mubr.f32.gmra.mrb[0].mxu0 %v393
    %v854 = vpop.f32.mrb[0].mxu0
    %v855 = vadd.f32 0.0, %v854
    %v856 = vpop.f32.mrb[0].mxu0
    %857 = vmatprep.mubr.f32.mxu0 0.0
    %858 = vmatmul.mubr.f32.gmra.mrb[0].mxu0 %v396
    %v859 = vpop.f32.mrb[0].mxu0
    %v860 = vadd.f32 0.0, %v859
    %v861 = vpop.f32.mrb[0].mxu0
    %862 = vdwg.mxu0
    %v863 = vsub.f32 %v845, %v576
    %v864 = vsub.f32 %v850, %v577
    %v865 = vsub.f32 %v855, %v578
    %v866 = vsub.f32 %v860, %v579
    %v867 = vadd.f32 %v572, %v576
    %v868 = vadd.f32 %v573, %v577
    %v869 = vadd.f32 %v574, %v578
    %v870 = vadd.f32 %v575, %v579
    %v871 = vadd.f32 %v867, 0.0001
    %v872 = vadd.f32 %v868, 0.0001
    %v873 = vadd.f32 %v869, 0.0001
    %v874 = vadd.f32 %v870, 0.0001
    %v875 = vadd.f32 %v774, %v863
    %v876 = vadd.f32 %v775, %v864
    %v877 = vadd.f32 %v776, %v865
    %v878 = vadd.f32 %v777, %v866
    %v879 = vadd.f32 %v875, 0.0009
    %v880 = vadd.f32 %v876, 0.0009
    %v881 = vadd.f32 %v877, 0.0009
    %v882 = vadd.f32 %v878, 0.0009
    %v883 = vmul.f32 %v871, %v879
    %v884 = vmul.f32 %v872, %v880
    %v885 = vmul.f32 %v873, %v881
    %v886 = vmul.f32 %v874, %v882
    %v887 = vrcp.pop %v883
    %v888 = vrcp.pop %v884
    %v889 = vrcp.pop %v885
    %v890 = vrcp.pop %v886
    %v891 = vmul.f32 %v883, %v887
    %v892 = vmul.f32 %v884, %v888
    %v893 = vmul.f32 %v885, %v889
    %v894 = vmul.f32 %v886, %v890
    %v895 = vsub.f32 2.0, %v891
    %v896 = vsub.f32 2.0, %v892
    %v897 = vsub.f32 2.0, %v893
    %v898 = vsub.f32 2.0, %v894
    %v899 = vmul.f32 %v887, %v895
    %v900 = vmul.f32 %v888, %v896
    %v901 = vmul.f32 %v889, %v897
    %v902 = vmul.f32 %v890, %v898
    %v903 = vmul.f32 %v685, %v899
    %v904 = vmul.f32 %v686, %v900
    %v905 = vmul.f32 %v687, %v901
    %v906 = vmul.f32 %v688, %v902
    %v907 = vsel %vm111, %v903, 0.0
    %v908 = vsel %vm111, %v904, 0.0
    %v909 = vadd.f32 %v907, %v908
    %v910 = vsel %vm111, %v905, 0.0
    %v911 = vadd.f32 %v909, %v910
    %v912 = vsel %vm111, %v906, 0.0
    %v913 = vadd.f32 %v911, %v912
    %914 = vadd.xlane.f32.xlu0 %v913
    %v915 = vpop.xlane.xlu0 %914
    %v916 = vrot.slane %v915, 4
    %v917 = vadd.f32 %v915, %v916
    %v918 = vrot.slane %v917, 2
    %v919 = vadd.f32 %v917, %v918
    %v920 = vrot.slane %v919, 1
    %v921 = vadd.f32 %v919, %v920
    %s922 = vtos %v921
    %923 = vmatprep.subr.mxu0 0.0
    %924 = vmatpush1.msra.mxu0 %v98
    %925 = vmatprep.subr.mxu0 0.0
    %926 = vmatpush1.msra.mxu0 %v99
    %927 = vmatprep.subr.mxu0 0.0
    %928 = vmatpush1.msra.mxu0 0.0
    %929 = vmatprep.subr.mxu0 0.0
    %930 = vmatpush1.msra.mxu0 0.0
    %931 = vmatprep.subr.mxu0 0.0
    %932 = vmatpush1.msra.mxu0 0.0
    %933 = vmatprep.subr.mxu0 0.0
    %934 = vmatpush1.msra.mxu0 0.0
    %935 = vmatprep.subr.mxu0 0.0
    %936 = vmatpush1.msra.mxu0 0.0
    %937 = vmatprep.subr.mxu0 0.0
    %938 = vmatpush1.msra.mxu0 0.0
    %939 = vmatprep.subr.mxu0 0.0
    %940 = vmatpush1.msra.mxu0 0.0
    %941 = vmatprep.subr.mxu0 0.0
    %942 = vmatpush1.msra.mxu0 0.0
    %943 = vmatprep.subr.mxu0 0.0
    %944 = vmatpush1.msra.mxu0 0.0
    %945 = vmatprep.subr.mxu0 0.0
    %946 = vmatpush1.msra.mxu0 0.0
    %947 = vmatprep.subr.mxu0 0.0
    %948 = vmatpush1.msra.mxu0 0.0
    %949 = vmatprep.subr.mxu0 0.0
    %950 = vmatpush1.msra.mxu0 0.0
    %951 = vmatprep.subr.mxu0 0.0
    %952 = vmatpush1.msra.mxu0 0.0
    %953 = vmatprep.subr.mxu0 0.0
    %954 = vmatpush1.msra.mxu0 0.0
    %955 = vmatprep.subr.mxu0 0.0
    %956 = vmatpush1.msra.mxu0 0.0
    %957 = vmatprep.subr.mxu0 0.0
    %958 = vmatpush1.msra.mxu0 0.0
    %959 = vmatprep.subr.mxu0 0.0
    %960 = vmatpush1.msra.mxu0 0.0
    %961 = vmatprep.subr.mxu0 0.0
    %962 = vmatpush1.msra.mxu0 0.0
    %963 = vmatprep.subr.mxu0 0.0
    %964 = vmatpush1.msra.mxu0 0.0
    %965 = vmatprep.subr.mxu0 0.0
    %966 = vmatpush1.msra.mxu0 0.0
    %967 = vmatprep.subr.mxu0 0.0
    %968 = vmatpush1.msra.mxu0 0.0
    %969 = vmatprep.subr.mxu0 0.0
    %970 = vmatpush1.msra.mxu0 0.0
    %971 = vmatprep.subr.mxu0 0.0
    %972 = vmatpush1.msra.mxu0 0.0
    %973 = vmatprep.subr.mxu0 0.0
    %974 = vmatpush1.msra.mxu0 0.0
    %975 = vmatprep.subr.mxu0 0.0
    %976 = vmatpush1.msra.mxu0 0.0
    %977 = vmatprep.subr.mxu0 0.0
    %978 = vmatpush1.msra.mxu0 0.0
    %979 = vmatprep.subr.mxu0 0.0
    %980 = vmatpush1.msra.mxu0 0.0
    %981 = vmatprep.subr.mxu0 0.0
    %982 = vmatpush1.msra.mxu0 0.0
    %983 = vmatprep.subr.mxu0 0.0
    %984 = vmatpush1.msra.mxu0 0.0
    %985 = vmatprep.subr.mxu0 0.0
    %986 = vmatpush1.msra.mxu0 0.0
    %987 = vmatprep.mubr.f32.mxu0 0.0
    %988 = vmatmul.mubr.f32.gmra.mrb[0].mxu0 %v161
    %v989 = vpop.f32.mrb[0].mxu0
    %v990 = vadd.f32 0.0, %v989
    %v991 = vpop.f32.mrb[0].mxu0
    %992 = vmatprep.mubr.f32.mxu0 0.0
    %993 = vmatmul.mubr.f32.gmra.mrb[0].mxu0 %v164
    %v994 = vpop.f32.mrb[0].mxu0
    %v995 = vadd.f32 0.0, %v994
    %v996 = vpop.f32.mrb[0].mxu0
    %997 = vmatprep.mubr.f32.mxu0 0.0
    %998 = vmatmul.mubr.f32.gmra.mrb[0].mxu0 %v167
    %v999 = vpop.f32.mrb[0].mxu0
    %v1000 = vadd.f32 0.0, %v999
    %v1001 = vpop.f32.mrb[0].mxu0
    %1002 = vmatprep.mubr.f32.mxu0 0.0
    %1003 = vmatmul.mubr.f32.gmra.mrb[0].mxu0 %v170
    %v1004 = vpop.f32.mrb[0].mxu0
    %v1005 = vadd.f32 0.0, %v1004
    %v1006 = vpop.f32.mrb[0].mxu0
    %1007 = vmatprep.mubr.f32.mxu0 0.0
    %1008 = vmatmul.mubr.f32.gmra.mrb[0].mxu0 %v173
    %v1009 = vpop.f32.mrb[0].mxu0
    %v1010 = vadd.f32 0.0, %v1009
    %v1011 = vpop.f32.mrb[0].mxu0
    %1012 = vmatprep.mubr.f32.mxu0 0.0
    %1013 = vmatmul.mubr.f32.gmra.mrb[0].mxu0 %v176
    %v1014 = vpop.f32.mrb[0].mxu0
    %v1015 = vadd.f32 0.0, %v1014
    %v1016 = vpop.f32.mrb[0].mxu0
    %1017 = vmatprep.mubr.f32.mxu0 0.0
    %1018 = vmatmul.mubr.f32.gmra.mrb[0].mxu0 %v179
    %v1019 = vpop.f32.mrb[0].mxu0
    %v1020 = vadd.f32 0.0, %v1019
    %v1021 = vpop.f32.mrb[0].mxu0
    %1022 = vmatprep.mubr.f32.mxu0 0.0
    %1023 = vmatmul.mubr.f32.gmra.mrb[0].mxu0 %v182
    %v1024 = vpop.f32.mrb[0].mxu0
    %v1025 = vadd.f32 0.0, %v1024
    %v1026 = vpop.f32.mrb[0].mxu0
    %1027 = vdwg.mxu0
    %1028 = vmatprep.subr.mxu0 0.0
    %1029 = vmatpush1.msra.mxu0 %v101
    %1030 = vmatprep.subr.mxu0 0.0
    %1031 = vmatpush1.msra.mxu0 %v102
    %1032 = vmatprep.subr.mxu0 0.0
    %1033 = vmatpush1.msra.mxu0 0.0
    %1034 = vmatprep.subr.mxu0 0.0
    %1035 = vmatpush1.msra.mxu0 0.0
    %1036 = vmatprep.subr.mxu0 0.0
    %1037 = vmatpush1.msra.mxu0 0.0
    %1038 = vmatprep.subr.mxu0 0.0
    %1039 = vmatpush1.msra.mxu0 0.0
    %1040 = vmatprep.subr.mxu0 0.0
    %1041 = vmatpush1.msra.mxu0 0.0
    %1042 = vmatprep.subr.mxu0 0.0
    %1043 = vmatpush1.msra.mxu0 0.0
    %1044 = vmatprep.subr.mxu0 0.0
    %1045 = vmatpush1.msra.mxu0 0.0
    %1046 = vmatprep.subr.mxu0 0.0
    %1047 = vmatpush1.msra.mxu0 0.0
    %1048 = vmatprep.subr.mxu0 0.0
    %1049 = vmatpush1.msra.mxu0 0.0
    %1050 = vmatprep.subr.mxu0 0.0
    %1051 = vmatpush1.msra.mxu0 0.0
    %1052 = vmatprep.subr.mxu0 0.0
    %1053 = vmatpush1.msra.mxu0 0.0
    %1054 = vmatprep.subr.mxu0 0.0
    %1055 = vmatpush1.msra.mxu0 0.0
    %1056 = vmatprep.subr.mxu0 0.0
    %1057 = vmatpush1.msra.mxu0 0.0
    %1058 = vmatprep.subr.mxu0 0.0
    %1059 = vmatpush1.msra.mxu0 0.0
    %1060 = vmatprep.subr.mxu0 0.0
    %1061 = vmatpush1.msra.mxu0 0.0
    %1062 = vmatprep.subr.mxu0 0.0
    %1063 = vmatpush1.msra.mxu0 0.0
    %1064 = vmatprep.subr.mxu0 0.0
    %1065 = vmatpush1.msra.mxu0 0.0
    %1066 = vmatprep.subr.mxu0 0.0
    %1067 = vmatpush1.msra.mxu0 0.0
    %1068 = vmatprep.subr.mxu0 0.0
    %1069 = vmatpush1.msra.mxu0 0.0
    %1070 = vmatprep.subr.mxu0 0.0
    %1071 = vmatpush1.msra.mxu0 0.0
    %1072 = vmatprep.subr.mxu0 0.0
    %1073 = vmatpush1.msra.mxu0 0.0
    %1074 = vmatprep.subr.mxu0 0.0
    %1075 = vmatpush1.msra.mxu0 0.0
    %1076 = vmatprep.subr.mxu0 0.0
    %1077 = vmatpush1.msra.mxu0 0.0
    %1078 = vmatprep.subr.mxu0 0.0
    %1079 = vmatpush1.msra.mxu0 0.0
    %1080 = vmatprep.subr.mxu0 0.0
    %1081 = vmatpush1.msra.mxu0 0.0
    %1082 = vmatprep.subr.mxu0 0.0
    %1083 = vmatpush1.msra.mxu0 0.0
    %1084 = vmatprep.subr.mxu0 0.0
    %1085 = vmatpush1.msra.mxu0 0.0
    %1086 = vmatprep.subr.mxu0 0.0
    %1087 = vmatpush1.msra.mxu0 0.0
    %1088 = vmatprep.subr.mxu0 0.0
    %1089 = vmatpush1.msra.mxu0 0.0
    %1090 = vmatprep.subr.mxu0 0.0
    %1091 = vmatpush1.msra.mxu0 0.0
    %1092 = vmatprep.mubr.f32.mxu0 0.0
    %1093 = vmatmul.mubr.f32.gmra.mrb[0].mxu0 %v161
    %v1094 = vpop.f32.mrb[0].mxu0
    %v1095 = vadd.f32 0.0, %v1094
    %v1096 = vpop.f32.mrb[0].mxu0
    %1097 = vmatprep.mubr.f32.mxu0 0.0
    %1098 = vmatmul.mubr.f32.gmra.mrb[0].mxu0 %v164
    %v1099 = vpop.f32.mrb[0].mxu0
    %v1100 = vadd.f32 0.0, %v1099
    %v1101 = vpop.f32.mrb[0].mxu0
    %1102 = vmatprep.mubr.f32.mxu0 0.0
    %1103 = vmatmul.mubr.f32.gmra.mrb[0].mxu0 %v167
    %v1104 = vpop.f32.mrb[0].mxu0
    %v1105 = vadd.f32 0.0, %v1104
    %v1106 = vpop.f32.mrb[0].mxu0
    %1107 = vmatprep.mubr.f32.mxu0 0.0
    %1108 = vmatmul.mubr.f32.gmra.mrb[0].mxu0 %v170
    %v1109 = vpop.f32.mrb[0].mxu0
    %v1110 = vadd.f32 0.0, %v1109
    %v1111 = vpop.f32.mrb[0].mxu0
    %1112 = vmatprep.mubr.f32.mxu0 0.0
    %1113 = vmatmul.mubr.f32.gmra.mrb[0].mxu0 %v173
    %v1114 = vpop.f32.mrb[0].mxu0
    %v1115 = vadd.f32 0.0, %v1114
    %v1116 = vpop.f32.mrb[0].mxu0
    %1117 = vmatprep.mubr.f32.mxu0 0.0
    %1118 = vmatmul.mubr.f32.gmra.mrb[0].mxu0 %v176
    %v1119 = vpop.f32.mrb[0].mxu0
    %v1120 = vadd.f32 0.0, %v1119
    %v1121 = vpop.f32.mrb[0].mxu0
    %1122 = vmatprep.mubr.f32.mxu0 0.0
    %1123 = vmatmul.mubr.f32.gmra.mrb[0].mxu0 %v179
    %v1124 = vpop.f32.mrb[0].mxu0
    %v1125 = vadd.f32 0.0, %v1124
    %v1126 = vpop.f32.mrb[0].mxu0
    %1127 = vmatprep.mubr.f32.mxu0 0.0
    %1128 = vmatmul.mubr.f32.gmra.mrb[0].mxu0 %v182
    %v1129 = vpop.f32.mrb[0].mxu0
    %v1130 = vadd.f32 0.0, %v1129
    %v1131 = vpop.f32.mrb[0].mxu0
    %1132 = vdwg.mxu0
    %v1134 = vsel %vm385, %v86, 0
    %v1137 = vsel %vm385, %v87, 0
    %v1140 = vsel %vm385, %v88, 0
    %v1143 = vsel %vm385, %v89, 0
    %1145 = vmatprep.subr.mxu0 0.0
    %1146 = vmatpush1.msra.mxu0 %v990
    %1147 = vmatprep.subr.mxu0 0.0
    %1148 = vmatpush1.msra.mxu0 %v995
    %1149 = vmatprep.subr.mxu0 0.0
    %1150 = vmatpush1.msra.mxu0 %v1000
    %1151 = vmatprep.subr.mxu0 0.0
    %1152 = vmatpush1.msra.mxu0 %v1005
    %1153 = vmatprep.subr.mxu0 0.0
    %1154 = vmatpush1.msra.mxu0 0.0
    %1155 = vmatprep.subr.mxu0 0.0
    %1156 = vmatpush1.msra.mxu0 0.0
    %1157 = vmatprep.subr.mxu0 0.0
    %1158 = vmatpush1.msra.mxu0 0.0
    %1159 = vmatprep.subr.mxu0 0.0
    %1160 = vmatpush1.msra.mxu0 0.0
    %1161 = vmatprep.subr.mxu0 0.0
    %1162 = vmatpush1.msra.mxu0 0.0
    %1163 = vmatprep.subr.mxu0 0.0
    %1164 = vmatpush1.msra.mxu0 0.0
    %1165 = vmatprep.subr.mxu0 0.0
    %1166 = vmatpush1.msra.mxu0 0.0
    %1167 = vmatprep.subr.mxu0 0.0
    %1168 = vmatpush1.msra.mxu0 0.0
    %1169 = vmatprep.subr.mxu0 0.0
    %1170 = vmatpush1.msra.mxu0 0.0
    %1171 = vmatprep.subr.mxu0 0.0
    %1172 = vmatpush1.msra.mxu0 0.0
    %1173 = vmatprep.subr.mxu0 0.0
    %1174 = vmatpush1.msra.mxu0 0.0
    %1175 = vmatprep.subr.mxu0 0.0
    %1176 = vmatpush1.msra.mxu0 0.0
    %1177 = vmatprep.subr.mxu0 0.0
    %1178 = vmatpush1.msra.mxu0 0.0
    %1179 = vmatprep.subr.mxu0 0.0
    %1180 = vmatpush1.msra.mxu0 0.0
    %1181 = vmatprep.subr.mxu0 0.0
    %1182 = vmatpush1.msra.mxu0 0.0
    %1183 = vmatprep.subr.mxu0 0.0
    %1184 = vmatpush1.msra.mxu0 0.0
    %1185 = vmatprep.subr.mxu0 0.0
    %1186 = vmatpush1.msra.mxu0 0.0
    %1187 = vmatprep.subr.mxu0 0.0
    %1188 = vmatpush1.msra.mxu0 0.0
    %1189 = vmatprep.subr.mxu0 0.0
    %1190 = vmatpush1.msra.mxu0 0.0
    %1191 = vmatprep.subr.mxu0 0.0
    %1192 = vmatpush1.msra.mxu0 0.0
    %1193 = vmatprep.subr.mxu0 0.0
    %1194 = vmatpush1.msra.mxu0 0.0
    %1195 = vmatprep.subr.mxu0 0.0
    %1196 = vmatpush1.msra.mxu0 0.0
    %1197 = vmatprep.subr.mxu0 0.0
    %1198 = vmatpush1.msra.mxu0 0.0
    %1199 = vmatprep.subr.mxu0 0.0
    %1200 = vmatpush1.msra.mxu0 0.0
    %1201 = vmatprep.subr.mxu0 0.0
    %1202 = vmatpush1.msra.mxu0 0.0
    %1203 = vmatprep.subr.mxu0 0.0
    %1204 = vmatpush1.msra.mxu0 0.0
    %1205 = vmatprep.subr.mxu0 0.0
    %1206 = vmatpush1.msra.mxu0 0.0
    %1207 = vmatprep.subr.mxu0 0.0
    %1208 = vmatpush1.msra.mxu0 0.0
    %1209 = vmatprep.mubr.f32.mxu0 0.0
    %1210 = vmatmul.mubr.f32.gmra.mrb[0].mxu0 %v1134
    %v1211 = vpop.f32.mrb[0].mxu0
    %v1212 = vadd.f32 0.0, %v1211
    %v1213 = vpop.f32.mrb[0].mxu0
    %1214 = vmatprep.mubr.f32.mxu0 0.0
    %1215 = vmatmul.mubr.f32.gmra.mrb[0].mxu0 %v1137
    %v1216 = vpop.f32.mrb[0].mxu0
    %v1217 = vadd.f32 0.0, %v1216
    %v1218 = vpop.f32.mrb[0].mxu0
    %1219 = vmatprep.mubr.f32.mxu0 0.0
    %1220 = vmatmul.mubr.f32.gmra.mrb[0].mxu0 %v1140
    %v1221 = vpop.f32.mrb[0].mxu0
    %v1222 = vadd.f32 0.0, %v1221
    %v1223 = vpop.f32.mrb[0].mxu0
    %1224 = vmatprep.mubr.f32.mxu0 0.0
    %1225 = vmatmul.mubr.f32.gmra.mrb[0].mxu0 %v1143
    %v1226 = vpop.f32.mrb[0].mxu0
    %v1227 = vadd.f32 0.0, %v1226
    %v1228 = vpop.f32.mrb[0].mxu0
    %1229 = vdwg.mxu0
    %1230 = vmatprep.subr.mxu0 0.0
    %1231 = vmatpush1.msra.mxu0 %v1010
    %1232 = vmatprep.subr.mxu0 0.0
    %1233 = vmatpush1.msra.mxu0 %v1015
    %1234 = vmatprep.subr.mxu0 0.0
    %1235 = vmatpush1.msra.mxu0 %v1020
    %1236 = vmatprep.subr.mxu0 0.0
    %1237 = vmatpush1.msra.mxu0 %v1025
    %1238 = vmatprep.subr.mxu0 0.0
    %1239 = vmatpush1.msra.mxu0 0.0
    %1240 = vmatprep.subr.mxu0 0.0
    %1241 = vmatpush1.msra.mxu0 0.0
    %1242 = vmatprep.subr.mxu0 0.0
    %1243 = vmatpush1.msra.mxu0 0.0
    %1244 = vmatprep.subr.mxu0 0.0
    %1245 = vmatpush1.msra.mxu0 0.0
    %1246 = vmatprep.subr.mxu0 0.0
    %1247 = vmatpush1.msra.mxu0 0.0
    %1248 = vmatprep.subr.mxu0 0.0
    %1249 = vmatpush1.msra.mxu0 0.0
    %1250 = vmatprep.subr.mxu0 0.0
    %1251 = vmatpush1.msra.mxu0 0.0
    %1252 = vmatprep.subr.mxu0 0.0
    %1253 = vmatpush1.msra.mxu0 0.0
    %1254 = vmatprep.subr.mxu0 0.0
    %1255 = vmatpush1.msra.mxu0 0.0
    %1256 = vmatprep.subr.mxu0 0.0
    %1257 = vmatpush1.msra.mxu0 0.0
    %1258 = vmatprep.subr.mxu0 0.0
    %1259 = vmatpush1.msra.mxu0 0.0
    %1260 = vmatprep.subr.mxu0 0.0
    %1261 = vmatpush1.msra.mxu0 0.0
    %1262 = vmatprep.subr.mxu0 0.0
    %1263 = vmatpush1.msra.mxu0 0.0
    %1264 = vmatprep.subr.mxu0 0.0
    %1265 = vmatpush1.msra.mxu0 0.0
    %1266 = vmatprep.subr.mxu0 0.0
    %1267 = vmatpush1.msra.mxu0 0.0
    %1268 = vmatprep.subr.mxu0 0.0
    %1269 = vmatpush1.msra.mxu0 0.0
    %1270 = vmatprep.subr.mxu0 0.0
    %1271 = vmatpush1.msra.mxu0 0.0
    %1272 = vmatprep.subr.mxu0 0.0
    %1273 = vmatpush1.msra.mxu0 0.0
    %1274 = vmatprep.subr.mxu0 0.0
    %1275 = vmatpush1.msra.mxu0 0.0
    %1276 = vmatprep.subr.mxu0 0.0
    %1277 = vmatpush1.msra.mxu0 0.0
    %1278 = vmatprep.subr.mxu0 0.0
    %1279 = vmatpush1.msra.mxu0 0.0
    %1280 = vmatprep.subr.mxu0 0.0
    %1281 = vmatpush1.msra.mxu0 0.0
    %1282 = vmatprep.subr.mxu0 0.0
    %1283 = vmatpush1.msra.mxu0 0.0
    %1284 = vmatprep.subr.mxu0 0.0
    %1285 = vmatpush1.msra.mxu0 0.0
    %1286 = vmatprep.subr.mxu0 0.0
    %1287 = vmatpush1.msra.mxu0 0.0
    %1288 = vmatprep.subr.mxu0 0.0
    %1289 = vmatpush1.msra.mxu0 0.0
    %1290 = vmatprep.subr.mxu0 0.0
    %1291 = vmatpush1.msra.mxu0 0.0
    %1292 = vmatprep.subr.mxu0 0.0
    %1293 = vmatpush1.msra.mxu0 0.0
    %1294 = vmatprep.mubr.f32.mxu0 0.0
    %1295 = vmatmul.mubr.f32.gmra.mrb[0].mxu0 %v1134
    %v1296 = vpop.f32.mrb[0].mxu0
    %v1297 = vadd.f32 0.0, %v1296
    %v1298 = vpop.f32.mrb[0].mxu0
    %1299 = vmatprep.mubr.f32.mxu0 0.0
    %1300 = vmatmul.mubr.f32.gmra.mrb[0].mxu0 %v1137
    %v1301 = vpop.f32.mrb[0].mxu0
    %v1302 = vadd.f32 0.0, %v1301
    %v1303 = vpop.f32.mrb[0].mxu0
    %1304 = vmatprep.mubr.f32.mxu0 0.0
    %1305 = vmatmul.mubr.f32.gmra.mrb[0].mxu0 %v1140
    %v1306 = vpop.f32.mrb[0].mxu0
    %v1307 = vadd.f32 0.0, %v1306
    %v1308 = vpop.f32.mrb[0].mxu0
    %1309 = vmatprep.mubr.f32.mxu0 0.0
    %1310 = vmatmul.mubr.f32.gmra.mrb[0].mxu0 %v1143
    %v1311 = vpop.f32.mrb[0].mxu0
    %v1312 = vadd.f32 0.0, %v1311
    %v1313 = vpop.f32.mrb[0].mxu0
    %1314 = vdwg.mxu0
    %v1316 = vsel %vm385, %v91, 0
    %v1319 = vsel %vm385, %v92, 0
    %v1322 = vsel %vm385, %v93, 0
    %v1325 = vsel %vm385, %v94, 0
    %1327 = vmatprep.subr.mxu0 0.0
    %1328 = vmatpush1.msra.mxu0 %v1095
    %1329 = vmatprep.subr.mxu0 0.0
    %1330 = vmatpush1.msra.mxu0 %v1100
    %1331 = vmatprep.subr.mxu0 0.0
    %1332 = vmatpush1.msra.mxu0 %v1105
    %1333 = vmatprep.subr.mxu0 0.0
    %1334 = vmatpush1.msra.mxu0 %v1110
    %1335 = vmatprep.subr.mxu0 0.0
    %1336 = vmatpush1.msra.mxu0 0.0
    %1337 = vmatprep.subr.mxu0 0.0
    %1338 = vmatpush1.msra.mxu0 0.0
    %1339 = vmatprep.subr.mxu0 0.0
    %1340 = vmatpush1.msra.mxu0 0.0
    %1341 = vmatprep.subr.mxu0 0.0
    %1342 = vmatpush1.msra.mxu0 0.0
    %1343 = vmatprep.subr.mxu0 0.0
    %1344 = vmatpush1.msra.mxu0 0.0
    %1345 = vmatprep.subr.mxu0 0.0
    %1346 = vmatpush1.msra.mxu0 0.0
    %1347 = vmatprep.subr.mxu0 0.0
    %1348 = vmatpush1.msra.mxu0 0.0
    %1349 = vmatprep.subr.mxu0 0.0
    %1350 = vmatpush1.msra.mxu0 0.0
    %1351 = vmatprep.subr.mxu0 0.0
    %1352 = vmatpush1.msra.mxu0 0.0
    %1353 = vmatprep.subr.mxu0 0.0
    %1354 = vmatpush1.msra.mxu0 0.0
    %1355 = vmatprep.subr.mxu0 0.0
    %1356 = vmatpush1.msra.mxu0 0.0
    %1357 = vmatprep.subr.mxu0 0.0
    %1358 = vmatpush1.msra.mxu0 0.0
    %1359 = vmatprep.subr.mxu0 0.0
    %1360 = vmatpush1.msra.mxu0 0.0
    %1361 = vmatprep.subr.mxu0 0.0
    %1362 = vmatpush1.msra.mxu0 0.0
    %1363 = vmatprep.subr.mxu0 0.0
    %1364 = vmatpush1.msra.mxu0 0.0
    %1365 = vmatprep.subr.mxu0 0.0
    %1366 = vmatpush1.msra.mxu0 0.0
    %1367 = vmatprep.subr.mxu0 0.0
    %1368 = vmatpush1.msra.mxu0 0.0
    %1369 = vmatprep.subr.mxu0 0.0
    %1370 = vmatpush1.msra.mxu0 0.0
    %1371 = vmatprep.subr.mxu0 0.0
    %1372 = vmatpush1.msra.mxu0 0.0
    %1373 = vmatprep.subr.mxu0 0.0
    %1374 = vmatpush1.msra.mxu0 0.0
    %1375 = vmatprep.subr.mxu0 0.0
    %1376 = vmatpush1.msra.mxu0 0.0
    %1377 = vmatprep.subr.mxu0 0.0
    %1378 = vmatpush1.msra.mxu0 0.0
    %1379 = vmatprep.subr.mxu0 0.0
    %1380 = vmatpush1.msra.mxu0 0.0
    %1381 = vmatprep.subr.mxu0 0.0
    %1382 = vmatpush1.msra.mxu0 0.0
    %1383 = vmatprep.subr.mxu0 0.0
    %1384 = vmatpush1.msra.mxu0 0.0
    %1385 = vmatprep.subr.mxu0 0.0
    %1386 = vmatpush1.msra.mxu0 0.0
    %1387 = vmatprep.subr.mxu0 0.0
    %1388 = vmatpush1.msra.mxu0 0.0
    %1389 = vmatprep.subr.mxu0 0.0
    %1390 = vmatpush1.msra.mxu0 0.0
    %1391 = vmatprep.mubr.f32.mxu0 0.0
    %1392 = vmatmul.mubr.f32.gmra.mrb[0].mxu0 %v1316
    %v1393 = vpop.f32.mrb[0].mxu0
    %v1394 = vadd.f32 0.0, %v1393
    %v1395 = vpop.f32.mrb[0].mxu0
    %1396 = vmatprep.mubr.f32.mxu0 0.0
    %1397 = vmatmul.mubr.f32.gmra.mrb[0].mxu0 %v1319
    %v1398 = vpop.f32.mrb[0].mxu0
    %v1399 = vadd.f32 0.0, %v1398
    %v1400 = vpop.f32.mrb[0].mxu0
    %1401 = vmatprep.mubr.f32.mxu0 0.0
    %1402 = vmatmul.mubr.f32.gmra.mrb[0].mxu0 %v1322
    %v1403 = vpop.f32.mrb[0].mxu0
    %v1404 = vadd.f32 0.0, %v1403
    %v1405 = vpop.f32.mrb[0].mxu0
    %1406 = vmatprep.mubr.f32.mxu0 0.0
    %1407 = vmatmul.mubr.f32.gmra.mrb[0].mxu0 %v1325
    %v1408 = vpop.f32.mrb[0].mxu0
    %v1409 = vadd.f32 0.0, %v1408
    %v1410 = vpop.f32.mrb[0].mxu0
    %1411 = vdwg.mxu0
    %1412 = vmatprep.subr.mxu0 0.0
    %1413 = vmatpush1.msra.mxu0 %v1115
    %1414 = vmatprep.subr.mxu0 0.0
    %1415 = vmatpush1.msra.mxu0 %v1120
    %1416 = vmatprep.subr.mxu0 0.0
    %1417 = vmatpush1.msra.mxu0 %v1125
    %1418 = vmatprep.subr.mxu0 0.0
    %1419 = vmatpush1.msra.mxu0 %v1130
    %1420 = vmatprep.subr.mxu0 0.0
    %1421 = vmatpush1.msra.mxu0 0.0
    %1422 = vmatprep.subr.mxu0 0.0
    %1423 = vmatpush1.msra.mxu0 0.0
    %1424 = vmatprep.subr.mxu0 0.0
    %1425 = vmatpush1.msra.mxu0 0.0
    %1426 = vmatprep.subr.mxu0 0.0
    %1427 = vmatpush1.msra.mxu0 0.0
    %1428 = vmatprep.subr.mxu0 0.0
    %1429 = vmatpush1.msra.mxu0 0.0
    %1430 = vmatprep.subr.mxu0 0.0
    %1431 = vmatpush1.msra.mxu0 0.0
    %1432 = vmatprep.subr.mxu0 0.0
    %1433 = vmatpush1.msra.mxu0 0.0
    %1434 = vmatprep.subr.mxu0 0.0
    %1435 = vmatpush1.msra.mxu0 0.0
    %1436 = vmatprep.subr.mxu0 0.0
    %1437 = vmatpush1.msra.mxu0 0.0
    %1438 = vmatprep.subr.mxu0 0.0
    %1439 = vmatpush1.msra.mxu0 0.0
    %1440 = vmatprep.subr.mxu0 0.0
    %1441 = vmatpush1.msra.mxu0 0.0
    %1442 = vmatprep.subr.mxu0 0.0
    %1443 = vmatpush1.msra.mxu0 0.0
    %1444 = vmatprep.subr.mxu0 0.0
    %1445 = vmatpush1.msra.mxu0 0.0
    %1446 = vmatprep.subr.mxu0 0.0
    %1447 = vmatpush1.msra.mxu0 0.0
    %1448 = vmatprep.subr.mxu0 0.0
    %1449 = vmatpush1.msra.mxu0 0.0
    %1450 = vmatprep.subr.mxu0 0.0
    %1451 = vmatpush1.msra.mxu0 0.0
    %1452 = vmatprep.subr.mxu0 0.0
    %1453 = vmatpush1.msra.mxu0 0.0
    %1454 = vmatprep.subr.mxu0 0.0
    %1455 = vmatpush1.msra.mxu0 0.0
    %1456 = vmatprep.subr.mxu0 0.0
    %1457 = vmatpush1.msra.mxu0 0.0
    %1458 = vmatprep.subr.mxu0 0.0
    %1459 = vmatpush1.msra.mxu0 0.0
    %1460 = vmatprep.subr.mxu0 0.0
    %1461 = vmatpush1.msra.mxu0 0.0
    %1462 = vmatprep.subr.mxu0 0.0
    %1463 = vmatpush1.msra.mxu0 0.0
    %1464 = vmatprep.subr.mxu0 0.0
    %1465 = vmatpush1.msra.mxu0 0.0
    %1466 = vmatprep.subr.mxu0 0.0
    %1467 = vmatpush1.msra.mxu0 0.0
    %1468 = vmatprep.subr.mxu0 0.0
    %1469 = vmatpush1.msra.mxu0 0.0
    %1470 = vmatprep.subr.mxu0 0.0
    %1471 = vmatpush1.msra.mxu0 0.0
    %1472 = vmatprep.subr.mxu0 0.0
    %1473 = vmatpush1.msra.mxu0 0.0
    %1474 = vmatprep.subr.mxu0 0.0
    %1475 = vmatpush1.msra.mxu0 0.0
    %1476 = vmatprep.mubr.f32.mxu0 0.0
    %1477 = vmatmul.mubr.f32.gmra.mrb[0].mxu0 %v1316
    %v1478 = vpop.f32.mrb[0].mxu0
    %v1479 = vadd.f32 0.0, %v1478
    %v1480 = vpop.f32.mrb[0].mxu0
    %1481 = vmatprep.mubr.f32.mxu0 0.0
    %1482 = vmatmul.mubr.f32.gmra.mrb[0].mxu0 %v1319
    %v1483 = vpop.f32.mrb[0].mxu0
    %v1484 = vadd.f32 0.0, %v1483
    %v1485 = vpop.f32.mrb[0].mxu0
    %1486 = vmatprep.mubr.f32.mxu0 0.0
    %1487 = vmatmul.mubr.f32.gmra.mrb[0].mxu0 %v1322
    %v1488 = vpop.f32.mrb[0].mxu0
    %v1489 = vadd.f32 0.0, %v1488
    %v1490 = vpop.f32.mrb[0].mxu0
    %1491 = vmatprep.mubr.f32.mxu0 0.0
    %1492 = vmatmul.mubr.f32.gmra.mrb[0].mxu0 %v1325
    %v1493 = vpop.f32.mrb[0].mxu0
    %v1494 = vadd.f32 0.0, %v1493
    %v1495 = vpop.f32.mrb[0].mxu0
    %1496 = vdwg.mxu0
    %v1497 = vmul.f32 %v1212, %v1212
    %v1498 = vmul.f32 %v1217, %v1217
    %v1499 = vmul.f32 %v1222, %v1222
    %v1500 = vmul.f32 %v1227, %v1227
    %v1501 = vmul.f32 %v1394, %v1394
    %v1502 = vmul.f32 %v1399, %v1399
    %v1503 = vmul.f32 %v1404, %v1404
    %v1504 = vmul.f32 %v1409, %v1409
    %v1505 = vadd.f32 %v1497, %v1501
    %v1506 = vadd.f32 %v1498, %v1502
    %v1507 = vadd.f32 %v1499, %v1503
    %v1508 = vadd.f32 %v1500, %v1504
    %v1509 = vadd.f32 %v1505, 1e-08
    %v1510 = vadd.f32 %v1506, 1e-08
    %v1511 = vadd.f32 %v1507, 1e-08
    %v1512 = vadd.f32 %v1508, 1e-08
    %v1513 = vrsqrt.pop %v1509
    %v1514 = vmul.f32 %v1509, %v1513
    %vm1515 = vcmp.eq.f32.partialorder %v1509, inf
    %v1516 = vsel %vm1515, %v1509, %v1514
    %vm1517 = vcmp.eq.f32.partialorder %v1509, 0.0
    %v1518 = vand.u32 %v1509, 2147483648
    %v1519 = vsel %vm1517, %v1518, %v1516
    %v1520 = vrsqrt.pop %v1510
    %v1521 = vmul.f32 %v1510, %v1520
    %vm1522 = vcmp.eq.f32.partialorder %v1510, inf
    %v1523 = vsel %vm1522, %v1510, %v1521
    %vm1524 = vcmp.eq.f32.partialorder %v1510, 0.0
    %v1525 = vand.u32 %v1510, 2147483648
    %v1526 = vsel %vm1524, %v1525, %v1523
    %v1527 = vrsqrt.pop %v1511
    %v1528 = vmul.f32 %v1511, %v1527
    %vm1529 = vcmp.eq.f32.partialorder %v1511, inf
    %v1530 = vsel %vm1529, %v1511, %v1528
    %vm1531 = vcmp.eq.f32.partialorder %v1511, 0.0
    %v1532 = vand.u32 %v1511, 2147483648
    %v1533 = vsel %vm1531, %v1532, %v1530
    %v1534 = vrsqrt.pop %v1512
    %v1535 = vmul.f32 %v1512, %v1534
    %vm1536 = vcmp.eq.f32.partialorder %v1512, inf
    %v1537 = vsel %vm1536, %v1512, %v1535
    %vm1538 = vcmp.eq.f32.partialorder %v1512, 0.0
    %v1539 = vand.u32 %v1512, 2147483648
    %v1540 = vsel %vm1538, %v1539, %v1537
    %v1541 = vmul.f32 %v1297, %v1297
    %v1542 = vmul.f32 %v1302, %v1302
    %v1543 = vmul.f32 %v1307, %v1307
    %v1544 = vmul.f32 %v1312, %v1312
    %v1545 = vmul.f32 %v1479, %v1479
    %v1546 = vmul.f32 %v1484, %v1484
    %v1547 = vmul.f32 %v1489, %v1489
    %v1548 = vmul.f32 %v1494, %v1494
    %v1549 = vadd.f32 %v1541, %v1545
    %v1550 = vadd.f32 %v1542, %v1546
    %v1551 = vadd.f32 %v1543, %v1547
    %v1552 = vadd.f32 %v1544, %v1548
    %v1553 = vadd.f32 %v1549, 1e-08
    %v1554 = vadd.f32 %v1550, 1e-08
    %v1555 = vadd.f32 %v1551, 1e-08
    %v1556 = vadd.f32 %v1552, 1e-08
    %v1557 = vrsqrt.pop %v1553
    %v1558 = vmul.f32 %v1553, %v1557
    %vm1559 = vcmp.eq.f32.partialorder %v1553, inf
    %v1560 = vsel %vm1559, %v1553, %v1558
    %vm1561 = vcmp.eq.f32.partialorder %v1553, 0.0
    %v1562 = vand.u32 %v1553, 2147483648
    %v1563 = vsel %vm1561, %v1562, %v1560
    %v1564 = vrsqrt.pop %v1554
    %v1565 = vmul.f32 %v1554, %v1564
    %vm1566 = vcmp.eq.f32.partialorder %v1554, inf
    %v1567 = vsel %vm1566, %v1554, %v1565
    %vm1568 = vcmp.eq.f32.partialorder %v1554, 0.0
    %v1569 = vand.u32 %v1554, 2147483648
    %v1570 = vsel %vm1568, %v1569, %v1567
    %v1571 = vrsqrt.pop %v1555
    %v1572 = vmul.f32 %v1555, %v1571
    %vm1573 = vcmp.eq.f32.partialorder %v1555, inf
    %v1574 = vsel %vm1573, %v1555, %v1572
    %vm1575 = vcmp.eq.f32.partialorder %v1555, 0.0
    %v1576 = vand.u32 %v1555, 2147483648
    %v1577 = vsel %vm1575, %v1576, %v1574
    %v1578 = vrsqrt.pop %v1556
    %v1579 = vmul.f32 %v1556, %v1578
    %vm1580 = vcmp.eq.f32.partialorder %v1556, inf
    %v1581 = vsel %vm1580, %v1556, %v1579
    %vm1582 = vcmp.eq.f32.partialorder %v1556, 0.0
    %v1583 = vand.u32 %v1556, 2147483648
    %v1584 = vsel %vm1582, %v1583, %v1581
    %v1585 = vsub.f32 %v1519, %v1563
    %v1586 = vsub.f32 %v1526, %v1570
    %v1587 = vsub.f32 %v1533, %v1577
    %v1588 = vsub.f32 %v1540, %v1584
    %v1589 = vand.u32 2147483647, %v1585
    %v1590 = vand.u32 2147483647, %v1586
    %v1591 = vand.u32 2147483647, %v1587
    %v1592 = vand.u32 2147483647, %v1588
    %v1593 = vsel %vm111, %v1589, 0.0
    %v1594 = vsel %vm111, %v1590, 0.0
    %v1595 = vadd.f32 %v1593, %v1594
    %v1596 = vsel %vm111, %v1591, 0.0
    %v1597 = vadd.f32 %v1595, %v1596
    %v1598 = vsel %vm111, %v1592, 0.0
    %v1599 = vadd.f32 %v1597, %v1598
    %1600 = vadd.xlane.f32.xlu0 %v1599
    %v1601 = vpop.xlane.xlu0 %1600
    %v1602 = vrot.slane %v1601, 4
    %v1603 = vadd.f32 %v1601, %v1602
    %v1604 = vrot.slane %v1603, 2
    %v1605 = vadd.f32 %v1603, %v1604
    %v1606 = vrot.slane %v1605, 1
    %v1607 = vadd.f32 %v1605, %v1606
    %s1608 = vtos %v1607
    %v1609 = vlaneseq
    %v1610 = vand.u32 %v1609, 127
    %vm1611 = vcmp.eq.s32.totalorder %v1610, 0
    %v1612 = vstv %s127
    %v1613 = vsel %vm1611, %v1612, 0.0
    %vm1614 = vcmp.eq.s32.totalorder %v1610, 1
    %v1615 = vstv %s147
    %v1616 = vsel %vm1614, %v1615, 0.0
    %v1617 = vadd.f32 %v1613, %v1616
    %vm1618 = vcmp.eq.s32.totalorder %v1610, 2
    %v1619 = vstv %s922
    %v1620 = vsel %vm1618, %v1619, 0.0
    %v1621 = vadd.f32 %v1617, %v1620
    %vm1622 = vcmp.eq.s32.totalorder %v1610, 3
    %v1623 = vstv %s1608
    %v1624 = vsel %vm1622, %v1623, 0.0
    %v1625 = vadd.f32 %v1621, %v1624
    %1626 = vst [vmem:[#allocation10] sm:$0x1] %v1625
    // Predicated region
    $region34: #{tpu_custom_call.1} parent=1 // pred_check
      _
    $region35: #{tpu_custom_call.1} parent=1 // pred_check_branch
      %1628 = sbr.rel (0) target = $region37
    $region36: #{tpu_custom_call.1} parent=1 // pred_region
      %s1630 = ssub.s32 16, 16
      %1631 = vsyncadd [#allocation4], %s1630
      %s1633 = sshll.u32 [#allocation10], 4
      %s1634 = int_to_ptr.vmem [resolvable:$true] %s1633
      %1636 = dma.vmem_to_hbm [thread:$0]  %s1634, 16, %s4, [#allocation4]
    $region37: #{tpu_custom_call.1} parent=1 // pred_fallthru
      _
    // Predicated region
    $region38: #{tpu_custom_call.1} parent=1 // pred_check
      _
    $region39: #{tpu_custom_call.1} parent=1 // pred_check_branch
      %1638 = sbr.rel (0) target = $region41
    $region40: #{tpu_custom_call.1} parent=1 // pred_region
      %1639 = dma.done [#allocation4], 16
    $region41: #{tpu_custom_call.1} parent=1 // pred_fallthru
      _
    %1640 = vsyncpa [#allocation3], 1
    %1641 = vsyncpa [#allocation6], 1
    %1642 = vsyncpa [#allocation9], 1
    %1643 = vsyncpa [#allocation4], 1

// kernel: tpu_custom_call.1
$region0: #{tpu_custom_call.1}
  #allocation0 [shape = 'u32[]', space=smem, size = 0x4, offset = 0x4, fixed_abs, tag = 'smem constant byte address 0x4 - core index']
  #allocation1 [shape = 'u32[144,128]{1,0:T(1,128)}', space=vmem, size = 0x12000, scoped, tag = 'internal scratch']
  %s0 = inlined_call_operand.hbm [shape: f32[2,16,16], index: 0, kind: input, shape index: {}]
  %s1 = inlined_call_operand.hbm [shape: f32[2,16,16], index: 1, kind: input, shape index: {}]
  %s2 = inlined_call_operand.hbm [shape: f32[3,32,32], index: 2, kind: input, shape index: {}]
  %s3 = inlined_call_operand.hbm [shape: f32[3,16,16], index: 3, kind: input, shape index: {}]
  %s4 = inlined_call_operand.hbm [shape: f32[1,128], index: 4, kind: output, shape index: {}]
  %s5 = sld [smem:[#allocation0]]
  $region42: #{tpu_custom_call.1} parent=0
    _
  %s7 = ssub.s32 1, %s5
  %s8 = scalar_select 0, %s7, %s5
  $region1: #{tpu_custom_call.1} parent=0
    #allocation2 [shape = 'u8[16384]{0}', space=vmem, size = 0x4000, scoped, tag = 'input window, operand 0, single buffered']
    #allocation3 [shape = 's32[1]{0}', space=sflag, size = 0x4, scoped, tag = 'scoped memory for tpu_custom_call.1']
    #allocation4 [shape = 's32[1]{0}', space=sflag, size = 0x4, scoped, tag = 'scoped memory for tpu_custom_call.1']
    #allocation5 [shape = 'u8[16384]{0}', space=vmem, size = 0x4000, scoped, tag = 'input window, operand 1, single buffered']
    #allocation6 [shape = 's32[1]{0}', space=sflag, size = 0x4, scoped, tag = 'scoped memory for tpu_custom_call.1']
    #allocation7 [shape = 'u8[49152]{0}', space=vmem, size = 0xc000, scoped, tag = 'input window, operand 2, single buffered']
    #allocation8 [shape = 'u8[24576]{0}', space=vmem, size = 0x6000, scoped, tag = 'input window, operand 3, single buffered']
    #allocation9 [shape = 's32[1]{0}', space=sflag, size = 0x4, scoped, tag = 'scoped memory for tpu_custom_call.1']
    #allocation10 [shape = 'u8[512]{0}', space=vmem, size = 0x400, scoped, tag = 'output window, operand 0, single buffered']
    %9 = vsyncpa [#allocation3], 0
    %10 = vsyncpa [#allocation6], 0
    %11 = vsyncpa [#allocation9], 0
    %12 = vsyncpa [#allocation4], 0
    // Predicated region
    $region2: #{tpu_custom_call.1} parent=1 // pred_check
      _
    $region3: #{tpu_custom_call.1} parent=1 // pred_check_branch
      %14 = sbr.rel (0) target = $region5
    $region4: #{tpu_custom_call.1} parent=1 // pred_region
      %s16 = ssub.s32 512, 512
      %17 = vsyncadd [#allocation3], %s16
      %s18 = sshll.u32 [#allocation2], 4
      %s19 = int_to_ptr.vmem [resolvable:$true] %s18
      %24 = dma.hbm_to_vmem [thread:$0]  %s0, 512, %s19, [#allocation3], 128, 128, 8
    $region5: #{tpu_custom_call.1} parent=1 // pred_fallthru
      _
    // Predicated region
    $region6: #{tpu_custom_call.1} parent=1 // pred_check
      _
    $region7: #{tpu_custom_call.1} parent=1 // pred_check_branch
      %26 = sbr.rel (0) target = $region9
    $region8: #{tpu_custom_call.1} parent=1 // pred_region
      %s28 = ssub.s32 512, 512
      %29 = vsyncadd [#allocation6], %s28
      %s30 = sshll.u32 [#allocation5], 4
      %s31 = int_to_ptr.vmem [resolvable:$true] %s30
      %36 = dma.hbm_to_vmem [thread:$0]  %s1, 512, %s31, [#allocation6], 128, 128, 8
    $region9: #{tpu_custom_call.1} parent=1 // pred_fallthru
      _
    // Predicated region
    $region10: #{tpu_custom_call.1} parent=1 // pred_check
      _
    $region11: #{tpu_custom_call.1} parent=1 // pred_check_branch
      %38 = sbr.rel (0) target = $region13
    $region12: #{tpu_custom_call.1} parent=1 // pred_region
      %s40 = ssub.s32 1536, 1536
      %41 = vsyncadd [#allocation6], %s40
      %s42 = sshll.u32 [#allocation7], 4
      %s43 = int_to_ptr.vmem [resolvable:$true] %s42
      %48 = dma.hbm_to_vmem [thread:$0]  %s2, 1536, %s43, [#allocation6], 128, 128, 8
    $region13: #{tpu_custom_call.1} parent=1 // pred_fallthru
      _
    // Predicated region
    $region14: #{tpu_custom_call.1} parent=1 // pred_check
      _
    $region15: #{tpu_custom_call.1} parent=1 // pred_check_branch
      %50 = sbr.rel (0) target = $region17
    $region16: #{tpu_custom_call.1} parent=1 // pred_region
      %s52 = ssub.s32 768, 768
      %53 = vsyncadd [#allocation9], %s52
      %s54 = sshll.u32 [#allocation8], 4
      %s55 = int_to_ptr.vmem [resolvable:$true] %s54
      %60 = dma.hbm_to_vmem [thread:$0]  %s3, 768, %s55, [#allocation9], 128, 128, 8
    $region17: #{tpu_custom_call.1} parent=1 // pred_fallthru
      _
    // Predicated region
    $region18: #{tpu_custom_call.1} parent=1 // pred_check
      _
    $region19: #{tpu_custom_call.1} parent=1 // pred_check_branch
      %62 = sbr.rel (0) target = $region21
    $region20: #{tpu_custom_call.1} parent=1 // pred_region
      %63 = dma.done [#allocation3], 512
    $region21: #{tpu_custom_call.1} parent=1 // pred_fallthru
      _
    // Predicated region
    $region22: #{tpu_custom_call.1} parent=1 // pred_check
      _
    $region23: #{tpu_custom_call.1} parent=1 // pred_check_branch
      %65 = sbr.rel (0) target = $region25
    $region24: #{tpu_custom_call.1} parent=1 // pred_region
      %66 = dma.done [#allocation6], 512
    $region25: #{tpu_custom_call.1} parent=1 // pred_fallthru
      _
    // Predicated region
    $region26: #{tpu_custom_call.1} parent=1 // pred_check
      _
    $region27: #{tpu_custom_call.1} parent=1 // pred_check_branch
      %68 = sbr.rel (0) target = $region29
    $region28: #{tpu_custom_call.1} parent=1 // pred_region
      %69 = dma.done [#allocation6], 1536
    $region29: #{tpu_custom_call.1} parent=1 // pred_fallthru
      _
    // Predicated region
    $region30: #{tpu_custom_call.1} parent=1 // pred_check
      _
    $region31: #{tpu_custom_call.1} parent=1 // pred_check_branch
      %71 = sbr.rel (0) target = $region33
    $region32: #{tpu_custom_call.1} parent=1 // pred_region
      %72 = dma.done [#allocation9], 768
    $region33: #{tpu_custom_call.1} parent=1 // pred_fallthru
      _
    %v73 = vld [vmem:[#allocation2] sm:$0xff]
    %v74 = vld [vmem:[#allocation2 + $0x8] sm:$0xff]
    %v75 = vld [vmem:[#allocation2 + $0x10] sm:$0xff]
    %v76 = vld [vmem:[#allocation2 + $0x18] sm:$0xff]
    %v77 = vld [vmem:[#allocation5] sm:$0xff]
    %v78 = vld [vmem:[#allocation5 + $0x8] sm:$0xff]
    %v79 = vld [vmem:[#allocation5 + $0x10] sm:$0xff]
    %v80 = vld [vmem:[#allocation5 + $0x18] sm:$0xff]
    %v81 = vld [vmem:[#allocation7] sm:$0xff]
    %v82 = vld [vmem:[#allocation7 + $0x8] sm:$0xff]
    %v83 = vld [vmem:[#allocation7 + $0x10] sm:$0xff]
    %v84 = vld [vmem:[#allocation7 + $0x18] sm:$0xff]
    %s85 = scalar_lea.vmem [#allocation7], 32
    %v86 = vld [vmem:[%s85] sm:$0xff]
    %v87 = vld [vmem:[%s85 + $0x8] sm:$0xff]
    %v88 = vld [vmem:[%s85 + $0x10] sm:$0xff]
    %v89 = vld [vmem:[%s85 + $0x18] sm:$0xff]
    %s90 = scalar_lea.vmem [#allocation7], 64
    %v91 = vld [vmem:[%s90] sm:$0xff]
    %v92 = vld [vmem:[%s90 + $0x8] sm:$0xff]
    %v93 = vld [vmem:[%s90 + $0x10] sm:$0xff]
    %v94 = vld [vmem:[%s90 + $0x18] sm:$0xff]
    %v95 = vld [vmem:[#allocation8] sm:$0xff]
    %v96 = vld [vmem:[#allocation8 + $0x8] sm:$0xff]
    %s97 = scalar_lea.vmem [#allocation8], 16
    %v98 = vld [vmem:[%s97] sm:$0xff]
    %v99 = vld [vmem:[%s97 + $0x8] sm:$0xff]
    %s100 = scalar_lea.vmem [#allocation8], 32
    %v101 = vld [vmem:[%s100] sm:$0xff]
    %v102 = vld [vmem:[%s100 + $0x8] sm:$0xff]
    %v103 = vsub.f32 %v73, %v77
    %v104 = vsub.f32 %v74, %v78
    %v105 = vsub.f32 %v75, %v79
    %v106 = vsub.f32 %v76, %v80
    %v107 = vmul.f32 %v103, %v103
    %v108 = vmul.f32 %v104, %v104
    %v109 = vmul.f32 %v105, %v105
    %v110 = vmul.f32 %v106, %v106
    %vm111 = vcmask 130048
    %v112 = vsel %vm111, %v107, 0.0
    %v113 = vsel %vm111, %v108, 0.0
    %v114 = vadd.f32 %v112, %v113
    %v115 = vsel %vm111, %v109, 0.0
    %v116 = vadd.f32 %v114, %v115
    %v117 = vsel %vm111, %v110, 0.0
    %v118 = vadd.f32 %v116, %v117
    %119 = vadd.xlane.f32.xlu0 %v118
    %v120 = vpop.xlane.xlu0 %119
    %v121 = vrot.slane %v120, 4
    %v122 = vadd.f32 %v120, %v121
    %v123 = vrot.slane %v122, 2
    %v124 = vadd.f32 %v122, %v123
    %v125 = vrot.slane %v124, 1
    %v126 = vadd.f32 %v124, %v125
    %s127 = vtos %v126
    %v128 = vand.u32 2147483647, %v103
    %v129 = vand.u32 2147483647, %v104
    %v130 = vand.u32 2147483647, %v105
    %v131 = vand.u32 2147483647, %v106
    %v132 = vsel %vm111, %v128, 0.0
    %v133 = vsel %vm111, %v129, 0.0
    %v134 = vadd.f32 %v132, %v133
    %v135 = vsel %vm111, %v130, 0.0
    %v136 = vadd.f32 %v134, %v135
    %v137 = vsel %vm111, %v131, 0.0
    %v138 = vadd.f32 %v136, %v137
    %139 = vadd.xlane.f32.xlu0 %v138
    %v140 = vpop.xlane.xlu0 %139
    %v141 = vrot.slane %v140, 4
    %v142 = vadd.f32 %v140, %v141
    %v143 = vrot.slane %v142, 2
    %v144 = vadd.f32 %v142, %v143
    %v145 = vrot.slane %v144, 1
    %v146 = vadd.f32 %v144, %v145
    %s147 = vtos %v146
    %v148 = vmul.f32 %v73, %v73
    %v149 = vmul.f32 %v74, %v74
    %v150 = vmul.f32 %v75, %v75
    %v151 = vmul.f32 %v76, %v76
    %v152 = vmul.f32 %v77, %v77
    %v153 = vmul.f32 %v78, %v78
    %v154 = vmul.f32 %v79, %v79
    %v155 = vmul.f32 %v80, %v80
    %v156 = vmul.f32 %v73, %v77
    %v157 = vmul.f32 %v74, %v78
    %v158 = vmul.f32 %v75, %v79
    %v159 = vmul.f32 %v76, %v80
    %v161 = vsel %vm111, %v73, 0
    %v164 = vsel %vm111, %v74, 0
    %v167 = vsel %vm111, %v75, 0
    %v170 = vsel %vm111, %v76, 0
    %v173 = vsel %vm111, %v77, 0
    %v176 = vsel %vm111, %v78, 0
    %v179 = vsel %vm111, %v79, 0
    %v182 = vsel %vm111, %v80, 0
    %v185 = vsel %vm111, %v148, 0
    %v188 = vsel %vm111, %v149, 0
    %v191 = vsel %vm111, %v150, 0
    %v194 = vsel %vm111, %v151, 0
    %v197 = vsel %vm111, %v152, 0
    %v200 = vsel %vm111, %v153, 0
    %v203 = vsel %vm111, %v154, 0
    %v206 = vsel %vm111, %v155, 0
    %v209 = vsel %vm111, %v156, 0
    %v212 = vsel %vm111, %v157, 0
    %v215 = vsel %vm111, %v158, 0
    %v218 = vsel %vm111, %v159, 0
    %220 = vmatprep.subr.mxu0 0.0
    %221 = vmatpush1.msra.mxu0 %v95
    %222 = vmatprep.subr.mxu0 0.0
    %223 = vmatpush1.msra.mxu0 %v96
    %224 = vmatprep.subr.mxu0 0.0
    %225 = vmatpush1.msra.mxu0 0.0
    %226 = vmatprep.subr.mxu0 0.0
    %227 = vmatpush1.msra.mxu0 0.0
    %228 = vmatprep.subr.mxu0 0.0
    %229 = vmatpush1.msra.mxu0 0.0
    %230 = vmatprep.subr.mxu0 0.0
    %231 = vmatpush1.msra.mxu0 0.0
    %232 = vmatprep.subr.mxu0 0.0
    %233 = vmatpush1.msra.mxu0 0.0
    %234 = vmatprep.subr.mxu0 0.0
    %235 = vmatpush1.msra.mxu0 0.0
    %236 = vmatprep.subr.mxu0 0.0
    %237 = vmatpush1.msra.mxu0 0.0
    %238 = vmatprep.subr.mxu0 0.0
    %239 = vmatpush1.msra.mxu0 0.0
    %240 = vmatprep.subr.mxu0 0.0
    %241 = vmatpush1.msra.mxu0 0.0
    %242 = vmatprep.subr.mxu0 0.0
    %243 = vmatpush1.msra.mxu0 0.0
    %244 = vmatprep.subr.mxu0 0.0
    %245 = vmatpush1.msra.mxu0 0.0
    %246 = vmatprep.subr.mxu0 0.0
    %247 = vmatpush1.msra.mxu0 0.0
    %248 = vmatprep.subr.mxu0 0.0
    %249 = vmatpush1.msra.mxu0 0.0
    %250 = vmatprep.subr.mxu0 0.0
    %251 = vmatpush1.msra.mxu0 0.0
    %252 = vmatprep.subr.mxu0 0.0
    %253 = vmatpush1.msra.mxu0 0.0
    %254 = vmatprep.subr.mxu0 0.0
    %255 = vmatpush1.msra.mxu0 0.0
    %256 = vmatprep.subr.mxu0 0.0
    %257 = vmatpush1.msra.mxu0 0.0
    %258 = vmatprep.subr.mxu0 0.0
    %259 = vmatpush1.msra.mxu0 0.0
    %260 = vmatprep.subr.mxu0 0.0
    %261 = vmatpush1.msra.mxu0 0.0
    %262 = vmatprep.subr.mxu0 0.0
    %263 = vmatpush1.msra.mxu0 0.0
    %264 = vmatprep.subr.mxu0 0.0
    %265 = vmatpush1.msra.mxu0 0.0
    %266 = vmatprep.subr.mxu0 0.0
    %267 = vmatpush1.msra.mxu0 0.0
    %268 = vmatprep.subr.mxu0 0.0
    %269 = vmatpush1.msra.mxu0 0.0
    %270 = vmatprep.subr.mxu0 0.0
    %271 = vmatpush1.msra.mxu0 0.0
    %272 = vmatprep.subr.mxu0 0.0
    %273 = vmatpush1.msra.mxu0 0.0
    %274 = vmatprep.subr.mxu0 0.0
    %275 = vmatpush1.msra.mxu0 0.0
    %276 = vmatprep.subr.mxu0 0.0
    %277 = vmatpush1.msra.mxu0 0.0
    %278 = vmatprep.subr.mxu0 0.0
    %279 = vmatpush1.msra.mxu0 0.0
    %280 = vmatprep.subr.mxu0 0.0
    %281 = vmatpush1.msra.mxu0 0.0
    %282 = vmatprep.subr.mxu0 0.0
    %283 = vmatpush1.msra.mxu0 0.0
    %284 = vmatprep.mubr.f32.mxu0 0.0
    %285 = vmatmul.mubr.f32.gmra.mrb[0].mxu0 %v161
    %v286 = vpop.f32.mrb[0].mxu0
    %v287 = vadd.f32 0.0, %v286
    %v288 = vpop.f32.mrb[0].mxu0
    %289 = vmatprep.mubr.f32.mxu0 0.0
    %290 = vmatmul.mubr.f32.gmra.mrb[0].mxu0 %v164
    %v291 = vpop.f32.mrb[0].mxu0
    %v292 = vadd.f32 0.0, %v291
    %v293 = vpop.f32.mrb[0].mxu0
    %294 = vmatprep.mubr.f32.mxu0 0.0
    %295 = vmatmul.mubr.f32.gmra.mrb[0].mxu0 %v167
    %v296 = vpop.f32.mrb[0].mxu0
    %v297 = vadd.f32 0.0, %v296
    %v298 = vpop.f32.mrb[0].mxu0
    %299 = vmatprep.mubr.f32.mxu0 0.0
    %300 = vmatmul.mubr.f32.gmra.mrb[0].mxu0 %v170
    %v301 = vpop.f32.mrb[0].mxu0
    %v302 = vadd.f32 0.0, %v301
    %v303 = vpop.f32.mrb[0].mxu0
    %304 = vmatprep.mubr.f32.mxu0 0.0
    %305 = vmatmul.mubr.f32.gmra.mrb[0].mxu0 %v173
    %v306 = vpop.f32.mrb[0].mxu0
    %v307 = vadd.f32 0.0, %v306
    %v308 = vpop.f32.mrb[0].mxu0
    %309 = vmatprep.mubr.f32.mxu0 0.0
    %310 = vmatmul.mubr.f32.gmra.mrb[0].mxu0 %v176
    %v311 = vpop.f32.mrb[0].mxu0
    %v312 = vadd.f32 0.0, %v311
    %v313 = vpop.f32.mrb[0].mxu0
    %314 = vmatprep.mubr.f32.mxu0 0.0
    %315 = vmatmul.mubr.f32.gmra.mrb[0].mxu0 %v179
    %v316 = vpop.f32.mrb[0].mxu0
    %v317 = vadd.f32 0.0, %v316
    %v318 = vpop.f32.mrb[0].mxu0
    %319 = vmatprep.mubr.f32.mxu0 0.0
    %320 = vmatmul.mubr.f32.gmra.mrb[0].mxu0 %v182
    %v321 = vpop.f32.mrb[0].mxu0
    %v322 = vadd.f32 0.0, %v321
    %v323 = vpop.f32.mrb[0].mxu0
    %324 = vmatprep.mubr.f32.mxu0 0.0
    %325 = vmatmul.mubr.f32.gmra.mrb[0].mxu0 %v185
    %v326 = vpop.f32.mrb[0].mxu0
    %v327 = vadd.f32 0.0, %v326
    %v328 = vpop.f32.mrb[0].mxu0
    %329 = vmatprep.mubr.f32.mxu0 0.0
    %330 = vmatmul.mubr.f32.gmra.mrb[0].mxu0 %v188
    %v331 = vpop.f32.mrb[0].mxu0
    %v332 = vadd.f32 0.0, %v331
    %v333 = vpop.f32.mrb[0].mxu0
    %334 = vmatprep.mubr.f32.mxu0 0.0
    %335 = vmatmul.mubr.f32.gmra.mrb[0].mxu0 %v191
    %v336 = vpop.f32.mrb[0].mxu0
    %v337 = vadd.f32 0.0, %v336
    %v338 = vpop.f32.mrb[0].mxu0
    %339 = vmatprep.mubr.f32.mxu0 0.0
    %340 = vmatmul.mubr.f32.gmra.mrb[0].mxu0 %v194
    %v341 = vpop.f32.mrb[0].mxu0
    %v342 = vadd.f32 0.0, %v341
    %v343 = vpop.f32.mrb[0].mxu0
    %344 = vmatprep.mubr.f32.mxu0 0.0
    %345 = vmatmul.mubr.f32.gmra.mrb[0].mxu0 %v197
    %v346 = vpop.f32.mrb[0].mxu0
    %v347 = vadd.f32 0.0, %v346
    %v348 = vpop.f32.mrb[0].mxu0
    %349 = vmatprep.mubr.f32.mxu0 0.0
    %350 = vmatmul.mubr.f32.gmra.mrb[0].mxu0 %v200
    %v351 = vpop.f32.mrb[0].mxu0
    %v352 = vadd.f32 0.0, %v351
    %v353 = vpop.f32.mrb[0].mxu0
    %354 = vmatprep.mubr.f32.mxu0 0.0
    %355 = vmatmul.mubr.f32.gmra.mrb[0].mxu0 %v203
    %v356 = vpop.f32.mrb[0].mxu0
    %v357 = vadd.f32 0.0, %v356
    %v358 = vpop.f32.mrb[0].mxu0
    %359 = vmatprep.mubr.f32.mxu0 0.0
    %360 = vmatmul.mubr.f32.gmra.mrb[0].mxu0 %v206
    %v361 = vpop.f32.mrb[0].mxu0
    %v362 = vadd.f32 0.0, %v361
    %v363 = vpop.f32.mrb[0].mxu0
    %364 = vmatprep.mubr.f32.mxu0 0.0
    %365 = vmatmul.mubr.f32.gmra.mrb[0].mxu0 %v209
    %v366 = vpop.f32.mrb[0].mxu0
    %v367 = vadd.f32 0.0, %v366
    %v368 = vpop.f32.mrb[0].mxu0
    %369 = vmatprep.mubr.f32.mxu0 0.0
    %370 = vmatmul.mubr.f32.gmra.mrb[0].mxu0 %v212
    %v371 = vpop.f32.mrb[0].mxu0
    %v372 = vadd.f32 0.0, %v371
    %v373 = vpop.f32.mrb[0].mxu0
    %374 = vmatprep.mubr.f32.mxu0 0.0
    %375 = vmatmul.mubr.f32.gmra.mrb[0].mxu0 %v215
    %v376 = vpop.f32.mrb[0].mxu0
    %v377 = vadd.f32 0.0, %v376
    %v378 = vpop.f32.mrb[0].mxu0
    %379 = vmatprep.mubr.f32.mxu0 0.0
    %380 = vmatmul.mubr.f32.gmra.mrb[0].mxu0 %v218
    %v381 = vpop.f32.mrb[0].mxu0
    %v382 = vadd.f32 0.0, %v381
    %v383 = vpop.f32.mrb[0].mxu0
    %384 = vdwg.mxu0
    %vm385 = vcmask 261120
    %v387 = vsel %vm385, %v81, 0
    %v390 = vsel %vm385, %v82, 0
    %v393 = vsel %vm385, %v83, 0
    %v396 = vsel %vm385, %v84, 0
    %398 = vmatprep.subr.mxu0 0.0
    %399 = vmatpush1.msra.mxu0 %v287
    %400 = vmatprep.subr.mxu0 0.0
    %401 = vmatpush1.msra.mxu0 %v292
    %402 = vmatprep.subr.mxu0 0.0
    %403 = vmatpush1.msra.mxu0 %v297
    %404 = vmatprep.subr.mxu0 0.0
    %405 = vmatpush1.msra.mxu0 %v302
    %406 = vmatprep.subr.mxu0 0.0
    %407 = vmatpush1.msra.mxu0 0.0
    %408 = vmatprep.subr.mxu0 0.0
    %409 = vmatpush1.msra.mxu0 0.0
    %410 = vmatprep.subr.mxu0 0.0
    %411 = vmatpush1.msra.mxu0 0.0
    %412 = vmatprep.subr.mxu0 0.0
    %413 = vmatpush1.msra.mxu0 0.0
    %414 = vmatprep.subr.mxu0 0.0
    %415 = vmatpush1.msra.mxu0 0.0
    %416 = vmatprep.subr.mxu0 0.0
    %417 = vmatpush1.msra.mxu0 0.0
    %418 = vmatprep.subr.mxu0 0.0
    %419 = vmatpush1.msra.mxu0 0.0
    %420 = vmatprep.subr.mxu0 0.0
    %421 = vmatpush1.msra.mxu0 0.0
    %422 = vmatprep.subr.mxu0 0.0
    %423 = vmatpush1.msra.mxu0 0.0
    %424 = vmatprep.subr.mxu0 0.0
    %425 = vmatpush1.msra.mxu0 0.0
    %426 = vmatprep.subr.mxu0 0.0
    %427 = vmatpush1.msra.mxu0 0.0
    %428 = vmatprep.subr.mxu0 0.0
    %429 = vmatpush1.msra.mxu0 0.0
    %430 = vmatprep.subr.mxu0 0.0
    %431 = vmatpush1.msra.mxu0 0.0
    %432 = vmatprep.subr.mxu0 0.0
    %433 = vmatpush1.msra.mxu0 0.0
    %434 = vmatprep.subr.mxu0 0.0
    %435 = vmatpush1.msra.mxu0 0.0
    %436 = vmatprep.subr.mxu0 0.0
    %437 = vmatpush1.msra.mxu0 0.0
    %438 = vmatprep.subr.mxu0 0.0
    %439 = vmatpush1.msra.mxu0 0.0
    %440 = vmatprep.subr.mxu0 0.0
    %441 = vmatpush1.msra.mxu0 0.0
    %442 = vmatprep.subr.mxu0 0.0
    %443 = vmatpush1.msra.mxu0 0.0
    %444 = vmatprep.subr.mxu0 0.0
    %445 = vmatpush1.msra.mxu0 0.0
    %446 = vmatprep.subr.mxu0 0.0
    %447 = vmatpush1.msra.mxu0 0.0
    %448 = vmatprep.subr.mxu0 0.0
    %449 = vmatpush1.msra.mxu0 0.0
    %450 = vmatprep.subr.mxu0 0.0
    %451 = vmatpush1.msra.mxu0 0.0
    %452 = vmatprep.subr.mxu0 0.0
    %453 = vmatpush1.msra.mxu0 0.0
    %454 = vmatprep.subr.mxu0 0.0
    %455 = vmatpush1.msra.mxu0 0.0
    %456 = vmatprep.subr.mxu0 0.0
    %457 = vmatpush1.msra.mxu0 0.0
    %458 = vmatprep.subr.mxu0 0.0
    %459 = vmatpush1.msra.mxu0 0.0
    %460 = vmatprep.subr.mxu0 0.0
    %461 = vmatpush1.msra.mxu0 0.0
    %462 = vmatprep.mubr.f32.mxu0 0.0
    %463 = vmatmul.mubr.f32.gmra.mrb[0].mxu0 %v387
    %v464 = vpop.f32.mrb[0].mxu0
    %v465 = vadd.f32 0.0, %v464
    %v466 = vpop.f32.mrb[0].mxu0
    %467 = vmatprep.mubr.f32.mxu0 0.0
    %468 = vmatmul.mubr.f32.gmra.mrb[0].mxu0 %v390
    %v469 = vpop.f32.mrb[0].mxu0
    %v470 = vadd.f32 0.0, %v469
    %v471 = vpop.f32.mrb[0].mxu0
    %472 = vmatprep.mubr.f32.mxu0 0.0
    %473 = vmatmul.mubr.f32.gmra.mrb[0].mxu0 %v393
    %v474 = vpop.f32.mrb[0].mxu0
    %v475 = vadd.f32 0.0, %v474
    %v476 = vpop.f32.mrb[0].mxu0
    %477 = vmatprep.mubr.f32.mxu0 0.0
    %478 = vmatmul.mubr.f32.gmra.mrb[0].mxu0 %v396
    %v479 = vpop.f32.mrb[0].mxu0
    %v480 = vadd.f32 0.0, %v479
    %v481 = vpop.f32.mrb[0].mxu0
    %482 = vdwg.mxu0
    %483 = vmatprep.subr.mxu0 0.0
    %484 = vmatpush1.msra.mxu0 %v307
    %485 = vmatprep.subr.mxu0 0.0
    %486 = vmatpush1.msra.mxu0 %v312
    %487 = vmatprep.subr.mxu0 0.0
    %488 = vmatpush1.msra.mxu0 %v317
    %489 = vmatprep.subr.mxu0 0.0
    %490 = vmatpush1.msra.mxu0 %v322
    %491 = vmatprep.subr.mxu0 0.0
    %492 = vmatpush1.msra.mxu0 0.0
    %493 = vmatprep.subr.mxu0 0.0
    %494 = vmatpush1.msra.mxu0 0.0
    %495 = vmatprep.subr.mxu0 0.0
    %496 = vmatpush1.msra.mxu0 0.0
    %497 = vmatprep.subr.mxu0 0.0
    %498 = vmatpush1.msra.mxu0 0.0
    %499 = vmatprep.subr.mxu0 0.0
    %500 = vmatpush1.msra.mxu0 0.0
    %501 = vmatprep.subr.mxu0 0.0
    %502 = vmatpush1.msra.mxu0 0.0
    %503 = vmatprep.subr.mxu0 0.0
    %504 = vmatpush1.msra.mxu0 0.0
    %505 = vmatprep.subr.mxu0 0.0
    %506 = vmatpush1.msra.mxu0 0.0
    %507 = vmatprep.subr.mxu0 0.0
    %508 = vmatpush1.msra.mxu0 0.0
    %509 = vmatprep.subr.mxu0 0.0
    %510 = vmatpush1.msra.mxu0 0.0
    %511 = vmatprep.subr.mxu0 0.0
    %512 = vmatpush1.msra.mxu0 0.0
    %513 = vmatprep.subr.mxu0 0.0
    %514 = vmatpush1.msra.mxu0 0.0
    %515 = vmatprep.subr.mxu0 0.0
    %516 = vmatpush1.msra.mxu0 0.0
    %517 = vmatprep.subr.mxu0 0.0
    %518 = vmatpush1.msra.mxu0 0.0
    %519 = vmatprep.subr.mxu0 0.0
    %520 = vmatpush1.msra.mxu0 0.0
    %521 = vmatprep.subr.mxu0 0.0
    %522 = vmatpush1.msra.mxu0 0.0
    %523 = vmatprep.subr.mxu0 0.0
    %524 = vmatpush1.msra.mxu0 0.0
    %525 = vmatprep.subr.mxu0 0.0
    %526 = vmatpush1.msra.mxu0 0.0
    %527 = vmatprep.subr.mxu0 0.0
    %528 = vmatpush1.msra.mxu0 0.0
    %529 = vmatprep.subr.mxu0 0.0
    %530 = vmatpush1.msra.mxu0 0.0
    %531 = vmatprep.subr.mxu0 0.0
    %532 = vmatpush1.msra.mxu0 0.0
    %533 = vmatprep.subr.mxu0 0.0
    %534 = vmatpush1.msra.mxu0 0.0
    %535 = vmatprep.subr.mxu0 0.0
    %536 = vmatpush1.msra.mxu0 0.0
    %537 = vmatprep.subr.mxu0 0.0
    %538 = vmatpush1.msra.mxu0 0.0
    %539 = vmatprep.subr.mxu0 0.0
    %540 = vmatpush1.msra.mxu0 0.0
    %541 = vmatprep.subr.mxu0 0.0
    %542 = vmatpush1.msra.mxu0 0.0
    %543 = vmatprep.subr.mxu0 0.0
    %544 = vmatpush1.msra.mxu0 0.0
    %545 = vmatprep.subr.mxu0 0.0
    %546 = vmatpush1.msra.mxu0 0.0
    %547 = vmatprep.mubr.f32.mxu0 0.0
    %548 = vmatmul.mubr.f32.gmra.mrb[0].mxu0 %v387
    %v549 = vpop.f32.mrb[0].mxu0
    %v550 = vadd.f32 0.0, %v549
    %v551 = vpop.f32.mrb[0].mxu0
    %552 = vmatprep.mubr.f32.mxu0 0.0
    %553 = vmatmul.mubr.f32.gmra.mrb[0].mxu0 %v390
    %v554 = vpop.f32.mrb[0].mxu0
    %v555 = vadd.f32 0.0, %v554
    %v556 = vpop.f32.mrb[0].mxu0
    %557 = vmatprep.mubr.f32.mxu0 0.0
    %558 = vmatmul.mubr.f32.gmra.mrb[0].mxu0 %v393
    %v559 = vpop.f32.mrb[0].mxu0
    %v560 = vadd.f32 0.0, %v559
    %v561 = vpop.f32.mrb[0].mxu0
    %562 = vmatprep.mubr.f32.mxu0 0.0
    %563 = vmatmul.mubr.f32.gmra.mrb[0].mxu0 %v396
    %v564 = vpop.f32.mrb[0].mxu0
    %v565 = vadd.f32 0.0, %v564
    %v566 = vpop.f32.mrb[0].mxu0
    %567 = vdwg.mxu0
    %v568 = vmul.f32 %v465, %v550
    %v569 = vmul.f32 %v470, %v555
    %v570 = vmul.f32 %v475, %v560
    %v571 = vmul.f32 %v480, %v565
    %v572 = vmul.f32 %v465, %v465
    %v573 = vmul.f32 %v470, %v470
    %v574 = vmul.f32 %v475, %v475
    %v575 = vmul.f32 %v480, %v480
    %v576 = vmul.f32 %v550, %v550
    %v577 = vmul.f32 %v555, %v555
    %v578 = vmul.f32 %v560, %v560
    %v579 = vmul.f32 %v565, %v565
    %580 = vmatprep.subr.mxu0 0.0
    %581 = vmatpush1.msra.mxu0 %v367
    %582 = vmatprep.subr.mxu0 0.0
    %583 = vmatpush1.msra.mxu0 %v372
    %584 = vmatprep.subr.mxu0 0.0
    %585 = vmatpush1.msra.mxu0 %v377
    %586 = vmatprep.subr.mxu0 0.0
    %587 = vmatpush1.msra.mxu0 %v382
    %588 = vmatprep.subr.mxu0 0.0
    %589 = vmatpush1.msra.mxu0 0.0
    %590 = vmatprep.subr.mxu0 0.0
    %591 = vmatpush1.msra.mxu0 0.0
    %592 = vmatprep.subr.mxu0 0.0
    %593 = vmatpush1.msra.mxu0 0.0
    %594 = vmatprep.subr.mxu0 0.0
    %595 = vmatpush1.msra.mxu0 0.0
    %596 = vmatprep.subr.mxu0 0.0
    %597 = vmatpush1.msra.mxu0 0.0
    %598 = vmatprep.subr.mxu0 0.0
    %599 = vmatpush1.msra.mxu0 0.0
    %600 = vmatprep.subr.mxu0 0.0
    %601 = vmatpush1.msra.mxu0 0.0
    %602 = vmatprep.subr.mxu0 0.0
    %603 = vmatpush1.msra.mxu0 0.0
    %604 = vmatprep.subr.mxu0 0.0
    %605 = vmatpush1.msra.mxu0 0.0
    %606 = vmatprep.subr.mxu0 0.0
    %607 = vmatpush1.msra.mxu0 0.0
    %608 = vmatprep.subr.mxu0 0.0
    %609 = vmatpush1.msra.mxu0 0.0
    %610 = vmatprep.subr.mxu0 0.0
    %611 = vmatpush1.msra.mxu0 0.0
    %612 = vmatprep.subr.mxu0 0.0
    %613 = vmatpush1.msra.mxu0 0.0
    %614 = vmatprep.subr.mxu0 0.0
    %615 = vmatpush1.msra.mxu0 0.0
    %616 = vmatprep.subr.mxu0 0.0
    %617 = vmatpush1.msra.mxu0 0.0
    %618 = vmatprep.subr.mxu0 0.0
    %619 = vmatpush1.msra.mxu0 0.0
    %620 = vmatprep.subr.mxu0 0.0
    %621 = vmatpush1.msra.mxu0 0.0
    %622 = vmatprep.subr.mxu0 0.0
    %623 = vmatpush1.msra.mxu0 0.0
    %624 = vmatprep.subr.mxu0 0.0
    %625 = vmatpush1.msra.mxu0 0.0
    %626 = vmatprep.subr.mxu0 0.0
    %627 = vmatpush1.msra.mxu0 0.0
    %628 = vmatprep.subr.mxu0 0.0
    %629 = vmatpush1.msra.mxu0 0.0
    %630 = vmatprep.subr.mxu0 0.0
    %631 = vmatpush1.msra.mxu0 0.0
    %632 = vmatprep.subr.mxu0 0.0
    %633 = vmatpush1.msra.mxu0 0.0
    %634 = vmatprep.subr.mxu0 0.0
    %635 = vmatpush1.msra.mxu0 0.0
    %636 = vmatprep.subr.mxu0 0.0
    %637 = vmatpush1.msra.mxu0 0.0
    %638 = vmatprep.subr.mxu0 0.0
    %639 = vmatpush1.msra.mxu0 0.0
    %640 = vmatprep.subr.mxu0 0.0
    %641 = vmatpush1.msra.mxu0 0.0
    %642 = vmatprep.subr.mxu0 0.0
    %643 = vmatpush1.msra.mxu0 0.0
    %644 = vmatprep.mubr.f32.mxu0 0.0
    %645 = vmatmul.mubr.f32.gmra.mrb[0].mxu0 %v387
    %v646 = vpop.f32.mrb[0].mxu0
    %v647 = vadd.f32 0.0, %v646
    %v648 = vpop.f32.mrb[0].mxu0
    %649 = vmatprep.mubr.f32.mxu0 0.0
    %650 = vmatmul.mubr.f32.gmra.mrb[0].mxu0 %v390
    %v651 = vpop.f32.mrb[0].mxu0
    %v652 = vadd.f32 0.0, %v651
    %v653 = vpop.f32.mrb[0].mxu0
    %654 = vmatprep.mubr.f32.mxu0 0.0
    %655 = vmatmul.mubr.f32.gmra.mrb[0].mxu0 %v393
    %v656 = vpop.f32.mrb[0].mxu0
    %v657 = vadd.f32 0.0, %v656
    %v658 = vpop.f32.mrb[0].mxu0
    %659 = vmatprep.mubr.f32.mxu0 0.0
    %660 = vmatmul.mubr.f32.gmra.mrb[0].mxu0 %v396
    %v661 = vpop.f32.mrb[0].mxu0
    %v662 = vadd.f32 0.0, %v661
    %v663 = vpop.f32.mrb[0].mxu0
    %664 = vdwg.mxu0
    %v665 = vsub.f32 %v647, %v568
    %v666 = vsub.f32 %v652, %v569
    %v667 = vsub.f32 %v657, %v570
    %v668 = vsub.f32 %v662, %v571
    %v669 = vmul.f32 %v568, 2.0
    %v670 = vmul.f32 %v569, 2.0
    %v671 = vmul.f32 %v570, 2.0
    %v672 = vmul.f32 %v571, 2.0
    %v673 = vadd.f32 %v669, 0.0001
    %v674 = vadd.f32 %v670, 0.0001
    %v675 = vadd.f32 %v671, 0.0001
    %v676 = vadd.f32 %v672, 0.0001
    %v677 = vmul.f32 %v665, 2.0
    %v678 = vmul.f32 %v666, 2.0
    %v679 = vmul.f32 %v667, 2.0
    %v680 = vmul.f32 %v668, 2.0
    %v681 = vadd.f32 %v677, 0.0009
    %v682 = vadd.f32 %v678, 0.0009
    %v683 = vadd.f32 %v679, 0.0009
    %v684 = vadd.f32 %v680, 0.0009
    %v685 = vmul.f32 %v673, %v681
    %v686 = vmul.f32 %v674, %v682
    %v687 = vmul.f32 %v675, %v683
    %v688 = vmul.f32 %v676, %v684
    %689 = vmatprep.subr.mxu0 0.0
    %690 = vmatpush1.msra.mxu0 %v327
    %691 = vmatprep.subr.mxu0 0.0
    %692 = vmatpush1.msra.mxu0 %v332
    %693 = vmatprep.subr.mxu0 0.0
    %694 = vmatpush1.msra.mxu0 %v337
    %695 = vmatprep.subr.mxu0 0.0
    %696 = vmatpush1.msra.mxu0 %v342
    %697 = vmatprep.subr.mxu0 0.0
    %698 = vmatpush1.msra.mxu0 0.0
    %699 = vmatprep.subr.mxu0 0.0
    %700 = vmatpush1.msra.mxu0 0.0
    %701 = vmatprep.subr.mxu0 0.0
    %702 = vmatpush1.msra.mxu0 0.0
    %703 = vmatprep.subr.mxu0 0.0
    %704 = vmatpush1.msra.mxu0 0.0
    %705 = vmatprep.subr.mxu0 0.0
    %706 = vmatpush1.msra.mxu0 0.0
    %707 = vmatprep.subr.mxu0 0.0
    %708 = vmatpush1.msra.mxu0 0.0
    %709 = vmatprep.subr.mxu0 0.0
    %710 = vmatpush1.msra.mxu0 0.0
    %711 = vmatprep.subr.mxu0 0.0
    %712 = vmatpush1.msra.mxu0 0.0
    %713 = vmatprep.subr.mxu0 0.0
    %714 = vmatpush1.msra.mxu0 0.0
    %715 = vmatprep.subr.mxu0 0.0
    %716 = vmatpush1.msra.mxu0 0.0
    %717 = vmatprep.subr.mxu0 0.0
    %718 = vmatpush1.msra.mxu0 0.0
    %719 = vmatprep.subr.mxu0 0.0
    %720 = vmatpush1.msra.mxu0 0.0
    %721 = vmatprep.subr.mxu0 0.0
    %722 = vmatpush1.msra.mxu0 0.0
    %723 = vmatprep.subr.mxu0 0.0
    %724 = vmatpush1.msra.mxu0 0.0
    %725 = vmatprep.subr.mxu0 0.0
    %726 = vmatpush1.msra.mxu0 0.0
    %727 = vmatprep.subr.mxu0 0.0
    %728 = vmatpush1.msra.mxu0 0.0
    %729 = vmatprep.subr.mxu0 0.0
    %730 = vmatpush1.msra.mxu0 0.0
    %731 = vmatprep.subr.mxu0 0.0
    %732 = vmatpush1.msra.mxu0 0.0
    %733 = vmatprep.subr.mxu0 0.0
    %734 = vmatpush1.msra.mxu0 0.0
    %735 = vmatprep.subr.mxu0 0.0
    %736 = vmatpush1.msra.mxu0 0.0
    %737 = vmatprep.subr.mxu0 0.0
    %738 = vmatpush1.msra.mxu0 0.0
    %739 = vmatprep.subr.mxu0 0.0
    %740 = vmatpush1.msra.mxu0 0.0
    %741 = vmatprep.subr.mxu0 0.0
    %742 = vmatpush1.msra.mxu0 0.0
    %743 = vmatprep.subr.mxu0 0.0
    %744 = vmatpush1.msra.mxu0 0.0
    %745 = vmatprep.subr.mxu0 0.0
    %746 = vmatpush1.msra.mxu0 0.0
    %747 = vmatprep.subr.mxu0 0.0
    %748 = vmatpush1.msra.mxu0 0.0
    %749 = vmatprep.subr.mxu0 0.0
    %750 = vmatpush1.msra.mxu0 0.0
    %751 = vmatprep.subr.mxu0 0.0
    %752 = vmatpush1.msra.mxu0 0.0
    %753 = vmatprep.mubr.f32.mxu0 0.0
    %754 = vmatmul.mubr.f32.gmra.mrb[0].mxu0 %v387
    %v755 = vpop.f32.mrb[0].mxu0
    %v756 = vadd.f32 0.0, %v755
    %v757 = vpop.f32.mrb[0].mxu0
    %758 = vmatprep.mubr.f32.mxu0 0.0
    %759 = vmatmul.mubr.f32.gmra.mrb[0].mxu0 %v390
    %v760 = vpop.f32.mrb[0].mxu0
    %v761 = vadd.f32 0.0, %v760
    %v762 = vpop.f32.mrb[0].mxu0
    %763 = vmatprep.mubr.f32.mxu0 0.0
    %764 = vmatmul.mubr.f32.gmra.mrb[0].mxu0 %v393
    %v765 = vpop.f32.mrb[0].mxu0
    %v766 = vadd.f32 0.0, %v765
    %v767 = vpop.f32.mrb[0].mxu0
    %768 = vmatprep.mubr.f32.mxu0 0.0
    %769 = vmatmul.mubr.f32.gmra.mrb[0].mxu0 %v396
    %v770 = vpop.f32.mrb[0].mxu0
    %v771 = vadd.f32 0.0, %v770
    %v772 = vpop.f32.mrb[0].mxu0
    %773 = vdwg.mxu0
    %v774 = vsub.f32 %v756, %v572
    %v775 = vsub.f32 %v761, %v573
    %v776 = vsub.f32 %v766, %v574
    %v777 = vsub.f32 %v771, %v575
    %778 = vmatprep.subr.mxu0 0.0
    %779 = vmatpush1.msra.mxu0 %v347
    %780 = vmatprep.subr.mxu0 0.0
    %781 = vmatpush1.msra.mxu0 %v352
    %782 = vmatprep.subr.mxu0 0.0
    %783 = vmatpush1.msra.mxu0 %v357
    %784 = vmatprep.subr.mxu0 0.0
    %785 = vmatpush1.msra.mxu0 %v362
    %786 = vmatprep.subr.mxu0 0.0
    %787 = vmatpush1.msra.mxu0 0.0
    %788 = vmatprep.subr.mxu0 0.0
    %789 = vmatpush1.msra.mxu0 0.0
    %790 = vmatprep.subr.mxu0 0.0
    %791 = vmatpush1.msra.mxu0 0.0
    %792 = vmatprep.subr.mxu0 0.0
    %793 = vmatpush1.msra.mxu0 0.0
    %794 = vmatprep.subr.mxu0 0.0
    %795 = vmatpush1.msra.mxu0 0.0
    %796 = vmatprep.subr.mxu0 0.0
    %797 = vmatpush1.msra.mxu0 0.0
    %798 = vmatprep.subr.mxu0 0.0
    %799 = vmatpush1.msra.mxu0 0.0
    %800 = vmatprep.subr.mxu0 0.0
    %801 = vmatpush1.msra.mxu0 0.0
    %802 = vmatprep.subr.mxu0 0.0
    %803 = vmatpush1.msra.mxu0 0.0
    %804 = vmatprep.subr.mxu0 0.0
    %805 = vmatpush1.msra.mxu0 0.0
    %806 = vmatprep.subr.mxu0 0.0
    %807 = vmatpush1.msra.mxu0 0.0
    %808 = vmatprep.subr.mxu0 0.0
    %809 = vmatpush1.msra.mxu0 0.0
    %810 = vmatprep.subr.mxu0 0.0
    %811 = vmatpush1.msra.mxu0 0.0
    %812 = vmatprep.subr.mxu0 0.0
    %813 = vmatpush1.msra.mxu0 0.0
    %814 = vmatprep.subr.mxu0 0.0
    %815 = vmatpush1.msra.mxu0 0.0
    %816 = vmatprep.subr.mxu0 0.0
    %817 = vmatpush1.msra.mxu0 0.0
    %818 = vmatprep.subr.mxu0 0.0
    %819 = vmatpush1.msra.mxu0 0.0
    %820 = vmatprep.subr.mxu0 0.0
    %821 = vmatpush1.msra.mxu0 0.0
    %822 = vmatprep.subr.mxu0 0.0
    %823 = vmatpush1.msra.mxu0 0.0
    %824 = vmatprep.subr.mxu0 0.0
    %825 = vmatpush1.msra.mxu0 0.0
    %826 = vmatprep.subr.mxu0 0.0
    %827 = vmatpush1.msra.mxu0 0.0
    %828 = vmatprep.subr.mxu0 0.0
    %829 = vmatpush1.msra.mxu0 0.0
    %830 = vmatprep.subr.mxu0 0.0
    %831 = vmatpush1.msra.mxu0 0.0
    %832 = vmatprep.subr.mxu0 0.0
    %833 = vmatpush1.msra.mxu0 0.0
    %834 = vmatprep.subr.mxu0 0.0
    %835 = vmatpush1.msra.mxu0 0.0
    %836 = vmatprep.subr.mxu0 0.0
    %837 = vmatpush1.msra.mxu0 0.0
    %838 = vmatprep.subr.mxu0 0.0
    %839 = vmatpush1.msra.mxu0 0.0
    %840 = vmatprep.subr.mxu0 0.0
    %841 = vmatpush1.msra.mxu0 0.0
    %842 = vmatprep.mubr.f32.mxu0 0.0
    %843 = vmatmul.mubr.f32.gmra.mrb[0].mxu0 %v387
    %v844 = vpop.f32.mrb[0].mxu0
    %v845 = vadd.f32 0.0, %v844
    %v846 = vpop.f32.mrb[0].mxu0
    %847 = vmatprep.mubr.f32.mxu0 0.0
    %848 = vmatmul.mubr.f32.gmra.mrb[0].mxu0 %v390
    %v849 = vpop.f32.mrb[0].mxu0
    %v850 = vadd.f32 0.0, %v849
    %v851 = vpop.f32.mrb[0].mxu0
    %852 = vmatprep.mubr.f32.mxu0 0.0
    %853 = vmatmul.mubr.f32.gmra.mrb[0].mxu0 %v393
    %v854 = vpop.f32.mrb[0].mxu0
    %v855 = vadd.f32 0.0, %v854
    %v856 = vpop.f32.mrb[0].mxu0
    %857 = vmatprep.mubr.f32.mxu0 0.0
    %858 = vmatmul.mubr.f32.gmra.mrb[0].mxu0 %v396
    %v859 = vpop.f32.mrb[0].mxu0
    %v860 = vadd.f32 0.0, %v859
    %v861 = vpop.f32.mrb[0].mxu0
    %862 = vdwg.mxu0
    %v863 = vsub.f32 %v845, %v576
    %v864 = vsub.f32 %v850, %v577
    %v865 = vsub.f32 %v855, %v578
    %v866 = vsub.f32 %v860, %v579
    %v867 = vadd.f32 %v572, %v576
    %v868 = vadd.f32 %v573, %v577
    %v869 = vadd.f32 %v574, %v578
    %v870 = vadd.f32 %v575, %v579
    %v871 = vadd.f32 %v867, 0.0001
    %v872 = vadd.f32 %v868, 0.0001
    %v873 = vadd.f32 %v869, 0.0001
    %v874 = vadd.f32 %v870, 0.0001
    %v875 = vadd.f32 %v774, %v863
    %v876 = vadd.f32 %v775, %v864
    %v877 = vadd.f32 %v776, %v865
    %v878 = vadd.f32 %v777, %v866
    %v879 = vadd.f32 %v875, 0.0009
    %v880 = vadd.f32 %v876, 0.0009
    %v881 = vadd.f32 %v877, 0.0009
    %v882 = vadd.f32 %v878, 0.0009
    %v883 = vmul.f32 %v871, %v879
    %v884 = vmul.f32 %v872, %v880
    %v885 = vmul.f32 %v873, %v881
    %v886 = vmul.f32 %v874, %v882
    %v887 = vrcp.pop %v883
    %v888 = vrcp.pop %v884
    %v889 = vrcp.pop %v885
    %v890 = vrcp.pop %v886
    %v891 = vmul.f32 %v883, %v887
    %v892 = vmul.f32 %v884, %v888
    %v893 = vmul.f32 %v885, %v889
    %v894 = vmul.f32 %v886, %v890
    %v895 = vsub.f32 2.0, %v891
    %v896 = vsub.f32 2.0, %v892
    %v897 = vsub.f32 2.0, %v893
    %v898 = vsub.f32 2.0, %v894
    %v899 = vmul.f32 %v887, %v895
    %v900 = vmul.f32 %v888, %v896
    %v901 = vmul.f32 %v889, %v897
    %v902 = vmul.f32 %v890, %v898
    %v903 = vmul.f32 %v685, %v899
    %v904 = vmul.f32 %v686, %v900
    %v905 = vmul.f32 %v687, %v901
    %v906 = vmul.f32 %v688, %v902
    %v907 = vsel %vm111, %v903, 0.0
    %v908 = vsel %vm111, %v904, 0.0
    %v909 = vadd.f32 %v907, %v908
    %v910 = vsel %vm111, %v905, 0.0
    %v911 = vadd.f32 %v909, %v910
    %v912 = vsel %vm111, %v906, 0.0
    %v913 = vadd.f32 %v911, %v912
    %914 = vadd.xlane.f32.xlu0 %v913
    %v915 = vpop.xlane.xlu0 %914
    %v916 = vrot.slane %v915, 4
    %v917 = vadd.f32 %v915, %v916
    %v918 = vrot.slane %v917, 2
    %v919 = vadd.f32 %v917, %v918
    %v920 = vrot.slane %v919, 1
    %v921 = vadd.f32 %v919, %v920
    %s922 = vtos %v921
    %923 = vmatprep.subr.mxu0 0.0
    %924 = vmatpush1.msra.mxu0 %v98
    %925 = vmatprep.subr.mxu0 0.0
    %926 = vmatpush1.msra.mxu0 %v99
    %927 = vmatprep.subr.mxu0 0.0
    %928 = vmatpush1.msra.mxu0 0.0
    %929 = vmatprep.subr.mxu0 0.0
    %930 = vmatpush1.msra.mxu0 0.0
    %931 = vmatprep.subr.mxu0 0.0
    %932 = vmatpush1.msra.mxu0 0.0
    %933 = vmatprep.subr.mxu0 0.0
    %934 = vmatpush1.msra.mxu0 0.0
    %935 = vmatprep.subr.mxu0 0.0
    %936 = vmatpush1.msra.mxu0 0.0
    %937 = vmatprep.subr.mxu0 0.0
    %938 = vmatpush1.msra.mxu0 0.0
    %939 = vmatprep.subr.mxu0 0.0
    %940 = vmatpush1.msra.mxu0 0.0
    %941 = vmatprep.subr.mxu0 0.0
    %942 = vmatpush1.msra.mxu0 0.0
    %943 = vmatprep.subr.mxu0 0.0
    %944 = vmatpush1.msra.mxu0 0.0
    %945 = vmatprep.subr.mxu0 0.0
    %946 = vmatpush1.msra.mxu0 0.0
    %947 = vmatprep.subr.mxu0 0.0
    %948 = vmatpush1.msra.mxu0 0.0
    %949 = vmatprep.subr.mxu0 0.0
    %950 = vmatpush1.msra.mxu0 0.0
    %951 = vmatprep.subr.mxu0 0.0
    %952 = vmatpush1.msra.mxu0 0.0
    %953 = vmatprep.subr.mxu0 0.0
    %954 = vmatpush1.msra.mxu0 0.0
    %955 = vmatprep.subr.mxu0 0.0
    %956 = vmatpush1.msra.mxu0 0.0
    %957 = vmatprep.subr.mxu0 0.0
    %958 = vmatpush1.msra.mxu0 0.0
    %959 = vmatprep.subr.mxu0 0.0
    %960 = vmatpush1.msra.mxu0 0.0
    %961 = vmatprep.subr.mxu0 0.0
    %962 = vmatpush1.msra.mxu0 0.0
    %963 = vmatprep.subr.mxu0 0.0
    %964 = vmatpush1.msra.mxu0 0.0
    %965 = vmatprep.subr.mxu0 0.0
    %966 = vmatpush1.msra.mxu0 0.0
    %967 = vmatprep.subr.mxu0 0.0
    %968 = vmatpush1.msra.mxu0 0.0
    %969 = vmatprep.subr.mxu0 0.0
    %970 = vmatpush1.msra.mxu0 0.0
    %971 = vmatprep.subr.mxu0 0.0
    %972 = vmatpush1.msra.mxu0 0.0
    %973 = vmatprep.subr.mxu0 0.0
    %974 = vmatpush1.msra.mxu0 0.0
    %975 = vmatprep.subr.mxu0 0.0
    %976 = vmatpush1.msra.mxu0 0.0
    %977 = vmatprep.subr.mxu0 0.0
    %978 = vmatpush1.msra.mxu0 0.0
    %979 = vmatprep.subr.mxu0 0.0
    %980 = vmatpush1.msra.mxu0 0.0
    %981 = vmatprep.subr.mxu0 0.0
    %982 = vmatpush1.msra.mxu0 0.0
    %983 = vmatprep.subr.mxu0 0.0
    %984 = vmatpush1.msra.mxu0 0.0
    %985 = vmatprep.subr.mxu0 0.0
    %986 = vmatpush1.msra.mxu0 0.0
    %987 = vmatprep.mubr.f32.mxu0 0.0
    %988 = vmatmul.mubr.f32.gmra.mrb[0].mxu0 %v161
    %v989 = vpop.f32.mrb[0].mxu0
    %v990 = vadd.f32 0.0, %v989
    %v991 = vpop.f32.mrb[0].mxu0
    %992 = vmatprep.mubr.f32.mxu0 0.0
    %993 = vmatmul.mubr.f32.gmra.mrb[0].mxu0 %v164
    %v994 = vpop.f32.mrb[0].mxu0
    %v995 = vadd.f32 0.0, %v994
    %v996 = vpop.f32.mrb[0].mxu0
    %997 = vmatprep.mubr.f32.mxu0 0.0
    %998 = vmatmul.mubr.f32.gmra.mrb[0].mxu0 %v167
    %v999 = vpop.f32.mrb[0].mxu0
    %v1000 = vadd.f32 0.0, %v999
    %v1001 = vpop.f32.mrb[0].mxu0
    %1002 = vmatprep.mubr.f32.mxu0 0.0
    %1003 = vmatmul.mubr.f32.gmra.mrb[0].mxu0 %v170
    %v1004 = vpop.f32.mrb[0].mxu0
    %v1005 = vadd.f32 0.0, %v1004
    %v1006 = vpop.f32.mrb[0].mxu0
    %1007 = vmatprep.mubr.f32.mxu0 0.0
    %1008 = vmatmul.mubr.f32.gmra.mrb[0].mxu0 %v173
    %v1009 = vpop.f32.mrb[0].mxu0
    %v1010 = vadd.f32 0.0, %v1009
    %v1011 = vpop.f32.mrb[0].mxu0
    %1012 = vmatprep.mubr.f32.mxu0 0.0
    %1013 = vmatmul.mubr.f32.gmra.mrb[0].mxu0 %v176
    %v1014 = vpop.f32.mrb[0].mxu0
    %v1015 = vadd.f32 0.0, %v1014
    %v1016 = vpop.f32.mrb[0].mxu0
    %1017 = vmatprep.mubr.f32.mxu0 0.0
    %1018 = vmatmul.mubr.f32.gmra.mrb[0].mxu0 %v179
    %v1019 = vpop.f32.mrb[0].mxu0
    %v1020 = vadd.f32 0.0, %v1019
    %v1021 = vpop.f32.mrb[0].mxu0
    %1022 = vmatprep.mubr.f32.mxu0 0.0
    %1023 = vmatmul.mubr.f32.gmra.mrb[0].mxu0 %v182
    %v1024 = vpop.f32.mrb[0].mxu0
    %v1025 = vadd.f32 0.0, %v1024
    %v1026 = vpop.f32.mrb[0].mxu0
    %1027 = vdwg.mxu0
    %1028 = vmatprep.subr.mxu0 0.0
    %1029 = vmatpush1.msra.mxu0 %v101
    %1030 = vmatprep.subr.mxu0 0.0
    %1031 = vmatpush1.msra.mxu0 %v102
    %1032 = vmatprep.subr.mxu0 0.0
    %1033 = vmatpush1.msra.mxu0 0.0
    %1034 = vmatprep.subr.mxu0 0.0
    %1035 = vmatpush1.msra.mxu0 0.0
    %1036 = vmatprep.subr.mxu0 0.0
    %1037 = vmatpush1.msra.mxu0 0.0
    %1038 = vmatprep.subr.mxu0 0.0
    %1039 = vmatpush1.msra.mxu0 0.0
    %1040 = vmatprep.subr.mxu0 0.0
    %1041 = vmatpush1.msra.mxu0 0.0
    %1042 = vmatprep.subr.mxu0 0.0
    %1043 = vmatpush1.msra.mxu0 0.0
    %1044 = vmatprep.subr.mxu0 0.0
    %1045 = vmatpush1.msra.mxu0 0.0
    %1046 = vmatprep.subr.mxu0 0.0
    %1047 = vmatpush1.msra.mxu0 0.0
    %1048 = vmatprep.subr.mxu0 0.0
    %1049 = vmatpush1.msra.mxu0 0.0
    %1050 = vmatprep.subr.mxu0 0.0
    %1051 = vmatpush1.msra.mxu0 0.0
    %1052 = vmatprep.subr.mxu0 0.0
    %1053 = vmatpush1.msra.mxu0 0.0
    %1054 = vmatprep.subr.mxu0 0.0
    %1055 = vmatpush1.msra.mxu0 0.0
    %1056 = vmatprep.subr.mxu0 0.0
    %1057 = vmatpush1.msra.mxu0 0.0
    %1058 = vmatprep.subr.mxu0 0.0
    %1059 = vmatpush1.msra.mxu0 0.0
    %1060 = vmatprep.subr.mxu0 0.0
    %1061 = vmatpush1.msra.mxu0 0.0
    %1062 = vmatprep.subr.mxu0 0.0
    %1063 = vmatpush1.msra.mxu0 0.0
    %1064 = vmatprep.subr.mxu0 0.0
    %1065 = vmatpush1.msra.mxu0 0.0
    %1066 = vmatprep.subr.mxu0 0.0
    %1067 = vmatpush1.msra.mxu0 0.0
    %1068 = vmatprep.subr.mxu0 0.0
    %1069 = vmatpush1.msra.mxu0 0.0
    %1070 = vmatprep.subr.mxu0 0.0
    %1071 = vmatpush1.msra.mxu0 0.0
    %1072 = vmatprep.subr.mxu0 0.0
    %1073 = vmatpush1.msra.mxu0 0.0
    %1074 = vmatprep.subr.mxu0 0.0
    %1075 = vmatpush1.msra.mxu0 0.0
    %1076 = vmatprep.subr.mxu0 0.0
    %1077 = vmatpush1.msra.mxu0 0.0
    %1078 = vmatprep.subr.mxu0 0.0
    %1079 = vmatpush1.msra.mxu0 0.0
    %1080 = vmatprep.subr.mxu0 0.0
    %1081 = vmatpush1.msra.mxu0 0.0
    %1082 = vmatprep.subr.mxu0 0.0
    %1083 = vmatpush1.msra.mxu0 0.0
    %1084 = vmatprep.subr.mxu0 0.0
    %1085 = vmatpush1.msra.mxu0 0.0
    %1086 = vmatprep.subr.mxu0 0.0
    %1087 = vmatpush1.msra.mxu0 0.0
    %1088 = vmatprep.subr.mxu0 0.0
    %1089 = vmatpush1.msra.mxu0 0.0
    %1090 = vmatprep.subr.mxu0 0.0
    %1091 = vmatpush1.msra.mxu0 0.0
    %1092 = vmatprep.mubr.f32.mxu0 0.0
    %1093 = vmatmul.mubr.f32.gmra.mrb[0].mxu0 %v161
    %v1094 = vpop.f32.mrb[0].mxu0
    %v1095 = vadd.f32 0.0, %v1094
    %v1096 = vpop.f32.mrb[0].mxu0
    %1097 = vmatprep.mubr.f32.mxu0 0.0
    %1098 = vmatmul.mubr.f32.gmra.mrb[0].mxu0 %v164
    %v1099 = vpop.f32.mrb[0].mxu0
    %v1100 = vadd.f32 0.0, %v1099
    %v1101 = vpop.f32.mrb[0].mxu0
    %1102 = vmatprep.mubr.f32.mxu0 0.0
    %1103 = vmatmul.mubr.f32.gmra.mrb[0].mxu0 %v167
    %v1104 = vpop.f32.mrb[0].mxu0
    %v1105 = vadd.f32 0.0, %v1104
    %v1106 = vpop.f32.mrb[0].mxu0
    %1107 = vmatprep.mubr.f32.mxu0 0.0
    %1108 = vmatmul.mubr.f32.gmra.mrb[0].mxu0 %v170
    %v1109 = vpop.f32.mrb[0].mxu0
    %v1110 = vadd.f32 0.0, %v1109
    %v1111 = vpop.f32.mrb[0].mxu0
    %1112 = vmatprep.mubr.f32.mxu0 0.0
    %1113 = vmatmul.mubr.f32.gmra.mrb[0].mxu0 %v173
    %v1114 = vpop.f32.mrb[0].mxu0
    %v1115 = vadd.f32 0.0, %v1114
    %v1116 = vpop.f32.mrb[0].mxu0
    %1117 = vmatprep.mubr.f32.mxu0 0.0
    %1118 = vmatmul.mubr.f32.gmra.mrb[0].mxu0 %v176
    %v1119 = vpop.f32.mrb[0].mxu0
    %v1120 = vadd.f32 0.0, %v1119
    %v1121 = vpop.f32.mrb[0].mxu0
    %1122 = vmatprep.mubr.f32.mxu0 0.0
    %1123 = vmatmul.mubr.f32.gmra.mrb[0].mxu0 %v179
    %v1124 = vpop.f32.mrb[0].mxu0
    %v1125 = vadd.f32 0.0, %v1124
    %v1126 = vpop.f32.mrb[0].mxu0
    %1127 = vmatprep.mubr.f32.mxu0 0.0
    %1128 = vmatmul.mubr.f32.gmra.mrb[0].mxu0 %v182
    %v1129 = vpop.f32.mrb[0].mxu0
    %v1130 = vadd.f32 0.0, %v1129
    %v1131 = vpop.f32.mrb[0].mxu0
    %1132 = vdwg.mxu0
    %v1134 = vsel %vm385, %v86, 0
    %v1137 = vsel %vm385, %v87, 0
    %v1140 = vsel %vm385, %v88, 0
    %v1143 = vsel %vm385, %v89, 0
    %1145 = vmatprep.subr.mxu0 0.0
    %1146 = vmatpush1.msra.mxu0 %v990
    %1147 = vmatprep.subr.mxu0 0.0
    %1148 = vmatpush1.msra.mxu0 %v995
    %1149 = vmatprep.subr.mxu0 0.0
    %1150 = vmatpush1.msra.mxu0 %v1000
    %1151 = vmatprep.subr.mxu0 0.0
    %1152 = vmatpush1.msra.mxu0 %v1005
    %1153 = vmatprep.subr.mxu0 0.0
    %1154 = vmatpush1.msra.mxu0 0.0
    %1155 = vmatprep.subr.mxu0 0.0
    %1156 = vmatpush1.msra.mxu0 0.0
    %1157 = vmatprep.subr.mxu0 0.0
    %1158 = vmatpush1.msra.mxu0 0.0
    %1159 = vmatprep.subr.mxu0 0.0
    %1160 = vmatpush1.msra.mxu0 0.0
    %1161 = vmatprep.subr.mxu0 0.0
    %1162 = vmatpush1.msra.mxu0 0.0
    %1163 = vmatprep.subr.mxu0 0.0
    %1164 = vmatpush1.msra.mxu0 0.0
    %1165 = vmatprep.subr.mxu0 0.0
    %1166 = vmatpush1.msra.mxu0 0.0
    %1167 = vmatprep.subr.mxu0 0.0
    %1168 = vmatpush1.msra.mxu0 0.0
    %1169 = vmatprep.subr.mxu0 0.0
    %1170 = vmatpush1.msra.mxu0 0.0
    %1171 = vmatprep.subr.mxu0 0.0
    %1172 = vmatpush1.msra.mxu0 0.0
    %1173 = vmatprep.subr.mxu0 0.0
    %1174 = vmatpush1.msra.mxu0 0.0
    %1175 = vmatprep.subr.mxu0 0.0
    %1176 = vmatpush1.msra.mxu0 0.0
    %1177 = vmatprep.subr.mxu0 0.0
    %1178 = vmatpush1.msra.mxu0 0.0
    %1179 = vmatprep.subr.mxu0 0.0
    %1180 = vmatpush1.msra.mxu0 0.0
    %1181 = vmatprep.subr.mxu0 0.0
    %1182 = vmatpush1.msra.mxu0 0.0
    %1183 = vmatprep.subr.mxu0 0.0
    %1184 = vmatpush1.msra.mxu0 0.0
    %1185 = vmatprep.subr.mxu0 0.0
    %1186 = vmatpush1.msra.mxu0 0.0
    %1187 = vmatprep.subr.mxu0 0.0
    %1188 = vmatpush1.msra.mxu0 0.0
    %1189 = vmatprep.subr.mxu0 0.0
    %1190 = vmatpush1.msra.mxu0 0.0
    %1191 = vmatprep.subr.mxu0 0.0
    %1192 = vmatpush1.msra.mxu0 0.0
    %1193 = vmatprep.subr.mxu0 0.0
    %1194 = vmatpush1.msra.mxu0 0.0
    %1195 = vmatprep.subr.mxu0 0.0
    %1196 = vmatpush1.msra.mxu0 0.0
    %1197 = vmatprep.subr.mxu0 0.0
    %1198 = vmatpush1.msra.mxu0 0.0
    %1199 = vmatprep.subr.mxu0 0.0
    %1200 = vmatpush1.msra.mxu0 0.0
    %1201 = vmatprep.subr.mxu0 0.0
    %1202 = vmatpush1.msra.mxu0 0.0
    %1203 = vmatprep.subr.mxu0 0.0
    %1204 = vmatpush1.msra.mxu0 0.0
    %1205 = vmatprep.subr.mxu0 0.0
    %1206 = vmatpush1.msra.mxu0 0.0
    %1207 = vmatprep.subr.mxu0 0.0
    %1208 = vmatpush1.msra.mxu0 0.0
    %1209 = vmatprep.mubr.f32.mxu0 0.0
    %1210 = vmatmul.mubr.f32.gmra.mrb[0].mxu0 %v1134
    %v1211 = vpop.f32.mrb[0].mxu0
    %v1212 = vadd.f32 0.0, %v1211
    %v1213 = vpop.f32.mrb[0].mxu0
    %1214 = vmatprep.mubr.f32.mxu0 0.0
    %1215 = vmatmul.mubr.f32.gmra.mrb[0].mxu0 %v1137
    %v1216 = vpop.f32.mrb[0].mxu0
    %v1217 = vadd.f32 0.0, %v1216
    %v1218 = vpop.f32.mrb[0].mxu0
    %1219 = vmatprep.mubr.f32.mxu0 0.0
    %1220 = vmatmul.mubr.f32.gmra.mrb[0].mxu0 %v1140
    %v1221 = vpop.f32.mrb[0].mxu0
    %v1222 = vadd.f32 0.0, %v1221
    %v1223 = vpop.f32.mrb[0].mxu0
    %1224 = vmatprep.mubr.f32.mxu0 0.0
    %1225 = vmatmul.mubr.f32.gmra.mrb[0].mxu0 %v1143
    %v1226 = vpop.f32.mrb[0].mxu0
    %v1227 = vadd.f32 0.0, %v1226
    %v1228 = vpop.f32.mrb[0].mxu0
    %1229 = vdwg.mxu0
    %1230 = vmatprep.subr.mxu0 0.0
    %1231 = vmatpush1.msra.mxu0 %v1010
    %1232 = vmatprep.subr.mxu0 0.0
    %1233 = vmatpush1.msra.mxu0 %v1015
    %1234 = vmatprep.subr.mxu0 0.0
    %1235 = vmatpush1.msra.mxu0 %v1020
    %1236 = vmatprep.subr.mxu0 0.0
    %1237 = vmatpush1.msra.mxu0 %v1025
    %1238 = vmatprep.subr.mxu0 0.0
    %1239 = vmatpush1.msra.mxu0 0.0
    %1240 = vmatprep.subr.mxu0 0.0
    %1241 = vmatpush1.msra.mxu0 0.0
    %1242 = vmatprep.subr.mxu0 0.0
    %1243 = vmatpush1.msra.mxu0 0.0
    %1244 = vmatprep.subr.mxu0 0.0
    %1245 = vmatpush1.msra.mxu0 0.0
    %1246 = vmatprep.subr.mxu0 0.0
    %1247 = vmatpush1.msra.mxu0 0.0
    %1248 = vmatprep.subr.mxu0 0.0
    %1249 = vmatpush1.msra.mxu0 0.0
    %1250 = vmatprep.subr.mxu0 0.0
    %1251 = vmatpush1.msra.mxu0 0.0
    %1252 = vmatprep.subr.mxu0 0.0
    %1253 = vmatpush1.msra.mxu0 0.0
    %1254 = vmatprep.subr.mxu0 0.0
    %1255 = vmatpush1.msra.mxu0 0.0
    %1256 = vmatprep.subr.mxu0 0.0
    %1257 = vmatpush1.msra.mxu0 0.0
    %1258 = vmatprep.subr.mxu0 0.0
    %1259 = vmatpush1.msra.mxu0 0.0
    %1260 = vmatprep.subr.mxu0 0.0
    %1261 = vmatpush1.msra.mxu0 0.0
    %1262 = vmatprep.subr.mxu0 0.0
    %1263 = vmatpush1.msra.mxu0 0.0
    %1264 = vmatprep.subr.mxu0 0.0
    %1265 = vmatpush1.msra.mxu0 0.0
    %1266 = vmatprep.subr.mxu0 0.0
    %1267 = vmatpush1.msra.mxu0 0.0
    %1268 = vmatprep.subr.mxu0 0.0
    %1269 = vmatpush1.msra.mxu0 0.0
    %1270 = vmatprep.subr.mxu0 0.0
    %1271 = vmatpush1.msra.mxu0 0.0
    %1272 = vmatprep.subr.mxu0 0.0
    %1273 = vmatpush1.msra.mxu0 0.0
    %1274 = vmatprep.subr.mxu0 0.0
    %1275 = vmatpush1.msra.mxu0 0.0
    %1276 = vmatprep.subr.mxu0 0.0
    %1277 = vmatpush1.msra.mxu0 0.0
    %1278 = vmatprep.subr.mxu0 0.0
    %1279 = vmatpush1.msra.mxu0 0.0
    %1280 = vmatprep.subr.mxu0 0.0
    %1281 = vmatpush1.msra.mxu0 0.0
    %1282 = vmatprep.subr.mxu0 0.0
    %1283 = vmatpush1.msra.mxu0 0.0
    %1284 = vmatprep.subr.mxu0 0.0
    %1285 = vmatpush1.msra.mxu0 0.0
    %1286 = vmatprep.subr.mxu0 0.0
    %1287 = vmatpush1.msra.mxu0 0.0
    %1288 = vmatprep.subr.mxu0 0.0
    %1289 = vmatpush1.msra.mxu0 0.0
    %1290 = vmatprep.subr.mxu0 0.0
    %1291 = vmatpush1.msra.mxu0 0.0
    %1292 = vmatprep.subr.mxu0 0.0
    %1293 = vmatpush1.msra.mxu0 0.0
    %1294 = vmatprep.mubr.f32.mxu0 0.0
    %1295 = vmatmul.mubr.f32.gmra.mrb[0].mxu0 %v1134
    %v1296 = vpop.f32.mrb[0].mxu0
    %v1297 = vadd.f32 0.0, %v1296
    %v1298 = vpop.f32.mrb[0].mxu0
    %1299 = vmatprep.mubr.f32.mxu0 0.0
    %1300 = vmatmul.mubr.f32.gmra.mrb[0].mxu0 %v1137
    %v1301 = vpop.f32.mrb[0].mxu0
    %v1302 = vadd.f32 0.0, %v1301
    %v1303 = vpop.f32.mrb[0].mxu0
    %1304 = vmatprep.mubr.f32.mxu0 0.0
    %1305 = vmatmul.mubr.f32.gmra.mrb[0].mxu0 %v1140
    %v1306 = vpop.f32.mrb[0].mxu0
    %v1307 = vadd.f32 0.0, %v1306
    %v1308 = vpop.f32.mrb[0].mxu0
    %1309 = vmatprep.mubr.f32.mxu0 0.0
    %1310 = vmatmul.mubr.f32.gmra.mrb[0].mxu0 %v1143
    %v1311 = vpop.f32.mrb[0].mxu0
    %v1312 = vadd.f32 0.0, %v1311
    %v1313 = vpop.f32.mrb[0].mxu0
    %1314 = vdwg.mxu0
    %v1316 = vsel %vm385, %v91, 0
    %v1319 = vsel %vm385, %v92, 0
    %v1322 = vsel %vm385, %v93, 0
    %v1325 = vsel %vm385, %v94, 0
    %1327 = vmatprep.subr.mxu0 0.0
    %1328 = vmatpush1.msra.mxu0 %v1095
    %1329 = vmatprep.subr.mxu0 0.0
    %1330 = vmatpush1.msra.mxu0 %v1100
    %1331 = vmatprep.subr.mxu0 0.0
    %1332 = vmatpush1.msra.mxu0 %v1105
    %1333 = vmatprep.subr.mxu0 0.0
    %1334 = vmatpush1.msra.mxu0 %v1110
    %1335 = vmatprep.subr.mxu0 0.0
    %1336 = vmatpush1.msra.mxu0 0.0
    %1337 = vmatprep.subr.mxu0 0.0
    %1338 = vmatpush1.msra.mxu0 0.0
    %1339 = vmatprep.subr.mxu0 0.0
    %1340 = vmatpush1.msra.mxu0 0.0
    %1341 = vmatprep.subr.mxu0 0.0
    %1342 = vmatpush1.msra.mxu0 0.0
    %1343 = vmatprep.subr.mxu0 0.0
    %1344 = vmatpush1.msra.mxu0 0.0
    %1345 = vmatprep.subr.mxu0 0.0
    %1346 = vmatpush1.msra.mxu0 0.0
    %1347 = vmatprep.subr.mxu0 0.0
    %1348 = vmatpush1.msra.mxu0 0.0
    %1349 = vmatprep.subr.mxu0 0.0
    %1350 = vmatpush1.msra.mxu0 0.0
    %1351 = vmatprep.subr.mxu0 0.0
    %1352 = vmatpush1.msra.mxu0 0.0
    %1353 = vmatprep.subr.mxu0 0.0
    %1354 = vmatpush1.msra.mxu0 0.0
    %1355 = vmatprep.subr.mxu0 0.0
    %1356 = vmatpush1.msra.mxu0 0.0
    %1357 = vmatprep.subr.mxu0 0.0
    %1358 = vmatpush1.msra.mxu0 0.0
    %1359 = vmatprep.subr.mxu0 0.0
    %1360 = vmatpush1.msra.mxu0 0.0
    %1361 = vmatprep.subr.mxu0 0.0
    %1362 = vmatpush1.msra.mxu0 0.0
    %1363 = vmatprep.subr.mxu0 0.0
    %1364 = vmatpush1.msra.mxu0 0.0
    %1365 = vmatprep.subr.mxu0 0.0
    %1366 = vmatpush1.msra.mxu0 0.0
    %1367 = vmatprep.subr.mxu0 0.0
    %1368 = vmatpush1.msra.mxu0 0.0
    %1369 = vmatprep.subr.mxu0 0.0
    %1370 = vmatpush1.msra.mxu0 0.0
    %1371 = vmatprep.subr.mxu0 0.0
    %1372 = vmatpush1.msra.mxu0 0.0
    %1373 = vmatprep.subr.mxu0 0.0
    %1374 = vmatpush1.msra.mxu0 0.0
    %1375 = vmatprep.subr.mxu0 0.0
    %1376 = vmatpush1.msra.mxu0 0.0
    %1377 = vmatprep.subr.mxu0 0.0
    %1378 = vmatpush1.msra.mxu0 0.0
    %1379 = vmatprep.subr.mxu0 0.0
    %1380 = vmatpush1.msra.mxu0 0.0
    %1381 = vmatprep.subr.mxu0 0.0
    %1382 = vmatpush1.msra.mxu0 0.0
    %1383 = vmatprep.subr.mxu0 0.0
    %1384 = vmatpush1.msra.mxu0 0.0
    %1385 = vmatprep.subr.mxu0 0.0
    %1386 = vmatpush1.msra.mxu0 0.0
    %1387 = vmatprep.subr.mxu0 0.0
    %1388 = vmatpush1.msra.mxu0 0.0
    %1389 = vmatprep.subr.mxu0 0.0
    %1390 = vmatpush1.msra.mxu0 0.0
    %1391 = vmatprep.mubr.f32.mxu0 0.0
    %1392 = vmatmul.mubr.f32.gmra.mrb[0].mxu0 %v1316
    %v1393 = vpop.f32.mrb[0].mxu0
    %v1394 = vadd.f32 0.0, %v1393
    %v1395 = vpop.f32.mrb[0].mxu0
    %1396 = vmatprep.mubr.f32.mxu0 0.0
    %1397 = vmatmul.mubr.f32.gmra.mrb[0].mxu0 %v1319
    %v1398 = vpop.f32.mrb[0].mxu0
    %v1399 = vadd.f32 0.0, %v1398
    %v1400 = vpop.f32.mrb[0].mxu0
    %1401 = vmatprep.mubr.f32.mxu0 0.0
    %1402 = vmatmul.mubr.f32.gmra.mrb[0].mxu0 %v1322
    %v1403 = vpop.f32.mrb[0].mxu0
    %v1404 = vadd.f32 0.0, %v1403
    %v1405 = vpop.f32.mrb[0].mxu0
    %1406 = vmatprep.mubr.f32.mxu0 0.0
    %1407 = vmatmul.mubr.f32.gmra.mrb[0].mxu0 %v1325
    %v1408 = vpop.f32.mrb[0].mxu0
    %v1409 = vadd.f32 0.0, %v1408
    %v1410 = vpop.f32.mrb[0].mxu0
    %1411 = vdwg.mxu0
    %1412 = vmatprep.subr.mxu0 0.0
    %1413 = vmatpush1.msra.mxu0 %v1115
    %1414 = vmatprep.subr.mxu0 0.0
    %1415 = vmatpush1.msra.mxu0 %v1120
    %1416 = vmatprep.subr.mxu0 0.0
    %1417 = vmatpush1.msra.mxu0 %v1125
    %1418 = vmatprep.subr.mxu0 0.0
    %1419 = vmatpush1.msra.mxu0 %v1130
    %1420 = vmatprep.subr.mxu0 0.0
    %1421 = vmatpush1.msra.mxu0 0.0
    %1422 = vmatprep.subr.mxu0 0.0
    %1423 = vmatpush1.msra.mxu0 0.0
    %1424 = vmatprep.subr.mxu0 0.0
    %1425 = vmatpush1.msra.mxu0 0.0
    %1426 = vmatprep.subr.mxu0 0.0
    %1427 = vmatpush1.msra.mxu0 0.0
    %1428 = vmatprep.subr.mxu0 0.0
    %1429 = vmatpush1.msra.mxu0 0.0
    %1430 = vmatprep.subr.mxu0 0.0
    %1431 = vmatpush1.msra.mxu0 0.0
    %1432 = vmatprep.subr.mxu0 0.0
    %1433 = vmatpush1.msra.mxu0 0.0
    %1434 = vmatprep.subr.mxu0 0.0
    %1435 = vmatpush1.msra.mxu0 0.0
    %1436 = vmatprep.subr.mxu0 0.0
    %1437 = vmatpush1.msra.mxu0 0.0
    %1438 = vmatprep.subr.mxu0 0.0
    %1439 = vmatpush1.msra.mxu0 0.0
    %1440 = vmatprep.subr.mxu0 0.0
    %1441 = vmatpush1.msra.mxu0 0.0
    %1442 = vmatprep.subr.mxu0 0.0
    %1443 = vmatpush1.msra.mxu0 0.0
    %1444 = vmatprep.subr.mxu0 0.0
    %1445 = vmatpush1.msra.mxu0 0.0
    %1446 = vmatprep.subr.mxu0 0.0
    %1447 = vmatpush1.msra.mxu0 0.0
    %1448 = vmatprep.subr.mxu0 0.0
    %1449 = vmatpush1.msra.mxu0 0.0
    %1450 = vmatprep.subr.mxu0 0.0
    %1451 = vmatpush1.msra.mxu0 0.0
    %1452 = vmatprep.subr.mxu0 0.0
    %1453 = vmatpush1.msra.mxu0 0.0
    %1454 = vmatprep.subr.mxu0 0.0
    %1455 = vmatpush1.msra.mxu0 0.0
    %1456 = vmatprep.subr.mxu0 0.0
    %1457 = vmatpush1.msra.mxu0 0.0
    %1458 = vmatprep.subr.mxu0 0.0
    %1459 = vmatpush1.msra.mxu0 0.0
    %1460 = vmatprep.subr.mxu0 0.0
    %1461 = vmatpush1.msra.mxu0 0.0
    %1462 = vmatprep.subr.mxu0 0.0
    %1463 = vmatpush1.msra.mxu0 0.0
    %1464 = vmatprep.subr.mxu0 0.0
    %1465 = vmatpush1.msra.mxu0 0.0
    %1466 = vmatprep.subr.mxu0 0.0
    %1467 = vmatpush1.msra.mxu0 0.0
    %1468 = vmatprep.subr.mxu0 0.0
    %1469 = vmatpush1.msra.mxu0 0.0
    %1470 = vmatprep.subr.mxu0 0.0
    %1471 = vmatpush1.msra.mxu0 0.0
    %1472 = vmatprep.subr.mxu0 0.0
    %1473 = vmatpush1.msra.mxu0 0.0
    %1474 = vmatprep.subr.mxu0 0.0
    %1475 = vmatpush1.msra.mxu0 0.0
    %1476 = vmatprep.mubr.f32.mxu0 0.0
    %1477 = vmatmul.mubr.f32.gmra.mrb[0].mxu0 %v1316
    %v1478 = vpop.f32.mrb[0].mxu0
    %v1479 = vadd.f32 0.0, %v1478
    %v1480 = vpop.f32.mrb[0].mxu0
    %1481 = vmatprep.mubr.f32.mxu0 0.0
    %1482 = vmatmul.mubr.f32.gmra.mrb[0].mxu0 %v1319
    %v1483 = vpop.f32.mrb[0].mxu0
    %v1484 = vadd.f32 0.0, %v1483
    %v1485 = vpop.f32.mrb[0].mxu0
    %1486 = vmatprep.mubr.f32.mxu0 0.0
    %1487 = vmatmul.mubr.f32.gmra.mrb[0].mxu0 %v1322
    %v1488 = vpop.f32.mrb[0].mxu0
    %v1489 = vadd.f32 0.0, %v1488
    %v1490 = vpop.f32.mrb[0].mxu0
    %1491 = vmatprep.mubr.f32.mxu0 0.0
    %1492 = vmatmul.mubr.f32.gmra.mrb[0].mxu0 %v1325
    %v1493 = vpop.f32.mrb[0].mxu0
    %v1494 = vadd.f32 0.0, %v1493
    %v1495 = vpop.f32.mrb[0].mxu0
    %1496 = vdwg.mxu0
    %v1497 = vmul.f32 %v1212, %v1212
    %v1498 = vmul.f32 %v1217, %v1217
    %v1499 = vmul.f32 %v1222, %v1222
    %v1500 = vmul.f32 %v1227, %v1227
    %v1501 = vmul.f32 %v1394, %v1394
    %v1502 = vmul.f32 %v1399, %v1399
    %v1503 = vmul.f32 %v1404, %v1404
    %v1504 = vmul.f32 %v1409, %v1409
    %v1505 = vadd.f32 %v1497, %v1501
    %v1506 = vadd.f32 %v1498, %v1502
    %v1507 = vadd.f32 %v1499, %v1503
    %v1508 = vadd.f32 %v1500, %v1504
    %v1509 = vadd.f32 %v1505, 1e-08
    %v1510 = vadd.f32 %v1506, 1e-08
    %v1511 = vadd.f32 %v1507, 1e-08
    %v1512 = vadd.f32 %v1508, 1e-08
    %v1513 = vrsqrt.pop %v1509
    %v1514 = vmul.f32 %v1509, %v1513
    %vm1515 = vcmp.eq.f32.partialorder %v1509, inf
    %v1516 = vsel %vm1515, %v1509, %v1514
    %vm1517 = vcmp.eq.f32.partialorder %v1509, 0.0
    %v1518 = vand.u32 %v1509, 2147483648
    %v1519 = vsel %vm1517, %v1518, %v1516
    %v1520 = vrsqrt.pop %v1510
    %v1521 = vmul.f32 %v1510, %v1520
    %vm1522 = vcmp.eq.f32.partialorder %v1510, inf
    %v1523 = vsel %vm1522, %v1510, %v1521
    %vm1524 = vcmp.eq.f32.partialorder %v1510, 0.0
    %v1525 = vand.u32 %v1510, 2147483648
    %v1526 = vsel %vm1524, %v1525, %v1523
    %v1527 = vrsqrt.pop %v1511
    %v1528 = vmul.f32 %v1511, %v1527
    %vm1529 = vcmp.eq.f32.partialorder %v1511, inf
    %v1530 = vsel %vm1529, %v1511, %v1528
    %vm1531 = vcmp.eq.f32.partialorder %v1511, 0.0
    %v1532 = vand.u32 %v1511, 2147483648
    %v1533 = vsel %vm1531, %v1532, %v1530
    %v1534 = vrsqrt.pop %v1512
    %v1535 = vmul.f32 %v1512, %v1534
    %vm1536 = vcmp.eq.f32.partialorder %v1512, inf
    %v1537 = vsel %vm1536, %v1512, %v1535
    %vm1538 = vcmp.eq.f32.partialorder %v1512, 0.0
    %v1539 = vand.u32 %v1512, 2147483648
    %v1540 = vsel %vm1538, %v1539, %v1537
    %v1541 = vmul.f32 %v1297, %v1297
    %v1542 = vmul.f32 %v1302, %v1302
    %v1543 = vmul.f32 %v1307, %v1307
    %v1544 = vmul.f32 %v1312, %v1312
    %v1545 = vmul.f32 %v1479, %v1479
    %v1546 = vmul.f32 %v1484, %v1484
    %v1547 = vmul.f32 %v1489, %v1489
    %v1548 = vmul.f32 %v1494, %v1494
    %v1549 = vadd.f32 %v1541, %v1545
    %v1550 = vadd.f32 %v1542, %v1546
    %v1551 = vadd.f32 %v1543, %v1547
    %v1552 = vadd.f32 %v1544, %v1548
    %v1553 = vadd.f32 %v1549, 1e-08
    %v1554 = vadd.f32 %v1550, 1e-08
    %v1555 = vadd.f32 %v1551, 1e-08
    %v1556 = vadd.f32 %v1552, 1e-08
    %v1557 = vrsqrt.pop %v1553
    %v1558 = vmul.f32 %v1553, %v1557
    %vm1559 = vcmp.eq.f32.partialorder %v1553, inf
    %v1560 = vsel %vm1559, %v1553, %v1558
    %vm1561 = vcmp.eq.f32.partialorder %v1553, 0.0
    %v1562 = vand.u32 %v1553, 2147483648
    %v1563 = vsel %vm1561, %v1562, %v1560
    %v1564 = vrsqrt.pop %v1554
    %v1565 = vmul.f32 %v1554, %v1564
    %vm1566 = vcmp.eq.f32.partialorder %v1554, inf
    %v1567 = vsel %vm1566, %v1554, %v1565
    %vm1568 = vcmp.eq.f32.partialorder %v1554, 0.0
    %v1569 = vand.u32 %v1554, 2147483648
    %v1570 = vsel %vm1568, %v1569, %v1567
    %v1571 = vrsqrt.pop %v1555
    %v1572 = vmul.f32 %v1555, %v1571
    %vm1573 = vcmp.eq.f32.partialorder %v1555, inf
    %v1574 = vsel %vm1573, %v1555, %v1572
    %vm1575 = vcmp.eq.f32.partialorder %v1555, 0.0
    %v1576 = vand.u32 %v1555, 2147483648
    %v1577 = vsel %vm1575, %v1576, %v1574
    %v1578 = vrsqrt.pop %v1556
    %v1579 = vmul.f32 %v1556, %v1578
    %vm1580 = vcmp.eq.f32.partialorder %v1556, inf
    %v1581 = vsel %vm1580, %v1556, %v1579
    %vm1582 = vcmp.eq.f32.partialorder %v1556, 0.0
    %v1583 = vand.u32 %v1556, 2147483648
    %v1584 = vsel %vm1582, %v1583, %v1581
    %v1585 = vsub.f32 %v1519, %v1563
    %v1586 = vsub.f32 %v1526, %v1570
    %v1587 = vsub.f32 %v1533, %v1577
    %v1588 = vsub.f32 %v1540, %v1584
    %v1589 = vand.u32 2147483647, %v1585
    %v1590 = vand.u32 2147483647, %v1586
    %v1591 = vand.u32 2147483647, %v1587
    %v1592 = vand.u32 2147483647, %v1588
    %v1593 = vsel %vm111, %v1589, 0.0
    %v1594 = vsel %vm111, %v1590, 0.0
    %v1595 = vadd.f32 %v1593, %v1594
    %v1596 = vsel %vm111, %v1591, 0.0
    %v1597 = vadd.f32 %v1595, %v1596
    %v1598 = vsel %vm111, %v1592, 0.0
    %v1599 = vadd.f32 %v1597, %v1598
    %1600 = vadd.xlane.f32.xlu0 %v1599
    %v1601 = vpop.xlane.xlu0 %1600
    %v1602 = vrot.slane %v1601, 4
    %v1603 = vadd.f32 %v1601, %v1602
    %v1604 = vrot.slane %v1603, 2
    %v1605 = vadd.f32 %v1603, %v1604
    %v1606 = vrot.slane %v1605, 1
    %v1607 = vadd.f32 %v1605, %v1606
    %s1608 = vtos %v1607
    %v1609 = vlaneseq
    %v1610 = vand.u32 %v1609, 127
    %vm1611 = vcmp.eq.s32.totalorder %v1610, 0
    %v1612 = vstv %s127
    %v1613 = vsel %vm1611, %v1612, 0.0
    %vm1614 = vcmp.eq.s32.totalorder %v1610, 1
    %v1615 = vstv %s147
    %v1616 = vsel %vm1614, %v1615, 0.0
    %v1617 = vadd.f32 %v1613, %v1616
    %vm1618 = vcmp.eq.s32.totalorder %v1610, 2
    %v1619 = vstv %s922
    %v1620 = vsel %vm1618, %v1619, 0.0
    %v1621 = vadd.f32 %v1617, %v1620
    %vm1622 = vcmp.eq.s32.totalorder %v1610, 3
    %v1623 = vstv %s1608
    %v1624 = vsel %vm1622, %v1623, 0.0
    %v1625 = vadd.f32 %v1621, %v1624
    %1626 = vst [vmem:[#allocation10] sm:$0x1] %v1625
    // Predicated region
    $region34: #{tpu_custom_call.1} parent=1 // pred_check
      _
    $region35: #{tpu_custom_call.1} parent=1 // pred_check_branch
      %1628 = sbr.rel (0) target = $region37
    $region36: #{tpu_custom_call.1} parent=1 // pred_region
      %s1630 = ssub.s32 16, 16
      %1631 = vsyncadd [#allocation4], %s1630
      %s1633 = sshll.u32 [#allocation10], 4
      %s1634 = int_to_ptr.vmem [resolvable:$true] %s1633
      %1636 = dma.vmem_to_hbm [thread:$0]  %s1634, 16, %s4, [#allocation4]
    $region37: #{tpu_custom_call.1} parent=1 // pred_fallthru
      _
    // Predicated region
    $region38: #{tpu_custom_call.1} parent=1 // pred_check
      _
    $region39: #{tpu_custom_call.1} parent=1 // pred_check_branch
      %1638 = sbr.rel (0) target = $region41
    $region40: #{tpu_custom_call.1} parent=1 // pred_region
      %1639 = dma.done [#allocation4], 16
    $region41: #{tpu_custom_call.1} parent=1 // pred_fallthru
      _
    %1640 = vsyncpa [#allocation3], 1
    %1641 = vsyncpa [#allocation6], 1
    %1642 = vsyncpa [#allocation9], 1
    %1643 = vsyncpa [#allocation4], 1

</llo_original>
